<compile_context>
chip_gen: v7x
topology: tpu7x:2x2x1
jax: 0.10.0
libtpu: 0.0.40
codegen_flags: <defaults>
</compile_context>

<pallas_src>
import math
import functools

import jax
import jax.numpy as jnp
from jax import lax
from jax.experimental import pallas as pl
from jax.experimental.pallas import tpu as pltpu


# ---------------------------------------------------------------------------
# generation-aware scoped-VMEM limit
# ---------------------------------------------------------------------------
_SMALLEST_DEFAULT_SCOPED_VMEM = 16 * 1024 * 1024     # v5e default scoped limit


def _vmem_capacity_bytes():
    try:
        info = pltpu.get_tpu_info()
        cap = getattr(info, "vmem_capacity_bytes", None)
        if cap:
            return int(cap)
    except Exception:
        pass
    return 64 * 1024 * 1024                          # conservative (v7x per-core)


def _maybe_vmem_limit(est_bytes):
    """Explicit scoped-VMEM limit only when the working set may exceed the
    smallest default (16 MiB on v5e); capped at ~85% of physical VMEM."""
    if est_bytes <= _SMALLEST_DEFAULT_SCOPED_VMEM:
        return None
    cap = _vmem_capacity_bytes()
    return int(min(max(int(est_bytes), _SMALLEST_DEFAULT_SCOPED_VMEM),
                   int(0.85 * cap)))


# ---------------------------------------------------------------------------
# in-kernel helpers (f32 math)
# ---------------------------------------------------------------------------
def _layernorm(x, gamma, beta, eps=1e-5):
    mu = jnp.mean(x, axis=-1, keepdims=True)
    var = jnp.mean((x - mu) ** 2, axis=-1, keepdims=True)
    return (x - mu) * lax.rsqrt(var + eps) * gamma + beta


def _gelu_exact(x):
    # exact (erf-based) GELU, matching torch.nn.GELU() default
    return 0.5 * x * (1.0 + lax.erf(x * (1.0 / math.sqrt(2.0))))


# ---------------------------------------------------------------------------
# fused decoder kernel: grid = (batch_blocks, n_layers), layer axis inner.
#   residual stream kept in VMEM scratch across layers; weights for layer l
#   selected by the index_map (pipelined by Pallas across the layer axis).
# ---------------------------------------------------------------------------
def fused_decoder_kernel(
    vl_ref,                                     # scalar prefetch: (B,) int32 SMEM
    x_ref,                                      # (Bt, S, D) f32
    ln1_g_ref, ln1_b_ref,                       # (1, 1, D) f32
    wq_ref, bq_ref,                             # (1, D, D) bf16 / (1, 1, D) f32
    wkv_ref, bkv_ref,                           # (1, D, 2D) bf16 / (1, 1, 2D) f32
    wo_ref, bo_ref,                             # (1, D, D) bf16 / (1, 1, D) f32
    ln2_g_ref, ln2_b_ref,                       # (1, 1, D) f32
    w1_ref, b1_ref,                             # (1, D, F) bf16 / (1, 1, F) f32
    w2_ref, b2_ref,                             # (1, F, D) bf16 / (1, 1, D) f32
    out_ref,                                    # (Bt, S, D) f32
    res_ref,                                    # scratch: (Bt, S, D) f32 residual
    *, n_heads, n_layers,
):
    bb = pl.program_id(0)
    l = pl.program_id(1)

    Bt, S, D = x_ref.shape
    H = n_heads
    dh = D // H
    M = Bt * S
    res_scale = 1.0 / math.sqrt(n_layers)
    inv_sqrt_dh = 1.0 / math.sqrt(dh)

    # layer 0: load the embedding block into the resident residual stream
    @pl.when(l == 0)
    def _():
        res_ref[...] = x_ref[...]

    x = res_ref[...].reshape(M, D)              # (M, D) f32, batch folded into M

    # ---- masked MHA: Q from LN1(x); K/V from raw x (matches reference) ------
    xn = _layernorm(x, ln1_g_ref[0], ln1_b_ref[0])
    q = jnp.dot(xn.astype(jnp.bfloat16), wq_ref[0],
                preferred_element_type=jnp.float32) + bq_ref[0]
    kv = jnp.dot(x.astype(jnp.bfloat16), wkv_ref[0],      # fused K/V projection
                 preferred_element_type=jnp.float32) + bkv_ref[0]

    q_bf = q.astype(jnp.bfloat16)
    k_bf = kv[:, :D].astype(jnp.bfloat16)
    v_bf = kv[:, D:].astype(jnp.bfloat16)

    # head split via reshape + transpose (no per-head lane slicing / concat)
    def _split_heads(t):                        # (M, D) -> (Bt*H, S, dh)
        t4 = t.reshape(Bt, S, H, dh)
        return jnp.transpose(t4, (0, 2, 1, 3)).reshape(Bt * H, S, dh)

    qh = _split_heads(q_bf)
    kh = _split_heads(k_bf)
    vh = _split_heads(v_bf)

    scores = jnp.einsum('bqd,bkd->bqk', qh, kh,
                        preferred_element_type=jnp.float32) * inv_sqrt_dh
    scores = scores.reshape(Bt, H, S, S)

    # causal + key-length additive bias built in-kernel from prefetched lens
    row = lax.broadcasted_iota(jnp.int32, (S, S), 0)
    col = lax.broadcasted_iota(jnp.int32, (S, S), 1)
    causal = col <= row
    bias_rows = []
    for i in range(Bt):                         # Bt is small & static
        vl_i = vl_ref[bb * Bt + i]
        keep_i = jnp.logical_and(causal, col < vl_i)
        bias_rows.append(jnp.where(keep_i, 0.0, -1e30).astype(jnp.float32))
    bias = jnp.stack(bias_rows, axis=0)         # (Bt, S, S) f32
    scores = scores + bias[:, None, :, :]       # finite fill: no NaNs

    scores = scores - jnp.max(scores, axis=-1, keepdims=True)
    p = jnp.exp(scores)
    p = p * pl.reciprocal(jnp.sum(p, axis=-1, keepdims=True), approx=True)
    p = p.reshape(Bt * H, S, S)

    ctx = jnp.einsum('bqk,bkd->bqd', p.astype(jnp.bfloat16), vh,
                     preferred_element_type=jnp.float32)          # (Bt*H, S, dh)
    attn = jnp.transpose(ctx.reshape(Bt, H, S, dh), (0, 2, 1, 3)).reshape(M, D)
    attn = jnp.dot(attn.astype(jnp.bfloat16), wo_ref[0],
                   preferred_element_type=jnp.float32) + bo_ref[0]

    y = x + res_scale * attn

    # ---- feed-forward block --------------------------------------------------
    yn = _layernorm(y, ln2_g_ref[0], ln2_b_ref[0])
    h1 = jnp.dot(yn.astype(jnp.bfloat16), w1_ref[0],
                 preferred_element_type=jnp.float32) + b1_ref[0]
    h1 = _gelu_exact(h1)
    z = jnp.dot(h1.astype(jnp.bfloat16), w2_ref[0],
                preferred_element_type=jnp.float32) + b2_ref[0]

    new_res = (y + res_scale * z).reshape(Bt, S, D)
    res_ref[...] = new_res

    @pl.when(l == pl.num_programs(1) - 1)
    def _():
        out_ref[...] = new_res.astype(out_ref.dtype)


def _pick_b_tile(B, S, H, D, F):
    """Largest divisor of B whose per-step activations fit a VMEM budget;
    target at least ~256 matmul rows (Bt*S) when possible."""
    budget = 20 * 1024 * 1024
    best = 1
    for bt in range(1, B + 1):
        if B % bt:
            continue
        act = 4 * (bt * S * (10 * D + 3 * F) + 5 * bt * H * S * S)
        if act > budget and bt > 1:
            break
        best = bt
        if bt * S >= 256:
            break
    return best


def fused_decoder(x, valid_lens, p, *, n_heads, n_layers):
    B, S, D = x.shape
    F = p["w1"].shape[2]
    L = n_layers
    H = n_heads

    Bt = _pick_b_tile(B, S, H, D, F)
    nbb = B // Bt

    def _lspec(arr):                             # layer-stacked (L, d1, d2) blocks
        _, d1, d2 = arr.shape
        return pl.BlockSpec((1, d1, d2), lambda bb, l, vl: (l, 0, 0))

    kernel = functools.partial(fused_decoder_kernel,
                               n_heads=H, n_layers=L)

    # VMEM estimate: double-buffered bf16 layer weights + f32 activations + I/O
    weight_bytes = 2 * (4 * D * D + 2 * D * F) + 4 * (8 * D + 2 * F)
    act_bytes = 4 * (Bt * S * (10 * D + 3 * F) + 5 * H * Bt * S * S)
    io_bytes = 4 * Bt * S * D * 3
    est = 2 * (weight_bytes + io_bytes) + act_bytes + (4 << 20)

    return pl.pallas_call(
        kernel,
        out_shape=jax.ShapeDtypeStruct((B, S, D), jnp.float32),
        grid_spec=pltpu.PrefetchScalarGridSpec(
            num_scalar_prefetch=1,
            grid=(nbb, L),
            in_specs=[
                pl.BlockSpec((Bt, S, D), lambda bb, l, vl: (bb, 0, 0)),   # x
                _lspec(p["ln1_g"]), _lspec(p["ln1_b"]),
                _lspec(p["wq"]), _lspec(p["bq"]),
                _lspec(p["wkv"]), _lspec(p["bkv"]),
                _lspec(p["wo"]), _lspec(p["bo"]),
                _lspec(p["ln2_g"]), _lspec(p["ln2_b"]),
                _lspec(p["w1"]), _lspec(p["b1"]),
                _lspec(p["w2"]), _lspec(p["b2"]),
            ],
            out_specs=pl.BlockSpec((Bt, S, D), lambda bb, l, vl: (bb, 0, 0)),
            scratch_shapes=[pltpu.VMEM((Bt, S, D), jnp.float32)],
        ),
        compiler_params=pltpu.CompilerParams(
            dimension_semantics=("parallel", "arbitrary"),
            vmem_limit_bytes=_maybe_vmem_limit(est),
        ),
    )(
        valid_lens,
        x,
        p["ln1_g"], p["ln1_b"],
        p["wq"], p["bq"], p["wkv"], p["bkv"], p["wo"], p["bo"],
        p["ln2_g"], p["ln2_b"],
        p["w1"], p["b1"], p["w2"], p["b2"],
    )


# ---------------------------------------------------------------------------
# tied output projection: logits = x @ E.T   (rows = B*S, vocab padded to 128)
# vocab axis outer / row axis inner -> each bf16 weight tile streamed once
# ---------------------------------------------------------------------------
def logits_kernel(x_ref, w_ref, out_ref):
    out_ref[...] = jnp.dot(
        x_ref[...].astype(jnp.bfloat16), w_ref[...],
        preferred_element_type=jnp.float32,
    ).astype(out_ref.dtype)


def compute_logits(x, emb):
    """logits = x @ emb.T (tied token-embedding weights)."""
    B, S, D = x.shape
    V = emb.shape[0]
    M = B * S
    x2 = x.reshape(M, D)

    Vp = ((V + 127) // 128) * 128                    # lane-dense vocab
    w = emb.T.astype(jnp.bfloat16)                   # (D, V) bf16
    if Vp != V:
        w = jnp.pad(w, ((0, 0), (0, Vp - V)))

    TV = Vp
    for cand in (2048, 1024, 512, 256, 128):
        if Vp % cand == 0:
            TV = cand
            break
    TM = M
    for cand in (512, 256, 128):
        if M % cand == 0:
            TM = cand
            break

    est = 2 * (TM * D * 4 + D * TV * 2 + TM * TV * 4) + (2 << 20)
    out = pl.pallas_call(
        logits_kernel,
        out_shape=jax.ShapeDtypeStruct((M, Vp), jnp.float32),
        grid=(Vp // TV, M // TM),                    # vocab outer, rows inner
        in_specs=[
            pl.BlockSpec((TM, D), lambda v, m: (m, 0)),
            pl.BlockSpec((D, TV), lambda v, m: (0, v)),   # resident across inner axis
        ],
        out_specs=pl.BlockSpec((TM, TV), lambda v, m: (m, v)),
        compiler_params=pltpu.CompilerParams(
            dimension_semantics=("parallel", "parallel"),
            vmem_limit_bytes=_maybe_vmem_limit(est),
        ),
    )(x2, w)
    return out[:, :V].reshape(B, S, V)


# ---------------------------------------------------------------------------
# full model forward (plain-JAX glue: embedding gather only)
# ---------------------------------------------------------------------------
def decoder_only_forward(X, valid_lens, params, *, n_heads, n_layers):
    assert valid_lens is not None
    emb = params["token_embedding"]                  # (V, D) f32
    x = jnp.take(emb, X, axis=0)                     # token embedding (B, S, D)
    # pos_encoding is None -> no positional embedding / RoPE; dropout = identity
    vl = valid_lens.astype(jnp.int32)
    x = fused_decoder(x, vl, params, n_heads=n_heads, n_layers=n_layers)
    return compute_logits(x, emb)                    # tied weights: x @ E.T


# ---------------------------------------------------------------------------
# deterministic parameter init (layer-stacked; weights bf16, biases/LN f32)
# ---------------------------------------------------------------------------
def init_params(key, vocab, d_model, ffn, n_layers):
    L, D, F = n_layers, d_model, ffn
    ks = jax.random.split(key, 14)
    s = 0.05

    def w(k, shape):
        return (s * jax.random.normal(k, shape, jnp.float32)).astype(jnp.bfloat16)

    def b(k, shape):
        return s * jax.random.normal(k, shape, jnp.float32)

    wk = s * jax.random.normal(ks[3], (L, D, D), jnp.float32)
    wv = s * jax.random.normal(ks[4], (L, D, D), jnp.float32)
    bk = b(ks[5], (L, 1, D))
    bv = b(ks[6], (L, 1, D))

    return {
        "token_embedding": jax.random.normal(ks[0], (vocab, D), jnp.float32),
        "ln1_g": jnp.ones((L, 1, D), jnp.float32),
        "ln1_b": jnp.zeros((L, 1, D), jnp.float32),
        "wq": w(ks[1], (L, D, D)),
        "bq": b(ks[2], (L, 1, D)),
        "wkv": jnp.concatenate([wk, wv], axis=2).astype(jnp.bfloat16),
        "bkv": jnp.concatenate([bk, bv], axis=2),
        "wo": w(ks[7], (L, D, D)),
        "bo": b(ks[8], (L, 1, D)),
        "ln2_g": jnp.ones((L, 1, D), jnp.float32),
        "ln2_b": jnp.zeros((L, 1, D), jnp.float32),
        "w1": w(ks[9], (L, D, F)),
        "b1": b(ks[10], (L, 1, F)),
        "w2": w(ks[11], (L, F, D)),
        "b2": b(ks[12], (L, 1, D)),
    }


# ---------------------------------------------------------------------------
if __name__ == "__main__":
    # small, module-consistent shapes
    BATCH, SEQ = 2, 8
    VOCAB, D_MODEL, N_HEADS, N_LAYERS, FFN = 64, 128, 4, 2, 256

    key = jax.random.PRNGKey(0)
    k_par, k_tok = jax.random.split(key)

    params = init_params(k_par, VOCAB, D_MODEL, FFN, N_LAYERS)
    X = jax.random.randint(k_tok, (BATCH, SEQ), 0, VOCAB, dtype=jnp.int32)
    valid_lens = jnp.array([SEQ, 5], dtype=jnp.int32)     # shape (batch,)

    logits = decoder_only_forward(
        X, valid_lens, params, n_heads=N_HEADS, n_layers=N_LAYERS
    )
    logits = jax.block_until_ready(logits)

    assert logits.shape == (BATCH, SEQ, VOCAB)
    assert bool(jnp.all(jnp.isfinite(logits)))
    print("KERNEL_OK")
</pallas_src>

<mosaic_0001>
module attributes {stable_mosaic.version = 11 : i64} {
  func.func @fused_decoder_kernel(%arg0: i32, %arg1: i32, %arg2: memref<2xi32, #tpu.memory_space<smem>>, %arg3: memref<2x8x128xf32, #tpu.memory_space<vmem>>, %arg4: memref<1x1x128xf32, #tpu.memory_space<vmem>>, %arg5: memref<1x1x128xf32, #tpu.memory_space<vmem>>, %arg6: memref<1x128x128xbf16, #tpu.memory_space<vmem>>, %arg7: memref<1x1x128xf32, #tpu.memory_space<vmem>>, %arg8: memref<1x128x256xbf16, #tpu.memory_space<vmem>>, %arg9: memref<1x1x256xf32, #tpu.memory_space<vmem>>, %arg10: memref<1x128x128xbf16, #tpu.memory_space<vmem>>, %arg11: memref<1x1x128xf32, #tpu.memory_space<vmem>>, %arg12: memref<1x1x128xf32, #tpu.memory_space<vmem>>, %arg13: memref<1x1x128xf32, #tpu.memory_space<vmem>>, %arg14: memref<1x128x256xbf16, #tpu.memory_space<vmem>>, %arg15: memref<1x1x256xf32, #tpu.memory_space<vmem>>, %arg16: memref<1x256x128xbf16, #tpu.memory_space<vmem>>, %arg17: memref<1x1x128xf32, #tpu.memory_space<vmem>>, %arg18: memref<2x8x128xf32, #tpu.memory_space<vmem>>, %arg19: memref<2x8x128xf32, #tpu.memory_space<vmem>>) attributes {dimension_semantics = [#tpu.dimension_semantics<parallel>, #tpu.dimension_semantics<arbitrary>], iteration_bounds = array<i64: 1, 2>, scalar_prefetch = 1 : i64, scratch_operands = 1 : i64, tpu.core_type = #tpu.core_type<tc>, window_params = [{transform_indices = @transform_0, window_bounds = array<i64: 2, 8, 128>}, {transform_indices = @transform_1, window_bounds = array<i64: 1, 1, 128>}, {transform_indices = @transform_2, window_bounds = array<i64: 1, 1, 128>}, {transform_indices = @transform_3, window_bounds = array<i64: 1, 128, 128>}, {transform_indices = @transform_4, window_bounds = array<i64: 1, 1, 128>}, {transform_indices = @transform_5, window_bounds = array<i64: 1, 128, 256>}, {transform_indices = @transform_6, window_bounds = array<i64: 1, 1, 256>}, {transform_indices = @transform_7, window_bounds = array<i64: 1, 128, 128>}, {transform_indices = @transform_8, window_bounds = array<i64: 1, 1, 128>}, {transform_indices = @transform_9, window_bounds = array<i64: 1, 1, 128>}, {transform_indices = @transform_10, window_bounds = array<i64: 1, 1, 128>}, {transform_indices = @transform_11, window_bounds = array<i64: 1, 128, 256>}, {transform_indices = @transform_12, window_bounds = array<i64: 1, 1, 256>}, {transform_indices = @transform_13, window_bounds = array<i64: 1, 256, 128>}, {transform_indices = @transform_14, window_bounds = array<i64: 1, 1, 128>}, {transform_indices = @transform_15, window_bounds = array<i64: 2, 8, 128>}]} {
    %c0_i32 = arith.constant 0 : i32
    %0 = arith.cmpi eq, %arg1, %c0_i32 : i32
    %1 = arith.extui %0 : i1 to i32
    %c0_i32_0 = arith.constant 0 : i32
    %2 = arith.cmpi ne, %1, %c0_i32_0 : i32
    scf.if %2 {
      %c0_80 = arith.constant 0 : index
      %c0_81 = arith.constant 0 : index
      %c0_82 = arith.constant 0 : index
      %179 = vector.load %arg3[%c0_80, %c0_81, %c0_82] : memref<2x8x128xf32, #tpu.memory_space<vmem>>, vector<2x8x128xf32>
      %c0_83 = arith.constant 0 : index
      %c0_84 = arith.constant 0 : index
      %c0_85 = arith.constant 0 : index
      %180 = vector.load %arg19[%c0_83, %c0_84, %c0_85] : memref<2x8x128xf32, #tpu.memory_space<vmem>>, vector<2x8x128xf32>
      tpu.vector_store %arg19[%c0_83, %c0_84, %c0_85], %179 {strides = array<i32>} : memref<2x8x128xf32, #tpu.memory_space<vmem>>, vector<2x8x128xf32>,
    } else {
    }
    %c0 = arith.constant 0 : index
    %c0_1 = arith.constant 0 : index
    %c0_2 = arith.constant 0 : index
    %3 = vector.load %arg19[%c0, %c0_1, %c0_2] : memref<2x8x128xf32, #tpu.memory_space<vmem>>, vector<2x8x128xf32>
    %4 = vector.shape_cast %3 : vector<2x8x128xf32> to vector<16x128xf32>
    %c0_3 = arith.constant 0 : index
    %c0_4 = arith.constant 0 : index
    %c0_5 = arith.constant 0 : index
    %5 = vector.load %arg4[%c0_3, %c0_4, %c0_5] : memref<1x1x128xf32, #tpu.memory_space<vmem>>, vector<1x1x128xf32>
    %6 = vector.shape_cast %5 : vector<1x1x128xf32> to vector<1x128xf32>
    %c0_6 = arith.constant 0 : index
    %c0_7 = arith.constant 0 : index
    %c0_8 = arith.constant 0 : index
    %7 = vector.load %arg5[%c0_6, %c0_7, %c0_8] : memref<1x1x128xf32, #tpu.memory_space<vmem>>, vector<1x1x128xf32>
    %8 = vector.shape_cast %7 : vector<1x1x128xf32> to vector<1x128xf32>
    %cst = arith.constant dense<0.000000e+00> : vector<16xf32>
    %9 = vector.multi_reduction <add>, %4, %cst [1] : vector<16x128xf32> to vector<16xf32>
    %10 = vector.shape_cast %9 : vector<16xf32> to vector<16x1xf32>
    %cst_9 = arith.constant 1.280000e+02 : f32
    %11 = vector.broadcast %cst_9 : f32 to vector<16x1xf32>
    %12 = arith.divf %10, %11 : vector<16x1xf32>
    %13 = vector.broadcast %12 : vector<16x1xf32> to vector<16x128xf32>
    %14 = arith.subf %4, %13 : vector<16x128xf32>
    %15 = arith.mulf %14, %14 : vector<16x128xf32>
    %cst_10 = arith.constant dense<0.000000e+00> : vector<16xf32>
    %16 = vector.multi_reduction <add>, %15, %cst_10 [1] : vector<16x128xf32> to vector<16xf32>
    %17 = vector.shape_cast %16 : vector<16xf32> to vector<16x1xf32>
    %cst_11 = arith.constant 1.280000e+02 : f32
    %18 = vector.broadcast %cst_11 : f32 to vector<16x1xf32>
    %19 = arith.divf %17, %18 : vector<16x1xf32>
    %20 = vector.broadcast %12 : vector<16x1xf32> to vector<16x128xf32>
    %21 = arith.subf %4, %20 : vector<16x128xf32>
    %cst_12 = arith.constant 9.99999974E-6 : f32
    %22 = vector.broadcast %cst_12 : f32 to vector<16x1xf32>
    %23 = arith.addf %19, %22 : vector<16x1xf32>
    %24 = math.rsqrt %23 : vector<16x1xf32>
    %25 = vector.broadcast %24 : vector<16x1xf32> to vector<16x128xf32>
    %26 = arith.mulf %21, %25 : vector<16x128xf32>
    %27 = vector.broadcast %6 : vector<1x128xf32> to vector<16x128xf32>
    %28 = arith.mulf %26, %27 : vector<16x128xf32>
    %29 = vector.broadcast %8 : vector<1x128xf32> to vector<16x128xf32>
    %30 = arith.addf %28, %29 : vector<16x128xf32>
    %31 = arith.truncf %30 : vector<16x128xf32> to vector<16x128xbf16>
    %c0_13 = arith.constant 0 : index
    %c0_14 = arith.constant 0 : index
    %c0_15 = arith.constant 0 : index
    %32 = vector.load %arg6[%c0_13, %c0_14, %c0_15] : memref<1x128x128xbf16, #tpu.memory_space<vmem>>, vector<1x128x128xbf16>
    %33 = vector.shape_cast %32 : vector<1x128x128xbf16> to vector<128x128xbf16>
    %cst_16 = arith.constant dense<0.000000e+00> : vector<16x128xf32>
    %34 = tpu.matmul %31, %33, %cst_16 {dimension_numbers = #tpu.dot_dimension_numbers<[1], [0], [0], [1], [0, 0, 1, 1], [], []>} : vector<16x128xbf16>, vector<128x128xbf16>, vector<16x128xf32> -> vector<16x128xf32>
    %c0_17 = arith.constant 0 : index
    %c0_18 = arith.constant 0 : index
    %c0_19 = arith.constant 0 : index
    %35 = vector.load %arg7[%c0_17, %c0_18, %c0_19] : memref<1x1x128xf32, #tpu.memory_space<vmem>>, vector<1x1x128xf32>
    %36 = vector.shape_cast %35 : vector<1x1x128xf32> to vector<1x128xf32>
    %37 = vector.broadcast %36 : vector<1x128xf32> to vector<16x128xf32>
    %38 = arith.addf %34, %37 : vector<16x128xf32>
    %39 = arith.truncf %4 : vector<16x128xf32> to vector<16x128xbf16>
    %c0_20 = arith.constant 0 : index
    %c0_21 = arith.constant 0 : index
    %c0_22 = arith.constant 0 : index
    %40 = vector.load %arg8[%c0_20, %c0_21, %c0_22] : memref<1x128x256xbf16, #tpu.memory_space<vmem>>, vector<1x128x256xbf16>
    %41 = vector.shape_cast %40 : vector<1x128x256xbf16> to vector<128x256xbf16>
    %cst_23 = arith.constant dense<0.000000e+00> : vector<16x256xf32>
    %42 = tpu.matmul %39, %41, %cst_23 {dimension_numbers = #tpu.dot_dimension_numbers<[1], [0], [0], [1], [0, 0, 1, 1], [], []>} : vector<16x128xbf16>, vector<128x256xbf16>, vector<16x256xf32> -> vector<16x256xf32>
    %c0_24 = arith.constant 0 : index
    %c0_25 = arith.constant 0 : index
    %c0_26 = arith.constant 0 : index
    %43 = vector.load %arg9[%c0_24, %c0_25, %c0_26] : memref<1x1x256xf32, #tpu.memory_space<vmem>>, vector<1x1x256xf32>
    %44 = vector.shape_cast %43 : vector<1x1x256xf32> to vector<1x256xf32>
    %45 = vector.broadcast %44 : vector<1x256xf32> to vector<16x256xf32>
    %46 = arith.addf %42, %45 : vector<16x256xf32>
    %47 = arith.truncf %38 : vector<16x128xf32> to vector<16x128xbf16>
    %48 = vector.extract_strided_slice %46 {offsets = [0, 0], sizes = [16, 128], strides = [1, 1]} : vector<16x256xf32> to vector<16x128xf32>
    %49 = arith.truncf %48 : vector<16x128xf32> to vector<16x128xbf16>
    %50 = vector.extract_strided_slice %46 {offsets = [0, 128], sizes = [16, 128], strides = [1, 1]} : vector<16x256xf32> to vector<16x128xf32>
    %51 = arith.truncf %50 : vector<16x128xf32> to vector<16x128xbf16>
    %52 = vector.shape_cast %47 : vector<16x128xbf16> to vector<2x8x4x32xbf16>
    %53 = tpu.transpose %52, [0, 2, 1, 3] : vector<2x8x4x32xbf16> -> vector<2x4x8x32xbf16>
    %54 = vector.shape_cast %53 : vector<2x4x8x32xbf16> to vector<8x8x32xbf16>
    %55 = vector.shape_cast %49 : vector<16x128xbf16> to vector<2x8x4x32xbf16>
    %56 = tpu.transpose %55, [0, 2, 1, 3] : vector<2x8x4x32xbf16> -> vector<2x4x8x32xbf16>
    %57 = vector.shape_cast %56 : vector<2x4x8x32xbf16> to vector<8x8x32xbf16>
    %58 = vector.shape_cast %51 : vector<16x128xbf16> to vector<2x8x4x32xbf16>
    %59 = tpu.transpose %58, [0, 2, 1, 3] : vector<2x8x4x32xbf16> -> vector<2x4x8x32xbf16>
    %60 = vector.shape_cast %59 : vector<2x4x8x32xbf16> to vector<8x8x32xbf16>
    "tpu.trace_start"() <{level = 10 : i32, message = "bqd,bkd->bqk"}> : () -> ()
    %cst_27 = arith.constant dense<0.000000e+00> : vector<8x8x8xf32>
    %61 = tpu.matmul %54, %57, %cst_27 {dimension_numbers = #tpu.dot_dimension_numbers<[2], [2], [1], [1], [0, 0, 0, 1, 1, 1], [0], [0]>} : vector<8x8x32xbf16>, vector<8x8x32xbf16>, vector<8x8x8xf32> -> vector<8x8x8xf32>
    "tpu.trace_stop"() : () -> ()
    %cst_28 = arith.constant 0.176776692 : f32
    %62 = vector.broadcast %cst_28 : f32 to vector<8x8x8xf32>
    %63 = arith.mulf %61, %62 : vector<8x8x8xf32>
    %64 = vector.shape_cast %63 : vector<8x8x8xf32> to vector<2x4x8x8xf32>
    %65 = tpu.iota {dimensions = array<i32: 0>} : vector<8x8xi32>
    %66 = tpu.iota {dimensions = array<i32: 1>} : vector<8x8xi32>
    %67 = arith.cmpi sle, %66, %65 : vector<8x8xi32>
    %c2_i32 = arith.constant 2 : i32
    %68 = arith.muli %arg0, %c2_i32 : i32
    %c0_i32_29 = arith.constant 0 : i32
    %69 = arith.addi %68, %c0_i32_29 : i32
    %70 = arith.index_cast %69 : i32 to index
    %71 = memref.load %arg2[%70] : memref<2xi32, #tpu.memory_space<smem>>
    %72 = vector.broadcast %71 : i32 to vector<8x8xi32>
    %73 = arith.cmpi slt, %66, %72 : vector<8x8xi32>
    %74 = arith.andi %67, %73 : vector<8x8xi1>
    %cst_30 = arith.constant 0.000000e+00 : f32
    %cst_31 = arith.constant -1.000000e+30 : f32
    %75 = vector.broadcast %cst_30 : f32 to vector<8x8xf32>
    %76 = vector.broadcast %cst_31 : f32 to vector<8x8xf32>
    %77 = arith.select %74, %75, %76 : vector<8x8xi1>, vector<8x8xf32>
    %c2_i32_32 = arith.constant 2 : i32
    %78 = arith.muli %arg0, %c2_i32_32 : i32
    %c1_i32 = arith.constant 1 : i32
    %79 = arith.addi %78, %c1_i32 : i32
    %80 = arith.index_cast %79 : i32 to index
    %81 = memref.load %arg2[%80] : memref<2xi32, #tpu.memory_space<smem>>
    %82 = vector.broadcast %81 : i32 to vector<8x8xi32>
    %83 = arith.cmpi slt, %66, %82 : vector<8x8xi32>
    %84 = arith.andi %67, %83 : vector<8x8xi1>
    %cst_33 = arith.constant 0.000000e+00 : f32
    %cst_34 = arith.constant -1.000000e+30 : f32
    %85 = vector.broadcast %cst_33 : f32 to vector<8x8xf32>
    %86 = vector.broadcast %cst_34 : f32 to vector<8x8xf32>
    %87 = arith.select %84, %85, %86 : vector<8x8xi1>, vector<8x8xf32>
    %88 = vector.shape_cast %77 : vector<8x8xf32> to vector<1x8x8xf32>
    %89 = vector.shape_cast %87 : vector<8x8xf32> to vector<1x8x8xf32>
    %90 = tpu.concatenate %88, %89 in 0 : vector<1x8x8xf32>, vector<1x8x8xf32> -> vector<2x8x8xf32>
    %91 = vector.shape_cast %90 : vector<2x8x8xf32> to vector<2x1x8x8xf32>
    %92 = vector.broadcast %91 : vector<2x1x8x8xf32> to vector<2x4x8x8xf32>
    %93 = arith.addf %64, %92 : vector<2x4x8x8xf32>
    %cst_35 = arith.constant dense<0xFF800000> : vector<2x4x8xf32>
    %94 = vector.multi_reduction <maximumf>, %93, %cst_35 [3] : vector<2x4x8x8xf32> to vector<2x4x8xf32>
    %95 = vector.shape_cast %94 : vector<2x4x8xf32> to vector<2x4x8x1xf32>
    %96 = vector.broadcast %95 : vector<2x4x8x1xf32> to vector<2x4x8x8xf32>
    %97 = arith.subf %93, %96 : vector<2x4x8x8xf32>
    %98 = math.exp %97 : vector<2x4x8x8xf32>
    %cst_36 = arith.constant dense<0.000000e+00> : vector<2x4x8xf32>
    %99 = vector.multi_reduction <add>, %98, %cst_36 [3] : vector<2x4x8x8xf32> to vector<2x4x8xf32>
    %100 = vector.shape_cast %99 : vector<2x4x8xf32> to vector<2x4x8x1xf32>
    %101 = tpu.reciprocal %100 {approx = true} : vector<2x4x8x1xf32> -> vector<2x4x8x1xf32>
    %102 = vector.broadcast %101 : vector<2x4x8x1xf32> to vector<2x4x8x8xf32>
    %103 = arith.mulf %98, %102 : vector<2x4x8x8xf32>
    %104 = vector.shape_cast %103 : vector<2x4x8x8xf32> to vector<8x8x8xf32>
    %105 = arith.truncf %104 : vector<8x8x8xf32> to vector<8x8x8xbf16>
    "tpu.trace_start"() <{level = 10 : i32, message = "bqk,bkd->bqd"}> : () -> ()
    %cst_37 = arith.constant dense<0.000000e+00> : vector<8x8x32xf32>
    %106 = tpu.matmul %105, %60, %cst_37 {dimension_numbers = #tpu.dot_dimension_numbers<[2], [1], [1], [2], [0, 0, 0, 1, 1, 2], [0], [0]>} : vector<8x8x8xbf16>, vector<8x8x32xbf16>, vector<8x8x32xf32> -> vector<8x8x32xf32>
    "tpu.trace_stop"() : () -> ()
    %107 = vector.shape_cast %106 : vector<8x8x32xf32> to vector<2x4x8x32xf32>
    %108 = tpu.transpose %107, [0, 2, 1, 3] : vector<2x4x8x32xf32> -> vector<2x8x4x32xf32>
    %109 = vector.shape_cast %108 : vector<2x8x4x32xf32> to vector<16x128xf32>
    %110 = arith.truncf %109 : vector<16x128xf32> to vector<16x128xbf16>
    %c0_38 = arith.constant 0 : index
    %c0_39 = arith.constant 0 : index
    %c0_40 = arith.constant 0 : index
    %111 = vector.load %arg10[%c0_38, %c0_39, %c0_40] : memref<1x128x128xbf16, #tpu.memory_space<vmem>>, vector<1x128x128xbf16>
    %112 = vector.shape_cast %111 : vector<1x128x128xbf16> to vector<128x128xbf16>
    %cst_41 = arith.constant dense<0.000000e+00> : vector<16x128xf32>
    %113 = tpu.matmul %110, %112, %cst_41 {dimension_numbers = #tpu.dot_dimension_numbers<[1], [0], [0], [1], [0, 0, 1, 1], [], []>} : vector<16x128xbf16>, vector<128x128xbf16>, vector<16x128xf32> -> vector<16x128xf32>
    %c0_42 = arith.constant 0 : index
    %c0_43 = arith.constant 0 : index
    %c0_44 = arith.constant 0 : index
    %114 = vector.load %arg11[%c0_42, %c0_43, %c0_44] : memref<1x1x128xf32, #tpu.memory_space<vmem>>, vector<1x1x128xf32>
    %115 = vector.shape_cast %114 : vector<1x1x128xf32> to vector<1x128xf32>
    %116 = vector.broadcast %115 : vector<1x128xf32> to vector<16x128xf32>
    %117 = arith.addf %113, %116 : vector<16x128xf32>
    %cst_45 = arith.constant 0.707106769 : f32
    %118 = vector.broadcast %cst_45 : f32 to vector<16x128xf32>
    %119 = arith.mulf %118, %117 : vector<16x128xf32>
    %120 = arith.addf %4, %119 : vector<16x128xf32>
    %c0_46 = arith.constant 0 : index
    %c0_47 = arith.constant 0 : index
    %c0_48 = arith.constant 0 : index
    %121 = vector.load %arg12[%c0_46, %c0_47, %c0_48] : memref<1x1x128xf32, #tpu.memory_space<vmem>>, vector<1x1x128xf32>
    %122 = vector.shape_cast %121 : vector<1x1x128xf32> to vector<1x128xf32>
    %c0_49 = arith.constant 0 : index
    %c0_50 = arith.constant 0 : index
    %c0_51 = arith.constant 0 : index
    %123 = vector.load %arg13[%c0_49, %c0_50, %c0_51] : memref<1x1x128xf32, #tpu.memory_space<vmem>>, vector<1x1x128xf32>
    %124 = vector.shape_cast %123 : vector<1x1x128xf32> to vector<1x128xf32>
    %cst_52 = arith.constant dense<0.000000e+00> : vector<16xf32>
    %125 = vector.multi_reduction <add>, %120, %cst_52 [1] : vector<16x128xf32> to vector<16xf32>
    %126 = vector.shape_cast %125 : vector<16xf32> to vector<16x1xf32>
    %cst_53 = arith.constant 1.280000e+02 : f32
    %127 = vector.broadcast %cst_53 : f32 to vector<16x1xf32>
    %128 = arith.divf %126, %127 : vector<16x1xf32>
    %129 = vector.broadcast %128 : vector<16x1xf32> to vector<16x128xf32>
    %130 = arith.subf %120, %129 : vector<16x128xf32>
    %131 = arith.mulf %130, %130 : vector<16x128xf32>
    %cst_54 = arith.constant dense<0.000000e+00> : vector<16xf32>
    %132 = vector.multi_reduction <add>, %131, %cst_54 [1] : vector<16x128xf32> to vector<16xf32>
    %133 = vector.shape_cast %132 : vector<16xf32> to vector<16x1xf32>
    %cst_55 = arith.constant 1.280000e+02 : f32
    %134 = vector.broadcast %cst_55 : f32 to vector<16x1xf32>
    %135 = arith.divf %133, %134 : vector<16x1xf32>
    %136 = vector.broadcast %128 : vector<16x1xf32> to vector<16x128xf32>
    %137 = arith.subf %120, %136 : vector<16x128xf32>
    %cst_56 = arith.constant 9.99999974E-6 : f32
    %138 = vector.broadcast %cst_56 : f32 to vector<16x1xf32>
    %139 = arith.addf %135, %138 : vector<16x1xf32>
    %140 = math.rsqrt %139 : vector<16x1xf32>
    %141 = vector.broadcast %140 : vector<16x1xf32> to vector<16x128xf32>
    %142 = arith.mulf %137, %141 : vector<16x128xf32>
    %143 = vector.broadcast %122 : vector<1x128xf32> to vector<16x128xf32>
    %144 = arith.mulf %142, %143 : vector<16x128xf32>
    %145 = vector.broadcast %124 : vector<1x128xf32> to vector<16x128xf32>
    %146 = arith.addf %144, %145 : vector<16x128xf32>
    %147 = arith.truncf %146 : vector<16x128xf32> to vector<16x128xbf16>
    %c0_57 = arith.constant 0 : index
    %c0_58 = arith.constant 0 : index
    %c0_59 = arith.constant 0 : index
    %148 = vector.load %arg14[%c0_57, %c0_58, %c0_59] : memref<1x128x256xbf16, #tpu.memory_space<vmem>>, vector<1x128x256xbf16>
    %149 = vector.shape_cast %148 : vector<1x128x256xbf16> to vector<128x256xbf16>
    %cst_60 = arith.constant dense<0.000000e+00> : vector<16x256xf32>
    %150 = tpu.matmul %147, %149, %cst_60 {dimension_numbers = #tpu.dot_dimension_numbers<[1], [0], [0], [1], [0, 0, 1, 1], [], []>} : vector<16x128xbf16>, vector<128x256xbf16>, vector<16x256xf32> -> vector<16x256xf32>
    %c0_61 = arith.constant 0 : index
    %c0_62 = arith.constant 0 : index
    %c0_63 = arith.constant 0 : index
    %151 = vector.load %arg15[%c0_61, %c0_62, %c0_63] : memref<1x1x256xf32, #tpu.memory_space<vmem>>, vector<1x1x256xf32>
    %152 = vector.shape_cast %151 : vector<1x1x256xf32> to vector<1x256xf32>
    %153 = vector.broadcast %152 : vector<1x256xf32> to vector<16x256xf32>
    %154 = arith.addf %150, %153 : vector<16x256xf32>
    %cst_64 = arith.constant 5.000000e-01 : f32
    %155 = vector.broadcast %cst_64 : f32 to vector<16x256xf32>
    %156 = arith.mulf %155, %154 : vector<16x256xf32>
    %cst_65 = arith.constant 0.707106769 : f32
    %157 = vector.broadcast %cst_65 : f32 to vector<16x256xf32>
    %158 = arith.mulf %154, %157 : vector<16x256xf32>
    %159 = math.erf %158 : vector<16x256xf32>
    %cst_66 = arith.constant 1.000000e+00 : f32
    %160 = vector.broadcast %cst_66 : f32 to vector<16x256xf32>
    %161 = arith.addf %160, %159 : vector<16x256xf32>
    %162 = arith.mulf %156, %161 : vector<16x256xf32>
    %163 = arith.truncf %162 : vector<16x256xf32> to vector<16x256xbf16>
    %c0_67 = arith.constant 0 : index
    %c0_68 = arith.constant 0 : index
    %c0_69 = arith.constant 0 : index
    %164 = vector.load %arg16[%c0_67, %c0_68, %c0_69] : memref<1x256x128xbf16, #tpu.memory_space<vmem>>, vector<1x256x128xbf16>
    %165 = vector.shape_cast %164 : vector<1x256x128xbf16> to vector<256x128xbf16>
    %cst_70 = arith.constant dense<0.000000e+00> : vector<16x128xf32>
    %166 = tpu.matmul %163, %165, %cst_70 {dimension_numbers = #tpu.dot_dimension_numbers<[1], [0], [0], [1], [0, 0, 1, 1], [], []>} : vector<16x256xbf16>, vector<256x128xbf16>, vector<16x128xf32> -> vector<16x128xf32>
    %c0_71 = arith.constant 0 : index
    %c0_72 = arith.constant 0 : index
    %c0_73 = arith.constant 0 : index
    %167 = vector.load %arg17[%c0_71, %c0_72, %c0_73] : memref<1x1x128xf32, #tpu.memory_space<vmem>>, vector<1x1x128xf32>
    %168 = vector.shape_cast %167 : vector<1x1x128xf32> to vector<1x128xf32>
    %169 = vector.broadcast %168 : vector<1x128xf32> to vector<16x128xf32>
    %170 = arith.addf %166, %169 : vector<16x128xf32>
    %cst_74 = arith.constant 0.707106769 : f32
    %171 = vector.broadcast %cst_74 : f32 to vector<16x128xf32>
    %172 = arith.mulf %171, %170 : vector<16x128xf32>
    %173 = arith.addf %120, %172 : vector<16x128xf32>
    %174 = vector.shape_cast %173 : vector<16x128xf32> to vector<2x8x128xf32>
    %c0_75 = arith.constant 0 : index
    %c0_76 = arith.constant 0 : index
    %c0_77 = arith.constant 0 : index
    %175 = vector.load %arg19[%c0_75, %c0_76, %c0_77] : memref<2x8x128xf32, #tpu.memory_space<vmem>>, vector<2x8x128xf32>
    tpu.vector_store %arg19[%c0_75, %c0_76, %c0_77], %174 {strides = array<i32>} : memref<2x8x128xf32, #tpu.memory_space<vmem>>, vector<2x8x128xf32>,
    %c1_i32_78 = arith.constant 1 : i32
    %176 = arith.cmpi eq, %arg1, %c1_i32_78 : i32
    %177 = arith.extui %176 : i1 to i32
    %c0_i32_79 = arith.constant 0 : i32
    %178 = arith.cmpi ne, %177, %c0_i32_79 : i32
    scf.if %178 {
      %c0_80 = arith.constant 0 : index
      %c0_81 = arith.constant 0 : index
      %c0_82 = arith.constant 0 : index
      %179 = vector.load %arg18[%c0_80, %c0_81, %c0_82] : memref<2x8x128xf32, #tpu.memory_space<vmem>>, vector<2x8x128xf32>
      tpu.vector_store %arg18[%c0_80, %c0_81, %c0_82], %174 {strides = array<i32>} : memref<2x8x128xf32, #tpu.memory_space<vmem>>, vector<2x8x128xf32>,
    } else {
    }
    return
  }
  func.func @transform_0(%arg0: i32, %arg1: i32, %arg2: memref<2xi32, #tpu.memory_space<smem>>) -> (i32, i32, i32) {
    %c0_i32 = arith.constant 0 : i32
    %c0_i32_0 = arith.constant 0 : i32
    %c0_i32_1 = arith.constant 0 : i32
    return %arg0, %c0_i32, %c0_i32_0 : i32, i32, i32
  }
  func.func @transform_1(%arg0: i32, %arg1: i32, %arg2: memref<2xi32, #tpu.memory_space<smem>>) -> (i32, i32, i32) {
    %c0_i32 = arith.constant 0 : i32
    %c0_i32_0 = arith.constant 0 : i32
    %c0_i32_1 = arith.constant 0 : i32
    return %arg1, %c0_i32, %c0_i32_0 : i32, i32, i32
  }
  func.func @transform_2(%arg0: i32, %arg1: i32, %arg2: memref<2xi32, #tpu.memory_space<smem>>) -> (i32, i32, i32) {
    %c0_i32 = arith.constant 0 : i32
    %c0_i32_0 = arith.constant 0 : i32
    %c0_i32_1 = arith.constant 0 : i32
    return %arg1, %c0_i32, %c0_i32_0 : i32, i32, i32
  }
  func.func @transform_3(%arg0: i32, %arg1: i32, %arg2: memref<2xi32, #tpu.memory_space<smem>>) -> (i32, i32, i32) {
    %c0_i32 = arith.constant 0 : i32
    %c0_i32_0 = arith.constant 0 : i32
    %c0_i32_1 = arith.constant 0 : i32
    return %arg1, %c0_i32, %c0_i32_0 : i32, i32, i32
  }
  func.func @transform_4(%arg0: i32, %arg1: i32, %arg2: memref<2xi32, #tpu.memory_space<smem>>) -> (i32, i32, i32) {
    %c0_i32 = arith.constant 0 : i32
    %c0_i32_0 = arith.constant 0 : i32
    %c0_i32_1 = arith.constant 0 : i32
    return %arg1, %c0_i32, %c0_i32_0 : i32, i32, i32
  }
  func.func @transform_5(%arg0: i32, %arg1: i32, %arg2: memref<2xi32, #tpu.memory_space<smem>>) -> (i32, i32, i32) {
    %c0_i32 = arith.constant 0 : i32
    %c0_i32_0 = arith.constant 0 : i32
    %c0_i32_1 = arith.constant 0 : i32
    return %arg1, %c0_i32, %c0_i32_0 : i32, i32, i32
  }
  func.func @transform_6(%arg0: i32, %arg1: i32, %arg2: memref<2xi32, #tpu.memory_space<smem>>) -> (i32, i32, i32) {
    %c0_i32 = arith.constant 0 : i32
    %c0_i32_0 = arith.constant 0 : i32
    %c0_i32_1 = arith.constant 0 : i32
    return %arg1, %c0_i32, %c0_i32_0 : i32, i32, i32
  }
  func.func @transform_7(%arg0: i32, %arg1: i32, %arg2: memref<2xi32, #tpu.memory_space<smem>>) -> (i32, i32, i32) {
    %c0_i32 = arith.constant 0 : i32
    %c0_i32_0 = arith.constant 0 : i32
    %c0_i32_1 = arith.constant 0 : i32
    return %arg1, %c0_i32, %c0_i32_0 : i32, i32, i32
  }
  func.func @transform_8(%arg0: i32, %arg1: i32, %arg2: memref<2xi32, #tpu.memory_space<smem>>) -> (i32, i32, i32) {
    %c0_i32 = arith.constant 0 : i32
    %c0_i32_0 = arith.constant 0 : i32
    %c0_i32_1 = arith.constant 0 : i32
    return %arg1, %c0_i32, %c0_i32_0 : i32, i32, i32
  }
  func.func @transform_9(%arg0: i32, %arg1: i32, %arg2: memref<2xi32, #tpu.memory_space<smem>>) -> (i32, i32, i32) {
    %c0_i32 = arith.constant 0 : i32
    %c0_i32_0 = arith.constant 0 : i32
    %c0_i32_1 = arith.constant 0 : i32
    return %arg1, %c0_i32, %c0_i32_0 : i32, i32, i32
  }
  func.func @transform_10(%arg0: i32, %arg1: i32, %arg2: memref<2xi32, #tpu.memory_space<smem>>) -> (i32, i32, i32) {
    %c0_i32 = arith.constant 0 : i32
    %c0_i32_0 = arith.constant 0 : i32
    %c0_i32_1 = arith.constant 0 : i32
    return %arg1, %c0_i32, %c0_i32_0 : i32, i32, i32
  }
  func.func @transform_11(%arg0: i32, %arg1: i32, %arg2: memref<2xi32, #tpu.memory_space<smem>>) -> (i32, i32, i32) {
    %c0_i32 = arith.constant 0 : i32
    %c0_i32_0 = arith.constant 0 : i32
    %c0_i32_1 = arith.constant 0 : i32
    return %arg1, %c0_i32, %c0_i32_0 : i32, i32, i32
  }
  func.func @transform_12(%arg0: i32, %arg1: i32, %arg2: memref<2xi32, #tpu.memory_space<smem>>) -> (i32, i32, i32) {
    %c0_i32 = arith.constant 0 : i32
    %c0_i32_0 = arith.constant 0 : i32
    %c0_i32_1 = arith.constant 0 : i32
    return %arg1, %c0_i32, %c0_i32_0 : i32, i32, i32
  }
  func.func @transform_13(%arg0: i32, %arg1: i32, %arg2: memref<2xi32, #tpu.memory_space<smem>>) -> (i32, i32, i32) {
    %c0_i32 = arith.constant 0 : i32
    %c0_i32_0 = arith.constant 0 : i32
    %c0_i32_1 = arith.constant 0 : i32
    return %arg1, %c0_i32, %c0_i32_0 : i32, i32, i32
  }
  func.func @transform_14(%arg0: i32, %arg1: i32, %arg2: memref<2xi32, #tpu.memory_space<smem>>) -> (i32, i32, i32) {
    %c0_i32 = arith.constant 0 : i32
    %c0_i32_0 = arith.constant 0 : i32
    %c0_i32_1 = arith.constant 0 : i32
    return %arg1, %c0_i32, %c0_i32_0 : i32, i32, i32
  }
  func.func @transform_15(%arg0: i32, %arg1: i32, %arg2: memref<2xi32, #tpu.memory_space<smem>>) -> (i32, i32, i32) {
    %c0_i32 = arith.constant 0 : i32
    %c0_i32_0 = arith.constant 0 : i32
    %c0_i32_1 = arith.constant 0 : i32
    return %arg0, %c0_i32, %c0_i32_0 : i32, i32, i32
  }
}

</mosaic_0001>

<llo_original>
// kernel: tpu_custom_call.1
$region0: #{tpu_custom_call.1}
  #allocation0 [shape = 'u32[]', space=smem, size = 0x4, offset = 0x4, fixed_abs, tag = 'smem constant byte address 0x4 - core index']
  #allocation1 [shape = 'u32[144,128]{1,0:T(1,128)}', space=vmem, size = 0x12000, scoped, tag = 'internal scratch']
  #allocation2 [shape = 'f32[2,8,128]{2,1,0:T(8,128)}', space=vmem, size = 0x2000, scoped, tag = 'scratch operand']
  #allocation3 [shape = 's32[1]{0}', space=sflag, size = 0x4, scoped, tag = 'scoped memory for tpu_custom_call.1']
  #allocation4 [shape = 'u8[512]{0}', space=smem, size = 0x200, scoped, tag = 'prefetched SMEM operand 0']
  %s0 = inlined_call_operand.hbm [shape: s32[2], index: 0, kind: input, shape index: {}]
  %s1 = inlined_call_operand.hbm [shape: f32[2,8,128], index: 1, kind: input, shape index: {}]
  %s2 = inlined_call_operand.vmem [shape: f32[2,1,128], index: 2, kind: input, shape index: {}]
  %s3 = inlined_call_operand.hbm [shape: f32[2,1,128], index: 3, kind: input, shape index: {}]
  %s4 = inlined_call_operand.hbm [shape: bf16[2,128,128], index: 4, kind: input, shape index: {}]
  %s5 = inlined_call_operand.vmem [shape: f32[2,1,128], index: 5, kind: input, shape index: {}]
  %s6 = inlined_call_operand.hbm [shape: bf16[2,128,256], index: 6, kind: input, shape index: {}]
  %s7 = inlined_call_operand.vmem [shape: f32[2,1,256], index: 7, kind: input, shape index: {}]
  %s8 = inlined_call_operand.hbm [shape: bf16[2,128,128], index: 8, kind: input, shape index: {}]
  %s9 = inlined_call_operand.vmem [shape: f32[2,1,128], index: 9, kind: input, shape index: {}]
  %s10 = inlined_call_operand.vmem [shape: f32[2,1,128], index: 10, kind: input, shape index: {}]
  %s11 = inlined_call_operand.vmem [shape: f32[2,1,128], index: 11, kind: input, shape index: {}]
  %s12 = inlined_call_operand.hbm [shape: bf16[2,128,256], index: 12, kind: input, shape index: {}]
  %s13 = inlined_call_operand.vmem [shape: f32[2,1,256], index: 13, kind: input, shape index: {}]
  %s14 = inlined_call_operand.hbm [shape: bf16[2,256,128], index: 14, kind: input, shape index: {}]
  %s15 = inlined_call_operand.vmem [shape: f32[2,1,128], index: 15, kind: input, shape index: {}]
  %s16 = inlined_call_operand.hbm [shape: f32[2,8,128], index: 16, kind: output, shape index: {}]
  %s17 = sld [smem:[#allocation0]]
  $region129: #{tpu_custom_call.1} parent=0
    _
  %s19 = ssub.s32 1, %s17
  %s20 = scalar_select 0, %s19, %s17
  %22 = dma.hbm_to_smem %s0, 16, [#allocation4], [#allocation3]
  %23 = dma.done [#allocation3], 16
  %24 = sfence
  $region1: #{tpu_custom_call.1} parent=0
    #allocation5 [shape = 'u8[8192]{0}', space=vmem, size = 0x2000, scoped, tag = 'input window, operand 1, single buffered']
    #allocation6 [shape = 's32[2]{0}', space=sflag, size = 0x8, scoped, tag = 'scoped memory for tpu_custom_call.1']
    #allocation7 [shape = 's32[2]{0}', space=sflag, size = 0x8, scoped, tag = 'scoped memory for tpu_custom_call.1']
    #allocation8 [shape = 'u8[1024]{0}', space=vmem, size = 0x400, scoped, tag = 'input window, operand 3']
    #allocation9 [shape = 's32[2]{0}', space=sflag, size = 0x8, scoped, tag = 'scoped memory for tpu_custom_call.1']
    #allocation10 [shape = 'u8[65536]{0}', space=vmem, size = 0x10000, scoped, tag = 'input window, operand 4']
    #allocation11 [shape = 'u8[131072]{0}', space=vmem, size = 0x20000, scoped, tag = 'input window, operand 6']
    #allocation12 [shape = 's32[2]{0}', space=sflag, size = 0x8, scoped, tag = 'scoped memory for tpu_custom_call.1']
    #allocation13 [shape = 'u8[65536]{0}', space=vmem, size = 0x10000, scoped, tag = 'input window, operand 8']
    #allocation14 [shape = 'u8[131072]{0}', space=vmem, size = 0x20000, scoped, tag = 'input window, operand 12']
    #allocation15 [shape = 's32[2]{0}', space=sflag, size = 0x8, scoped, tag = 'scoped memory for tpu_custom_call.1']
    #allocation16 [shape = 'u8[131072]{0}', space=vmem, size = 0x20000, scoped, tag = 'input window, operand 14']
    #allocation17 [shape = 'u8[8192]{0}', space=vmem, size = 0x2000, scoped, tag = 'output window, operand 0, single buffered']
    %25 = vsyncpa [#allocation6], 0
    %26 = vsyncpa [#allocation9], 0
    %s27 = scalar_lea.sflag [#allocation9], 1
    %28 = vsyncpa %s27, 0
    %29 = vsyncpa [#allocation12], 0
    %s30 = scalar_lea.sflag [#allocation12], 1
    %31 = vsyncpa %s30, 0
    %32 = vsyncpa [#allocation15], 0
    %s33 = scalar_lea.sflag [#allocation15], 1
    %34 = vsyncpa %s33, 0
    %35 = vsyncpa [#allocation7], 0
    loop: start=0, step=1, limit=4
    $region2: #{tpu_custom_call.1} parent=1 // loop_pre_header
      _
    $region3: #{tpu_custom_call.1} parent=1 // loop_header
      %s37 = sphi 0, %s41
      %p38 = scmp.ge.s32.totalorder %s37, 4
      %s44 = sphi 0, %s56
      %s45 = sphi 0, %s52
      %s46 = sphi 0, %s44
      %s47 = sphi 0, %s45
      %s48 = sphi 0, %s46
      %s49 = sphi 0, %s47
      %s59 = sphi 0, %s61
      %s62 = sphi 0, %s59
      %s63 = sphi 0, %s62
      %s79 = sphi 0, %s63
      %s85 = sphi 0, %s87
      %s88 = sphi 0, %s85
      %s89 = sphi 0, %s88
      %s105 = sphi 0, %s89
      %s111 = sphi 0, %s113
      %s114 = sphi 0, %s111
      %s115 = sphi 0, %s114
      %s131 = sphi 0, %s115
      %s137 = sphi 0, %s139
      %s140 = sphi 0, %s137
      %s141 = sphi 0, %s140
      %s157 = sphi 0, %s141
      %s163 = sphi 0, %s165
      %s166 = sphi 0, %s163
      %s167 = sphi 0, %s166
      %s183 = sphi 0, %s167
      %s189 = sphi 0, %s191
      %s192 = sphi 0, %s189
      %s193 = sphi 0, %s192
      %s209 = sphi 0, %s193
      %s215 = sphi 0, %s217
      %s218 = sphi 0, %s215
      %s219 = sphi 0, %s218
      %s235 = sphi 0, %s219
      %s241 = sphi 0, %s243
      %s244 = sphi 0, %s241
      %s245 = sphi 0, %s244
      %s261 = sphi 0, %s245
      %s267 = sphi 0, %s269
      %s270 = sphi 0, %s267
      %s271 = sphi 0, %s270
      %s287 = sphi 0, %s271
      %s293 = sphi 0, %s295
      %s296 = sphi 0, %s293
      %s297 = sphi 0, %s296
      %s313 = sphi 0, %s297
      %s319 = sphi 0, %s321
      %s322 = sphi 0, %s319
      %s323 = sphi 0, %s322
      %s339 = sphi 0, %s323
      %s345 = sphi 0, %s347
      %s348 = sphi 0, %s345
      %s349 = sphi 0, %s348
      %s365 = sphi 0, %s349
      %s371 = sphi 0, %s373
      %s374 = sphi 0, %s371
      %s375 = sphi 0, %s374
      %s391 = sphi 0, %s375
      %s397 = sphi 0, %s399
      %s400 = sphi 0, %s397
      %s401 = sphi 0, %s400
      %s417 = sphi 0, %s401
      %s423 = sphi 0, %s425
      %s426 = sphi 0, %s423
      %s427 = sphi 0, %s426
      %s443 = sphi 0, %s427
      %s449 = sphi 0, %s451
      %s452 = sphi 0, %s449
      %s453 = sphi 0, %s452
      %s469 = sphi 0, %s453
    $region4: #{tpu_custom_call.1} parent=1 // loop_header_branch
      %40 = sbr.rel (%p38) target = $region8
    $region5: #{tpu_custom_call.1} parent=1 // loop_body
      %s42 = ssub.s32 %s37, 1
      %s43 = ssub.s32 %s37, 2
      %s50 = sadd.s32 1, %s45
      %p51 = scmp.ge.s32.totalorder %s50, 2
      %s52 = scalar_select %p51, 0, %s50
      %s53 = sadd.s32 1, %s44
      %s54 = scalar_select %p51, %s53, %s44
      %p55 = scmp.ge.s32.totalorder %s54, 1
      %s56 = scalar_select %p55, 0, %s54
      %s57 = ssub.s32 %s44, %s56
      %p58 = scmp.eq.s32.totalorder %s57, 0
      %s60 = sadd.s32 %s59, 1
      %s61 = scalar_select %p58, %s59, %s60
      %p64 = pneg %p58
      %p65 = scmp.eq.s32.totalorder %s37, 1
      %p66 = por %p64, %p65
      %p67 = scmp.ne.s32.totalorder %s59, %s62
      %p68 = scmp.eq.s32.totalorder %s37, 0
      %p69 = por %p67, %p68
      %p70 = scmp.ne.s32.totalorder %s59, %s62
      %p71 = scmp.eq.s32.totalorder %s42, 1
      %p72 = por %p70, %p71
      %p73 = scmp.ne.s32.totalorder %s62, %s63
      %p74 = scmp.eq.s32.totalorder %s42, 0
      %p75 = por %p73, %p74
      %p76 = scmp.ne.s32.totalorder %s62, %s63
      %p77 = scmp.eq.s32.totalorder %s43, 1
      %p78 = por %p76, %p77
      %p80 = scmp.ne.s32.totalorder %s63, %s79
      %p81 = scmp.eq.s32.totalorder %s43, 0
      %p82 = por %p80, %p81
      %s83 = ssub.s32 %s45, %s52
      %p84 = scmp.eq.s32.totalorder %s83, 0
      %s86 = sadd.s32 %s85, 1
      %s87 = scalar_select %p84, %s85, %s86
      %p90 = pneg %p84
      %p91 = scmp.eq.s32.totalorder %s37, 1
      %p92 = por %p90, %p91
      %p93 = scmp.ne.s32.totalorder %s85, %s88
      %p94 = scmp.eq.s32.totalorder %s37, 0
      %p95 = por %p93, %p94
      %p96 = scmp.ne.s32.totalorder %s85, %s88
      %p97 = scmp.eq.s32.totalorder %s42, 1
      %p98 = por %p96, %p97
      %p99 = scmp.ne.s32.totalorder %s88, %s89
      %p100 = scmp.eq.s32.totalorder %s42, 0
      %p101 = por %p99, %p100
      %p102 = scmp.ne.s32.totalorder %s88, %s89
      %p103 = scmp.eq.s32.totalorder %s43, 1
      %p104 = por %p102, %p103
      %p106 = scmp.ne.s32.totalorder %s89, %s105
      %p107 = scmp.eq.s32.totalorder %s43, 0
      %p108 = por %p106, %p107
      %s109 = ssub.s32 %s45, %s52
      %p110 = scmp.eq.s32.totalorder %s109, 0
      %s112 = sadd.s32 %s111, 1
      %s113 = scalar_select %p110, %s111, %s112
      %p116 = pneg %p110
      %p117 = scmp.eq.s32.totalorder %s37, 1
      %p118 = por %p116, %p117
      %p119 = scmp.ne.s32.totalorder %s111, %s114
      %p120 = scmp.eq.s32.totalorder %s37, 0
      %p121 = por %p119, %p120
      %p122 = scmp.ne.s32.totalorder %s111, %s114
      %p123 = scmp.eq.s32.totalorder %s42, 1
      %p124 = por %p122, %p123
      %p125 = scmp.ne.s32.totalorder %s114, %s115
      %p126 = scmp.eq.s32.totalorder %s42, 0
      %p127 = por %p125, %p126
      %p128 = scmp.ne.s32.totalorder %s114, %s115
      %p129 = scmp.eq.s32.totalorder %s43, 1
      %p130 = por %p128, %p129
      %p132 = scmp.ne.s32.totalorder %s115, %s131
      %p133 = scmp.eq.s32.totalorder %s43, 0
      %p134 = por %p132, %p133
      %s135 = ssub.s32 %s45, %s52
      %p136 = scmp.eq.s32.totalorder %s135, 0
      %s138 = sadd.s32 %s137, 1
      %s139 = scalar_select %p136, %s137, %s138
      %p142 = pneg %p136
      %p143 = scmp.eq.s32.totalorder %s37, 1
      %p144 = por %p142, %p143
      %p145 = scmp.ne.s32.totalorder %s137, %s140
      %p146 = scmp.eq.s32.totalorder %s37, 0
      %p147 = por %p145, %p146
      %p148 = scmp.ne.s32.totalorder %s137, %s140
      %p149 = scmp.eq.s32.totalorder %s42, 1
      %p150 = por %p148, %p149
      %p151 = scmp.ne.s32.totalorder %s140, %s141
      %p152 = scmp.eq.s32.totalorder %s42, 0
      %p153 = por %p151, %p152
      %p154 = scmp.ne.s32.totalorder %s140, %s141
      %p155 = scmp.eq.s32.totalorder %s43, 1
      %p156 = por %p154, %p155
      %p158 = scmp.ne.s32.totalorder %s141, %s157
      %p159 = scmp.eq.s32.totalorder %s43, 0
      %p160 = por %p158, %p159
      %s161 = ssub.s32 %s45, %s52
      %p162 = scmp.eq.s32.totalorder %s161, 0
      %s164 = sadd.s32 %s163, 1
      %s165 = scalar_select %p162, %s163, %s164
      %p168 = pneg %p162
      %p169 = scmp.eq.s32.totalorder %s37, 1
      %p170 = por %p168, %p169
      %p171 = scmp.ne.s32.totalorder %s163, %s166
      %p172 = scmp.eq.s32.totalorder %s37, 0
      %p173 = por %p171, %p172
      %p174 = scmp.ne.s32.totalorder %s163, %s166
      %p175 = scmp.eq.s32.totalorder %s42, 1
      %p176 = por %p174, %p175
      %p177 = scmp.ne.s32.totalorder %s166, %s167
      %p178 = scmp.eq.s32.totalorder %s42, 0
      %p179 = por %p177, %p178
      %p180 = scmp.ne.s32.totalorder %s166, %s167
      %p181 = scmp.eq.s32.totalorder %s43, 1
      %p182 = por %p180, %p181
      %p184 = scmp.ne.s32.totalorder %s167, %s183
      %p185 = scmp.eq.s32.totalorder %s43, 0
      %p186 = por %p184, %p185
      %s187 = ssub.s32 %s45, %s52
      %p188 = scmp.eq.s32.totalorder %s187, 0
      %s190 = sadd.s32 %s189, 1
      %s191 = scalar_select %p188, %s189, %s190
      %p194 = pneg %p188
      %p195 = scmp.eq.s32.totalorder %s37, 1
      %p196 = por %p194, %p195
      %p197 = scmp.ne.s32.totalorder %s189, %s192
      %p198 = scmp.eq.s32.totalorder %s37, 0
      %p199 = por %p197, %p198
      %p200 = scmp.ne.s32.totalorder %s189, %s192
      %p201 = scmp.eq.s32.totalorder %s42, 1
      %p202 = por %p200, %p201
      %p203 = scmp.ne.s32.totalorder %s192, %s193
      %p204 = scmp.eq.s32.totalorder %s42, 0
      %p205 = por %p203, %p204
      %p206 = scmp.ne.s32.totalorder %s192, %s193
      %p207 = scmp.eq.s32.totalorder %s43, 1
      %p208 = por %p206, %p207
      %p210 = scmp.ne.s32.totalorder %s193, %s209
      %p211 = scmp.eq.s32.totalorder %s43, 0
      %p212 = por %p210, %p211
      %s213 = ssub.s32 %s45, %s52
      %p214 = scmp.eq.s32.totalorder %s213, 0
      %s216 = sadd.s32 %s215, 1
      %s217 = scalar_select %p214, %s215, %s216
      %p220 = pneg %p214
      %p221 = scmp.eq.s32.totalorder %s37, 1
      %p222 = por %p220, %p221
      %p223 = scmp.ne.s32.totalorder %s215, %s218
      %p224 = scmp.eq.s32.totalorder %s37, 0
      %p225 = por %p223, %p224
      %p226 = scmp.ne.s32.totalorder %s215, %s218
      %p227 = scmp.eq.s32.totalorder %s42, 1
      %p228 = por %p226, %p227
      %p229 = scmp.ne.s32.totalorder %s218, %s219
      %p230 = scmp.eq.s32.totalorder %s42, 0
      %p231 = por %p229, %p230
      %p232 = scmp.ne.s32.totalorder %s218, %s219
      %p233 = scmp.eq.s32.totalorder %s43, 1
      %p234 = por %p232, %p233
      %p236 = scmp.ne.s32.totalorder %s219, %s235
      %p237 = scmp.eq.s32.totalorder %s43, 0
      %p238 = por %p236, %p237
      %s239 = ssub.s32 %s45, %s52
      %p240 = scmp.eq.s32.totalorder %s239, 0
      %s242 = sadd.s32 %s241, 1
      %s243 = scalar_select %p240, %s241, %s242
      %p246 = pneg %p240
      %p247 = scmp.eq.s32.totalorder %s37, 1
      %p248 = por %p246, %p247
      %p249 = scmp.ne.s32.totalorder %s241, %s244
      %p250 = scmp.eq.s32.totalorder %s37, 0
      %p251 = por %p249, %p250
      %p252 = scmp.ne.s32.totalorder %s241, %s244
      %p253 = scmp.eq.s32.totalorder %s42, 1
      %p254 = por %p252, %p253
      %p255 = scmp.ne.s32.totalorder %s244, %s245
      %p256 = scmp.eq.s32.totalorder %s42, 0
      %p257 = por %p255, %p256
      %p258 = scmp.ne.s32.totalorder %s244, %s245
      %p259 = scmp.eq.s32.totalorder %s43, 1
      %p260 = por %p258, %p259
      %p262 = scmp.ne.s32.totalorder %s245, %s261
      %p263 = scmp.eq.s32.totalorder %s43, 0
      %p264 = por %p262, %p263
      %s265 = ssub.s32 %s45, %s52
      %p266 = scmp.eq.s32.totalorder %s265, 0
      %s268 = sadd.s32 %s267, 1
      %s269 = scalar_select %p266, %s267, %s268
      %p272 = pneg %p266
      %p273 = scmp.eq.s32.totalorder %s37, 1
      %p274 = por %p272, %p273
      %p275 = scmp.ne.s32.totalorder %s267, %s270
      %p276 = scmp.eq.s32.totalorder %s37, 0
      %p277 = por %p275, %p276
      %p278 = scmp.ne.s32.totalorder %s267, %s270
      %p279 = scmp.eq.s32.totalorder %s42, 1
      %p280 = por %p278, %p279
      %p281 = scmp.ne.s32.totalorder %s270, %s271
      %p282 = scmp.eq.s32.totalorder %s42, 0
      %p283 = por %p281, %p282
      %p284 = scmp.ne.s32.totalorder %s270, %s271
      %p285 = scmp.eq.s32.totalorder %s43, 1
      %p286 = por %p284, %p285
      %p288 = scmp.ne.s32.totalorder %s271, %s287
      %p289 = scmp.eq.s32.totalorder %s43, 0
      %p290 = por %p288, %p289
      %s291 = ssub.s32 %s45, %s52
      %p292 = scmp.eq.s32.totalorder %s291, 0
      %s294 = sadd.s32 %s293, 1
      %s295 = scalar_select %p292, %s293, %s294
      %p298 = pneg %p292
      %p299 = scmp.eq.s32.totalorder %s37, 1
      %p300 = por %p298, %p299
      %p301 = scmp.ne.s32.totalorder %s293, %s296
      %p302 = scmp.eq.s32.totalorder %s37, 0
      %p303 = por %p301, %p302
      %p304 = scmp.ne.s32.totalorder %s293, %s296
      %p305 = scmp.eq.s32.totalorder %s42, 1
      %p306 = por %p304, %p305
      %p307 = scmp.ne.s32.totalorder %s296, %s297
      %p308 = scmp.eq.s32.totalorder %s42, 0
      %p309 = por %p307, %p308
      %p310 = scmp.ne.s32.totalorder %s296, %s297
      %p311 = scmp.eq.s32.totalorder %s43, 1
      %p312 = por %p310, %p311
      %p314 = scmp.ne.s32.totalorder %s297, %s313
      %p315 = scmp.eq.s32.totalorder %s43, 0
      %p316 = por %p314, %p315
      %s317 = ssub.s32 %s45, %s52
      %p318 = scmp.eq.s32.totalorder %s317, 0
      %s320 = sadd.s32 %s319, 1
      %s321 = scalar_select %p318, %s319, %s320
      %p324 = pneg %p318
      %p325 = scmp.eq.s32.totalorder %s37, 1
      %p326 = por %p324, %p325
      %p327 = scmp.ne.s32.totalorder %s319, %s322
      %p328 = scmp.eq.s32.totalorder %s37, 0
      %p329 = por %p327, %p328
      %p330 = scmp.ne.s32.totalorder %s319, %s322
      %p331 = scmp.eq.s32.totalorder %s42, 1
      %p332 = por %p330, %p331
      %p333 = scmp.ne.s32.totalorder %s322, %s323
      %p334 = scmp.eq.s32.totalorder %s42, 0
      %p335 = por %p333, %p334
      %p336 = scmp.ne.s32.totalorder %s322, %s323
      %p337 = scmp.eq.s32.totalorder %s43, 1
      %p338 = por %p336, %p337
      %p340 = scmp.ne.s32.totalorder %s323, %s339
      %p341 = scmp.eq.s32.totalorder %s43, 0
      %p342 = por %p340, %p341
      %s343 = ssub.s32 %s45, %s52
      %p344 = scmp.eq.s32.totalorder %s343, 0
      %s346 = sadd.s32 %s345, 1
      %s347 = scalar_select %p344, %s345, %s346
      %p350 = pneg %p344
      %p351 = scmp.eq.s32.totalorder %s37, 1
      %p352 = por %p350, %p351
      %p353 = scmp.ne.s32.totalorder %s345, %s348
      %p354 = scmp.eq.s32.totalorder %s37, 0
      %p355 = por %p353, %p354
      %p356 = scmp.ne.s32.totalorder %s345, %s348
      %p357 = scmp.eq.s32.totalorder %s42, 1
      %p358 = por %p356, %p357
      %p359 = scmp.ne.s32.totalorder %s348, %s349
      %p360 = scmp.eq.s32.totalorder %s42, 0
      %p361 = por %p359, %p360
      %p362 = scmp.ne.s32.totalorder %s348, %s349
      %p363 = scmp.eq.s32.totalorder %s43, 1
      %p364 = por %p362, %p363
      %p366 = scmp.ne.s32.totalorder %s349, %s365
      %p367 = scmp.eq.s32.totalorder %s43, 0
      %p368 = por %p366, %p367
      %s369 = ssub.s32 %s45, %s52
      %p370 = scmp.eq.s32.totalorder %s369, 0
      %s372 = sadd.s32 %s371, 1
      %s373 = scalar_select %p370, %s371, %s372
      %p376 = pneg %p370
      %p377 = scmp.eq.s32.totalorder %s37, 1
      %p378 = por %p376, %p377
      %p379 = scmp.ne.s32.totalorder %s371, %s374
      %p380 = scmp.eq.s32.totalorder %s37, 0
      %p381 = por %p379, %p380
      %p382 = scmp.ne.s32.totalorder %s371, %s374
      %p383 = scmp.eq.s32.totalorder %s42, 1
      %p384 = por %p382, %p383
      %p385 = scmp.ne.s32.totalorder %s374, %s375
      %p386 = scmp.eq.s32.totalorder %s42, 0
      %p387 = por %p385, %p386
      %p388 = scmp.ne.s32.totalorder %s374, %s375
      %p389 = scmp.eq.s32.totalorder %s43, 1
      %p390 = por %p388, %p389
      %p392 = scmp.ne.s32.totalorder %s375, %s391
      %p393 = scmp.eq.s32.totalorder %s43, 0
      %p394 = por %p392, %p393
      %s395 = ssub.s32 %s45, %s52
      %p396 = scmp.eq.s32.totalorder %s395, 0
      %s398 = sadd.s32 %s397, 1
      %s399 = scalar_select %p396, %s397, %s398
      %p402 = pneg %p396
      %p403 = scmp.eq.s32.totalorder %s37, 1
      %p404 = por %p402, %p403
      %p405 = scmp.ne.s32.totalorder %s397, %s400
      %p406 = scmp.eq.s32.totalorder %s37, 0
      %p407 = por %p405, %p406
      %p408 = scmp.ne.s32.totalorder %s397, %s400
      %p409 = scmp.eq.s32.totalorder %s42, 1
      %p410 = por %p408, %p409
      %p411 = scmp.ne.s32.totalorder %s400, %s401
      %p412 = scmp.eq.s32.totalorder %s42, 0
      %p413 = por %p411, %p412
      %p414 = scmp.ne.s32.totalorder %s400, %s401
      %p415 = scmp.eq.s32.totalorder %s43, 1
      %p416 = por %p414, %p415
      %p418 = scmp.ne.s32.totalorder %s401, %s417
      %p419 = scmp.eq.s32.totalorder %s43, 0
      %p420 = por %p418, %p419
      %s421 = ssub.s32 %s45, %s52
      %p422 = scmp.eq.s32.totalorder %s421, 0
      %s424 = sadd.s32 %s423, 1
      %s425 = scalar_select %p422, %s423, %s424
      %p428 = pneg %p422
      %p429 = scmp.eq.s32.totalorder %s37, 1
      %p430 = por %p428, %p429
      %p431 = scmp.ne.s32.totalorder %s423, %s426
      %p432 = scmp.eq.s32.totalorder %s37, 0
      %p433 = por %p431, %p432
      %p434 = scmp.ne.s32.totalorder %s423, %s426
      %p435 = scmp.eq.s32.totalorder %s42, 1
      %p436 = por %p434, %p435
      %p437 = scmp.ne.s32.totalorder %s426, %s427
      %p438 = scmp.eq.s32.totalorder %s42, 0
      %p439 = por %p437, %p438
      %p440 = scmp.ne.s32.totalorder %s426, %s427
      %p441 = scmp.eq.s32.totalorder %s43, 1
      %p442 = por %p440, %p441
      %p444 = scmp.ne.s32.totalorder %s427, %s443
      %p445 = scmp.eq.s32.totalorder %s43, 0
      %p446 = por %p444, %p445
      %s447 = ssub.s32 %s44, %s56
      %p448 = scmp.eq.s32.totalorder %s447, 0
      %s450 = sadd.s32 %s449, 1
      %s451 = scalar_select %p448, %s449, %s450
      %p454 = pneg %p448
      %p455 = scmp.eq.s32.totalorder %s37, 1
      %p456 = por %p454, %p455
      %p457 = scmp.ne.s32.totalorder %s449, %s452
      %p458 = scmp.eq.s32.totalorder %s37, 0
      %p459 = por %p457, %p458
      %p460 = scmp.ne.s32.totalorder %s449, %s452
      %p461 = scmp.eq.s32.totalorder %s42, 1
      %p462 = por %p460, %p461
      %p463 = scmp.ne.s32.totalorder %s452, %s453
      %p464 = scmp.eq.s32.totalorder %s42, 0
      %p465 = por %p463, %p464
      %p466 = scmp.ne.s32.totalorder %s452, %s453
      %p467 = scmp.eq.s32.totalorder %s43, 1
      %p468 = por %p466, %p467
      %p470 = scmp.ne.s32.totalorder %s453, %s469
      %p471 = scmp.eq.s32.totalorder %s43, 0
      %p472 = por %p470, %p471
      %p473 = scmp.le.s32.totalorder 1, %s37
      %p474 = scmp.lt.s32.totalorder %s37, 3
      %p475 = pnand %p473, %p474
      %p476 = pneg %p475
      // Predicated region
      $region9: #{tpu_custom_call.1} parent=5 // pred_check
        _
      $region10: #{tpu_custom_call.1} parent=5 // pred_check_branch
        %478 = sbr.rel (%p475) target = $region12
      $region11: #{tpu_custom_call.1} parent=5 // pred_region
        %s479 = ssub.s32 %s37, 1
        // Predicated region
        $region13: #{tpu_custom_call.1} parent=11 // pred_check
          %p480 = pneg %p75
        $region14: #{tpu_custom_call.1} parent=11 // pred_check_branch
          %482 = sbr.rel (%p480) target = $region16
        $region15: #{tpu_custom_call.1} parent=11 // pred_region
          %s483 = smul.u32 2, %s46
          %s485 = ssub.s32 256, 256
          %486 = vsyncadd [#allocation6], %s485
          %s487 = smul.addr %s483, 128
          %s488 = scalar_lea.hbm %s1, %s487
          %s489 = sshll.u32 [#allocation5], 4
          %s490 = int_to_ptr.vmem [resolvable:$true] %s489
          %495 = dma.hbm_to_vmem [thread:$0]  %s488, 256, %s490, [#allocation6], 128, 128, 8
        $region16: #{tpu_custom_call.1} parent=11 // pred_fallthru
          _
      $region12: #{tpu_custom_call.1} parent=5 // pred_fallthru
        _
      %p496 = scmp.lt.s32.totalorder %s37, 2
      // Predicated region
      $region17: #{tpu_custom_call.1} parent=5 // pred_check
        %p497 = pneg %p496
      $region18: #{tpu_custom_call.1} parent=5 // pred_check_branch
        %499 = sbr.rel (%p497) target = $region20
      $region19: #{tpu_custom_call.1} parent=5 // pred_region
        // Predicated region
        $region21: #{tpu_custom_call.1} parent=19 // pred_check
          %p500 = pneg %p95
        $region22: #{tpu_custom_call.1} parent=19 // pred_check_branch
          %502 = sbr.rel (%p500) target = $region24
        $region23: #{tpu_custom_call.1} parent=19 // pred_region
          %p503 = scmp.lt.s32.totalorder %s45, 1
          %s504 = scalar_select %p503, %s45, 1
          %s505 = scalar_lea.vmem %s2, %s504
        $region24: #{tpu_custom_call.1} parent=19 // pred_fallthru
          _
        // Predicated region
        $region25: #{tpu_custom_call.1} parent=19 // pred_check
          %p506 = pneg %p121
        $region26: #{tpu_custom_call.1} parent=19 // pred_check_branch
          %508 = sbr.rel (%p506) target = $region28
        $region27: #{tpu_custom_call.1} parent=19 // pred_region
          %s509 = sand.u32 %s37, 1
          %s510 = scalar_lea.sflag [#allocation9], %s509
          %s511 = sand.u32 %s111, 1
          %s512 = scalar_lea.vmem [#allocation8], %s511
          %s514 = ssub.s32 16, 16
          %515 = vsyncadd %s510, %s514
          %s516 = smul.addr %s45, 16
          %s517 = scalar_lea.hbm %s3, %s516
          %s519 = sshll.u32 %s512, 4
          %s520 = int_to_ptr.vmem [resolvable:$true] %s519
          %522 = dma.hbm_to_vmem [thread:$0]  %s517, 16, %s520, %s510
        $region28: #{tpu_custom_call.1} parent=19 // pred_fallthru
          _
        // Predicated region
        $region29: #{tpu_custom_call.1} parent=19 // pred_check
          %p523 = pneg %p147
        $region30: #{tpu_custom_call.1} parent=19 // pred_check_branch
          %525 = sbr.rel (%p523) target = $region32
        $region31: #{tpu_custom_call.1} parent=19 // pred_region
          %s526 = sand.u32 %s37, 1
          %s527 = scalar_lea.sflag [#allocation9], %s526
          %s528 = sand.u32 %s137, 1
          %s529 = smul.addr %s528, 64
          %s530 = scalar_lea.vmem [#allocation10], %s529
          %s532 = ssub.s32 1024, 1024
          %533 = vsyncadd %s527, %s532
          %s534 = smul.addr %s45, 16
          %s535 = smul.addr %s534, 64
          %s536 = scalar_lea.hbm %s4, %s535
          %s537 = sshll.u32 %s530, 4
          %s538 = int_to_ptr.vmem [resolvable:$true] %s537
          %543 = dma.hbm_to_vmem [thread:$0]  %s536, 1024, %s538, %s527, 64, 64, 4
        $region32: #{tpu_custom_call.1} parent=19 // pred_fallthru
          _
        // Predicated region
        $region33: #{tpu_custom_call.1} parent=19 // pred_check
          %p544 = pneg %p173
        $region34: #{tpu_custom_call.1} parent=19 // pred_check_branch
          %546 = sbr.rel (%p544) target = $region36
        $region35: #{tpu_custom_call.1} parent=19 // pred_region
          %p547 = scmp.lt.s32.totalorder %s45, 1
          %s548 = scalar_select %p547, %s45, 1
          %s549 = scalar_lea.vmem %s5, %s548
        $region36: #{tpu_custom_call.1} parent=19 // pred_fallthru
          _
        // Predicated region
        $region37: #{tpu_custom_call.1} parent=19 // pred_check
          %p550 = pneg %p199
        $region38: #{tpu_custom_call.1} parent=19 // pred_check_branch
          %552 = sbr.rel (%p550) target = $region40
        $region39: #{tpu_custom_call.1} parent=19 // pred_region
          %s553 = sand.u32 %s37, 1
          %s554 = scalar_lea.sflag [#allocation12], %s553
          %s555 = sand.u32 %s189, 1
          %s556 = smul.addr %s555, 128
          %s557 = scalar_lea.vmem [#allocation11], %s556
          %s559 = ssub.s32 2048, 2048
          %560 = vsyncadd %s554, %s559
          %s561 = smul.addr %s45, 32
          %s562 = smul.addr %s561, 64
          %s563 = scalar_lea.hbm %s6, %s562
          %s564 = sshll.u32 %s557, 4
          %s565 = int_to_ptr.vmem [resolvable:$true] %s564
          %570 = dma.hbm_to_vmem [thread:$0]  %s563, 2048, %s565, %s554, 128, 128, 8
        $region40: #{tpu_custom_call.1} parent=19 // pred_fallthru
          _
        // Predicated region
        $region41: #{tpu_custom_call.1} parent=19 // pred_check
          %p571 = pneg %p225
        $region42: #{tpu_custom_call.1} parent=19 // pred_check_branch
          %573 = sbr.rel (%p571) target = $region44
        $region43: #{tpu_custom_call.1} parent=19 // pred_region
          %p574 = scmp.lt.s32.totalorder %s45, 1
          %s575 = scalar_select %p574, %s45, 1
          %s576 = smul.addr %s575, 2
          %s577 = scalar_lea.vmem %s7, %s576
        $region44: #{tpu_custom_call.1} parent=19 // pred_fallthru
          _
        // Predicated region
        $region45: #{tpu_custom_call.1} parent=19 // pred_check
          %p578 = pneg %p251
        $region46: #{tpu_custom_call.1} parent=19 // pred_check_branch
          %580 = sbr.rel (%p578) target = $region48
        $region47: #{tpu_custom_call.1} parent=19 // pred_region
          %s581 = sand.u32 %s37, 1
          %s582 = scalar_lea.sflag [#allocation12], %s581
          %s583 = sand.u32 %s241, 1
          %s584 = smul.addr %s583, 64
          %s585 = scalar_lea.vmem [#allocation13], %s584
          %s587 = ssub.s32 1024, 1024
          %588 = vsyncadd %s582, %s587
          %s589 = smul.addr %s45, 16
          %s590 = smul.addr %s589, 64
          %s591 = scalar_lea.hbm %s8, %s590
          %s592 = sshll.u32 %s585, 4
          %s593 = int_to_ptr.vmem [resolvable:$true] %s592
          %598 = dma.hbm_to_vmem [thread:$0]  %s591, 1024, %s593, %s582, 64, 64, 4
        $region48: #{tpu_custom_call.1} parent=19 // pred_fallthru
          _
        // Predicated region
        $region49: #{tpu_custom_call.1} parent=19 // pred_check
          %p599 = pneg %p277
        $region50: #{tpu_custom_call.1} parent=19 // pred_check_branch
          %601 = sbr.rel (%p599) target = $region52
        $region51: #{tpu_custom_call.1} parent=19 // pred_region
          %p602 = scmp.lt.s32.totalorder %s45, 1
          %s603 = scalar_select %p602, %s45, 1
          %s604 = scalar_lea.vmem %s9, %s603
        $region52: #{tpu_custom_call.1} parent=19 // pred_fallthru
          _
        // Predicated region
        $region53: #{tpu_custom_call.1} parent=19 // pred_check
          %p605 = pneg %p303
        $region54: #{tpu_custom_call.1} parent=19 // pred_check_branch
          %607 = sbr.rel (%p605) target = $region56
        $region55: #{tpu_custom_call.1} parent=19 // pred_region
          %p608 = scmp.lt.s32.totalorder %s45, 1
          %s609 = scalar_select %p608, %s45, 1
          %s610 = scalar_lea.vmem %s10, %s609
        $region56: #{tpu_custom_call.1} parent=19 // pred_fallthru
          _
        // Predicated region
        $region57: #{tpu_custom_call.1} parent=19 // pred_check
          %p611 = pneg %p329
        $region58: #{tpu_custom_call.1} parent=19 // pred_check_branch
          %613 = sbr.rel (%p611) target = $region60
        $region59: #{tpu_custom_call.1} parent=19 // pred_region
          %p614 = scmp.lt.s32.totalorder %s45, 1
          %s615 = scalar_select %p614, %s45, 1
          %s616 = scalar_lea.vmem %s11, %s615
        $region60: #{tpu_custom_call.1} parent=19 // pred_fallthru
          _
        // Predicated region
        $region61: #{tpu_custom_call.1} parent=19 // pred_check
          %p617 = pneg %p355
        $region62: #{tpu_custom_call.1} parent=19 // pred_check_branch
          %619 = sbr.rel (%p617) target = $region64
        $region63: #{tpu_custom_call.1} parent=19 // pred_region
          %s620 = sand.u32 %s37, 1
          %s621 = scalar_lea.sflag [#allocation15], %s620
          %s622 = sand.u32 %s345, 1
          %s623 = smul.addr %s622, 128
          %s624 = scalar_lea.vmem [#allocation14], %s623
          %s626 = ssub.s32 2048, 2048
          %627 = vsyncadd %s621, %s626
          %s628 = smul.addr %s45, 32
          %s629 = smul.addr %s628, 64
          %s630 = scalar_lea.hbm %s12, %s629
          %s631 = sshll.u32 %s624, 4
          %s632 = int_to_ptr.vmem [resolvable:$true] %s631
          %637 = dma.hbm_to_vmem [thread:$0]  %s630, 2048, %s632, %s621, 128, 128, 8
        $region64: #{tpu_custom_call.1} parent=19 // pred_fallthru
          _
        // Predicated region
        $region65: #{tpu_custom_call.1} parent=19 // pred_check
          %p638 = pneg %p381
        $region66: #{tpu_custom_call.1} parent=19 // pred_check_branch
          %640 = sbr.rel (%p638) target = $region68
        $region67: #{tpu_custom_call.1} parent=19 // pred_region
          %p641 = scmp.lt.s32.totalorder %s45, 1
          %s642 = scalar_select %p641, %s45, 1
          %s643 = smul.addr %s642, 2
          %s644 = scalar_lea.vmem %s13, %s643
        $region68: #{tpu_custom_call.1} parent=19 // pred_fallthru
          _
        // Predicated region
        $region69: #{tpu_custom_call.1} parent=19 // pred_check
          %p645 = pneg %p407
        $region70: #{tpu_custom_call.1} parent=19 // pred_check_branch
          %647 = sbr.rel (%p645) target = $region72
        $region71: #{tpu_custom_call.1} parent=19 // pred_region
          %s648 = sand.u32 %s37, 1
          %s649 = scalar_lea.sflag [#allocation15], %s648
          %s650 = sand.u32 %s397, 1
          %s651 = smul.addr %s650, 128
          %s652 = scalar_lea.vmem [#allocation16], %s651
          %s654 = ssub.s32 2048, 2048
          %655 = vsyncadd %s649, %s654
          %s656 = smul.addr %s45, 32
          %s657 = smul.addr %s656, 64
          %s658 = scalar_lea.hbm %s14, %s657
          %s659 = sshll.u32 %s652, 4
          %s660 = int_to_ptr.vmem [resolvable:$true] %s659
          %665 = dma.hbm_to_vmem [thread:$0]  %s658, 2048, %s660, %s649, 64, 64, 4
        $region72: #{tpu_custom_call.1} parent=19 // pred_fallthru
          _
        // Predicated region
        $region73: #{tpu_custom_call.1} parent=19 // pred_check
          %p666 = pneg %p433
        $region74: #{tpu_custom_call.1} parent=19 // pred_check_branch
          %668 = sbr.rel (%p666) target = $region76
        $region75: #{tpu_custom_call.1} parent=19 // pred_region
          %p669 = scmp.lt.s32.totalorder %s45, 1
          %s670 = scalar_select %p669, %s45, 1
          %s671 = scalar_lea.vmem %s15, %s670
        $region76: #{tpu_custom_call.1} parent=19 // pred_fallthru
          _
      $region20: #{tpu_custom_call.1} parent=5 // pred_fallthru
        _
      %p672 = scmp.le.s32.totalorder 1, %s37
      %p673 = scmp.lt.s32.totalorder %s37, 3
      %p674 = pnand %p672, %p673
      %p675 = pneg %p674
      // Predicated region
      $region77: #{tpu_custom_call.1} parent=5 // pred_check
        _
      $region78: #{tpu_custom_call.1} parent=5 // pred_check_branch
        %677 = sbr.rel (%p674) target = $region80
      $region79: #{tpu_custom_call.1} parent=5 // pred_region
        %s678 = ssub.s32 %s37, 1
        // Predicated region
        $region81: #{tpu_custom_call.1} parent=79 // pred_check
          %p679 = pneg %p75
        $region82: #{tpu_custom_call.1} parent=79 // pred_check_branch
          %681 = sbr.rel (%p679) target = $region84
        $region83: #{tpu_custom_call.1} parent=79 // pred_region
          %682 = dma.done [#allocation6], 256
        $region84: #{tpu_custom_call.1} parent=79 // pred_fallthru
          _
        %s683 = sand.u32 %s42, 1
        %s684 = scalar_lea.sflag [#allocation9], %s683
        %s685 = sand.u32 %s114, 1
        %s686 = scalar_lea.vmem [#allocation8], %s685
        // Predicated region
        $region85: #{tpu_custom_call.1} parent=79 // pred_check
          %p687 = pneg %p127
        $region86: #{tpu_custom_call.1} parent=79 // pred_check_branch
          %689 = sbr.rel (%p687) target = $region88
        $region87: #{tpu_custom_call.1} parent=79 // pred_region
          %690 = dma.done %s684, 16
        $region88: #{tpu_custom_call.1} parent=79 // pred_fallthru
          _
        %s691 = sand.u32 %s42, 1
        %s692 = scalar_lea.sflag [#allocation9], %s691
        %s693 = sand.u32 %s140, 1
        %s694 = smul.addr %s693, 64
        %s695 = scalar_lea.vmem [#allocation10], %s694
        // Predicated region
        $region89: #{tpu_custom_call.1} parent=79 // pred_check
          %p696 = pneg %p153
        $region90: #{tpu_custom_call.1} parent=79 // pred_check_branch
          %698 = sbr.rel (%p696) target = $region92
        $region91: #{tpu_custom_call.1} parent=79 // pred_region
          %699 = dma.done %s692, 1024
        $region92: #{tpu_custom_call.1} parent=79 // pred_fallthru
          _
        %s700 = sand.u32 %s42, 1
        %s701 = scalar_lea.sflag [#allocation12], %s700
        %s702 = sand.u32 %s192, 1
        %s703 = smul.addr %s702, 128
        %s704 = scalar_lea.vmem [#allocation11], %s703
        // Predicated region
        $region93: #{tpu_custom_call.1} parent=79 // pred_check
          %p705 = pneg %p205
        $region94: #{tpu_custom_call.1} parent=79 // pred_check_branch
          %707 = sbr.rel (%p705) target = $region96
        $region95: #{tpu_custom_call.1} parent=79 // pred_region
          %708 = dma.done %s701, 2048
        $region96: #{tpu_custom_call.1} parent=79 // pred_fallthru
          _
        %s709 = sand.u32 %s42, 1
        %s710 = scalar_lea.sflag [#allocation12], %s709
        %s711 = sand.u32 %s244, 1
        %s712 = smul.addr %s711, 64
        %s713 = scalar_lea.vmem [#allocation13], %s712
        // Predicated region
        $region97: #{tpu_custom_call.1} parent=79 // pred_check
          %p714 = pneg %p257
        $region98: #{tpu_custom_call.1} parent=79 // pred_check_branch
          %716 = sbr.rel (%p714) target = $region100
        $region99: #{tpu_custom_call.1} parent=79 // pred_region
          %717 = dma.done %s710, 1024
        $region100: #{tpu_custom_call.1} parent=79 // pred_fallthru
          _
        %s718 = sand.u32 %s42, 1
        %s719 = scalar_lea.sflag [#allocation15], %s718
        %s720 = sand.u32 %s348, 1
        %s721 = smul.addr %s720, 128
        %s722 = scalar_lea.vmem [#allocation14], %s721
        // Predicated region
        $region101: #{tpu_custom_call.1} parent=79 // pred_check
          %p723 = pneg %p361
        $region102: #{tpu_custom_call.1} parent=79 // pred_check_branch
          %725 = sbr.rel (%p723) target = $region104
        $region103: #{tpu_custom_call.1} parent=79 // pred_region
          %726 = dma.done %s719, 2048
        $region104: #{tpu_custom_call.1} parent=79 // pred_fallthru
          _
        %s727 = sand.u32 %s42, 1
        %s728 = scalar_lea.sflag [#allocation15], %s727
        %s729 = sand.u32 %s400, 1
        %s730 = smul.addr %s729, 128
        %s731 = scalar_lea.vmem [#allocation16], %s730
        // Predicated region
        $region105: #{tpu_custom_call.1} parent=79 // pred_check
          %p732 = pneg %p413
        $region106: #{tpu_custom_call.1} parent=79 // pred_check_branch
          %734 = sbr.rel (%p732) target = $region108
        $region107: #{tpu_custom_call.1} parent=79 // pred_region
          %735 = dma.done %s728, 2048
        $region108: #{tpu_custom_call.1} parent=79 // pred_fallthru
          _
        %p736 = pneg %p75
        %p737 = pneg %p72
        %p738 = scmp.lt.s32.totalorder %s47, 1
        %s739 = scalar_select %p738, %s47, 1
        %s740 = scalar_lea.vmem %s2, %s739
        %p741 = pneg %p101
        %p742 = pneg %p98
        %s743 = sand.u32 %s42, 1
        %s744 = scalar_lea.sflag [#allocation9], %s743
        %s745 = sand.u32 %s114, 1
        %s746 = scalar_lea.vmem [#allocation8], %s745
        %p747 = pneg %p127
        %p748 = pneg %p124
        %s749 = sand.u32 %s42, 1
        %s750 = scalar_lea.sflag [#allocation9], %s749
        %s751 = sand.u32 %s140, 1
        %s752 = smul.addr %s751, 64
        %s753 = scalar_lea.vmem [#allocation10], %s752
        %p754 = pneg %p153
        %p755 = pneg %p150
        %p756 = scmp.lt.s32.totalorder %s47, 1
        %s757 = scalar_select %p756, %s47, 1
        %s758 = scalar_lea.vmem %s5, %s757
        %p759 = pneg %p179
        %p760 = pneg %p176
        %s761 = sand.u32 %s42, 1
        %s762 = scalar_lea.sflag [#allocation12], %s761
        %s763 = sand.u32 %s192, 1
        %s764 = smul.addr %s763, 128
        %s765 = scalar_lea.vmem [#allocation11], %s764
        %p766 = pneg %p205
        %p767 = pneg %p202
        %p768 = scmp.lt.s32.totalorder %s47, 1
        %s769 = scalar_select %p768, %s47, 1
        %s770 = smul.addr %s769, 2
        %s771 = scalar_lea.vmem %s7, %s770
        %p772 = pneg %p231
        %p773 = pneg %p228
        %s774 = sand.u32 %s42, 1
        %s775 = scalar_lea.sflag [#allocation12], %s774
        %s776 = sand.u32 %s244, 1
        %s777 = smul.addr %s776, 64
        %s778 = scalar_lea.vmem [#allocation13], %s777
        %p779 = pneg %p257
        %p780 = pneg %p254
        %p781 = scmp.lt.s32.totalorder %s47, 1
        %s782 = scalar_select %p781, %s47, 1
        %s783 = scalar_lea.vmem %s9, %s782
        %p784 = pneg %p283
        %p785 = pneg %p280
        %p786 = scmp.lt.s32.totalorder %s47, 1
        %s787 = scalar_select %p786, %s47, 1
        %s788 = scalar_lea.vmem %s10, %s787
        %p789 = pneg %p309
        %p790 = pneg %p306
        %p791 = scmp.lt.s32.totalorder %s47, 1
        %s792 = scalar_select %p791, %s47, 1
        %s793 = scalar_lea.vmem %s11, %s792
        %p794 = pneg %p335
        %p795 = pneg %p332
        %s796 = sand.u32 %s42, 1
        %s797 = scalar_lea.sflag [#allocation15], %s796
        %s798 = sand.u32 %s348, 1
        %s799 = smul.addr %s798, 128
        %s800 = scalar_lea.vmem [#allocation14], %s799
        %p801 = pneg %p361
        %p802 = pneg %p358
        %p803 = scmp.lt.s32.totalorder %s47, 1
        %s804 = scalar_select %p803, %s47, 1
        %s805 = smul.addr %s804, 2
        %s806 = scalar_lea.vmem %s13, %s805
        %p807 = pneg %p387
        %p808 = pneg %p384
        %s809 = sand.u32 %s42, 1
        %s810 = scalar_lea.sflag [#allocation15], %s809
        %s811 = sand.u32 %s400, 1
        %s812 = smul.addr %s811, 128
        %s813 = scalar_lea.vmem [#allocation16], %s812
        %p814 = pneg %p413
        %p815 = pneg %p410
        %p816 = scmp.lt.s32.totalorder %s47, 1
        %s817 = scalar_select %p816, %s47, 1
        %s818 = scalar_lea.vmem %s15, %s817
        %p819 = pneg %p439
        %p820 = pneg %p436
        %p821 = pneg %p465
        %p822 = pneg %p462
        %s823 = smul.u32 2, %s46
        %p824 = scmp.lt.s32.totalorder %s47, 1
        %s825 = scalar_select %p824, %s47, 1
        %s826 = scalar_lea.vmem %s2, %s825
        %p827 = scmp.lt.s32.totalorder %s47, 1
        %s828 = scalar_select %p827, %s47, 1
        %s829 = scalar_lea.vmem %s5, %s828
        %p830 = scmp.lt.s32.totalorder %s47, 1
        %s831 = scalar_select %p830, %s47, 1
        %s832 = smul.addr %s831, 2
        %s833 = scalar_lea.vmem %s7, %s832
        %p834 = scmp.lt.s32.totalorder %s47, 1
        %s835 = scalar_select %p834, %s47, 1
        %s836 = scalar_lea.vmem %s9, %s835
        %p837 = scmp.lt.s32.totalorder %s47, 1
        %s838 = scalar_select %p837, %s47, 1
        %s839 = scalar_lea.vmem %s10, %s838
        %p840 = scmp.lt.s32.totalorder %s47, 1
        %s841 = scalar_select %p840, %s47, 1
        %s842 = scalar_lea.vmem %s11, %s841
        %p843 = scmp.lt.s32.totalorder %s47, 1
        %s844 = scalar_select %p843, %s47, 1
        %s845 = smul.addr %s844, 2
        %s846 = scalar_lea.vmem %s13, %s845
        %p847 = scmp.lt.s32.totalorder %s47, 1
        %s848 = scalar_select %p847, %s47, 1
        %s849 = scalar_lea.vmem %s15, %s848
        %s850 = smul.u32 2, %s46
        %p852 = scmp.eq.s32.totalorder %s47, 0
        // Predicated region
        $region109: #{tpu_custom_call.1} parent=79 // pred_check
          %p853 = pneg %p852
        $region110: #{tpu_custom_call.1} parent=79 // pred_check_branch
          %855 = sbr.rel (%p853) target = $region112
        $region111: #{tpu_custom_call.1} parent=79 // pred_region
          %v856 = vld [vmem:[#allocation5] sm:$0xff]
          %v857 = vld [vmem:[#allocation5 + $0x8] sm:$0xff]
          %858 = vst [vmem:[#allocation2] sm:$0xff] %v856
          %859 = vst [vmem:[#allocation2 + $0x8] sm:$0xff] %v857
        $region112: #{tpu_custom_call.1} parent=79 // pred_fallthru
          _
        %v860 = vld [vmem:[#allocation2] sm:$0xff]
        %v861 = vld [vmem:[#allocation2 + $0x8] sm:$0xff]
        %v862 = vld [vmem:[%s826] sm:$0x1]
        %v863 = vld [vmem:[%s686] sm:$0x1]
        %864 = vadd.xlane.f32.xlu0 %v860
        %v865 = vpop.xlane.xlu0 %864
        %866 = vadd.xlane.f32.xlu0 %v861
        %v867 = vpop.xlane.xlu0 %866
        %v868 = vrcp.pop 128.0
        %v869 = vmul.f32 %v865, %v868
        %v870 = vmul.f32 %v867, %v868
        %v871 = vsub.f32 %v860, %v869
        %v872 = vsub.f32 %v861, %v870
        %v873 = vmul.f32 %v871, %v871
        %v874 = vmul.f32 %v872, %v872
        %875 = vadd.xlane.f32.xlu0 %v873
        %v876 = vpop.xlane.xlu0 %875
        %877 = vadd.xlane.f32.xlu0 %v874
        %v878 = vpop.xlane.xlu0 %877
        %v879 = vmul.f32 %v876, %v868
        %v880 = vmul.f32 %v878, %v868
        %v881 = vadd.f32 %v879, 1e-05
        %v882 = vadd.f32 %v880, 1e-05
        %v883 = vrsqrt.pop %v881
        %v884 = vrsqrt.pop %v882
        %v885 = vmul.f32 %v871, %v883
        %v886 = vmul.f32 %v872, %v884
        %v888 = vlaneseq
        %v889 = vshrl.u32 %v888, 7
        %v890 = vsub.s32 0, %v889
        %v891 = vrot.slane %v862, %v890
        %v893 = vmul.f32 %v885, %v891
        %v894 = vmul.f32 %v886, %v891
        %v896 = vlaneseq
        %v897 = vshrl.u32 %v896, 7
        %v898 = vsub.s32 0, %v897
        %v899 = vrot.slane %v863, %v898
        %v901 = vadd.f32 %v893, %v899
        %v902 = vadd.f32 %v894, %v899
        %v903 = vpack.c.bf16 %v902, %v901
        %v904 = vld [vmem:[%s695] sm:$0xf]
        %v905 = vld [vmem:[%s695 + $0x4] sm:$0xf]
        %v906 = vld [vmem:[%s695 + $0x8] sm:$0xf]
        %v907 = vld [vmem:[%s695 + $0xc] sm:$0xf]
        %v908 = vld [vmem:[%s695 + $0x10] sm:$0xf]
        %v909 = vld [vmem:[%s695 + $0x14] sm:$0xf]
        %v910 = vld [vmem:[%s695 + $0x18] sm:$0xf]
        %v911 = vld [vmem:[%s695 + $0x1c] sm:$0xf]
        %v912 = vld [vmem:[%s695 + $0x20] sm:$0xf]
        %v913 = vld [vmem:[%s695 + $0x24] sm:$0xf]
        %v914 = vld [vmem:[%s695 + $0x28] sm:$0xf]
        %v915 = vld [vmem:[%s695 + $0x2c] sm:$0xf]
        %v916 = vld [vmem:[%s695 + $0x30] sm:$0xf]
        %v917 = vld [vmem:[%s695 + $0x34] sm:$0xf]
        %v918 = vld [vmem:[%s695 + $0x38] sm:$0xf]
        %v919 = vld [vmem:[%s695 + $0x3c] sm:$0xf]
        %v920 = vld [vmem:[%s829] sm:$0x1]
        %v922 = vlaneseq
        %v923 = vshrl.u32 %v922, 7
        %v924 = vsub.s32 0, %v923
        %v925 = vrot.slane %v920, %v924
        %v943 = vunpack.c.l.b16 %v904
        %v944 = vunpack.c.l.b16 %v905
        %v945 = vunpack.c.l.b16 %v906
        %v946 = vunpack.c.l.b16 %v907
        %v947 = vunpack.c.l.b16 %v908
        %v948 = vunpack.c.l.b16 %v909
        %v949 = vunpack.c.l.b16 %v910
        %v950 = vunpack.c.l.b16 %v911
        %v951 = vunpack.c.l.b16 %v912
        %v952 = vunpack.c.l.b16 %v913
        %v953 = vunpack.c.l.b16 %v914
        %v954 = vunpack.c.l.b16 %v915
        %v955 = vunpack.c.l.b16 %v916
        %v956 = vunpack.c.l.b16 %v917
        %v957 = vunpack.c.l.b16 %v918
        %v958 = vunpack.c.l.b16 %v919
        %v959 = vpack.c.b16 %v944, %v943
        %v960 = vpack.c.b16 %v946, %v945
        %v961 = vpack.c.b16 %v948, %v947
        %v962 = vpack.c.b16 %v950, %v949
        %v963 = vpack.c.b16 %v952, %v951
        %v964 = vpack.c.b16 %v954, %v953
        %v965 = vpack.c.b16 %v956, %v955
        %v966 = vpack.c.b16 %v958, %v957
        %975 = vmatprep.subr.bf16.mxu0 0
        %976 = vmatpush1.bf16.msra.mxu0 %v959
        %977 = vmatprep.subr.bf16.mxu0 0
        %978 = vmatpush1.bf16.msra.mxu0 %v960
        %979 = vmatprep.subr.bf16.mxu0 0
        %980 = vmatpush1.bf16.msra.mxu0 %v961
        %981 = vmatprep.subr.bf16.mxu0 0
        %982 = vmatpush1.bf16.msra.mxu0 %v962
        %983 = vmatprep.subr.bf16.mxu0 0
        %984 = vmatpush1.bf16.msra.mxu0 %v963
        %985 = vmatprep.subr.bf16.mxu0 0
        %986 = vmatpush1.bf16.msra.mxu0 %v964
        %987 = vmatprep.subr.bf16.mxu0 0
        %988 = vmatpush1.bf16.msra.mxu0 %v965
        %989 = vmatprep.subr.bf16.mxu0 0
        %990 = vmatpush1.bf16.msra.mxu0 %v966
        %991 = vmatprep.subr.bf16.mxu0 0
        %992 = vmatpush1.bf16.msra.mxu0 0
        %993 = vmatprep.subr.bf16.mxu0 0
        %994 = vmatpush1.bf16.msra.mxu0 0
        %995 = vmatprep.subr.bf16.mxu0 0
        %996 = vmatpush1.bf16.msra.mxu0 0
        %997 = vmatprep.subr.bf16.mxu0 0
        %998 = vmatpush1.bf16.msra.mxu0 0
        %999 = vmatprep.subr.bf16.mxu0 0
        %1000 = vmatpush1.bf16.msra.mxu0 0
        %1001 = vmatprep.subr.bf16.mxu0 0
        %1002 = vmatpush1.bf16.msra.mxu0 0
        %1003 = vmatprep.subr.bf16.mxu0 0
        %1004 = vmatpush1.bf16.msra.mxu0 0
        %1005 = vmatprep.subr.bf16.mxu0 0
        %1006 = vmatpush1.bf16.msra.mxu0 0
        %1007 = vmatprep.mubr.bf16.mxu0 0
        %1008 = vmatmul.mubr.bf16.gmra.mrb[0].mxu0 %v903
        %v1009 = vpop.f32.mrb[0].mxu0
        %v1010 = vadd.f32 %v925, %v1009
        %v1011 = vpop.f32.mrb[0].mxu0
        %v1012 = vpop.f32.mrb[0].mxu0
        %v1013 = vadd.f32 %v925, %v1012
        %v1014 = vpop.f32.mrb[0].mxu0
        %1015 = vdwg.mxu0
        %v1016 = vpack.c.bf16 %v861, %v860
        %v1017 = vld [vmem:[%s704] sm:$0xff]
        %v1018 = vld [vmem:[%s704 + $0x8] sm:$0xff]
        %v1019 = vld [vmem:[%s704 + $0x10] sm:$0xff]
        %v1020 = vld [vmem:[%s704 + $0x18] sm:$0xff]
        %v1021 = vld [vmem:[%s704 + $0x20] sm:$0xff]
        %v1022 = vld [vmem:[%s704 + $0x28] sm:$0xff]
        %v1023 = vld [vmem:[%s704 + $0x30] sm:$0xff]
        %v1024 = vld [vmem:[%s704 + $0x38] sm:$0xff]
        %v1025 = vld [vmem:[%s704 + $0x40] sm:$0xff]
        %v1026 = vld [vmem:[%s704 + $0x48] sm:$0xff]
        %v1027 = vld [vmem:[%s704 + $0x50] sm:$0xff]
        %v1028 = vld [vmem:[%s704 + $0x58] sm:$0xff]
        %v1029 = vld [vmem:[%s704 + $0x60] sm:$0xff]
        %v1030 = vld [vmem:[%s704 + $0x68] sm:$0xff]
        %v1031 = vld [vmem:[%s704 + $0x70] sm:$0xff]
        %v1032 = vld [vmem:[%s704 + $0x78] sm:$0xff]
        %v1033 = vld [vmem:[%s833] sm:$0x3]
        %v1035 = vlaneseq
        %v1036 = vshrl.u32 %v1035, 7
        %v1037 = vsub.s32 0, %v1036
        %v1038 = vrot.slane %v1033, %v1037
        %v1039 = vlaneseq
        %v1040 = vshrl.u32 %v1039, 7
        %v1041 = vsub.s32 1, %v1040
        %v1042 = vrot.slane %v1033, %v1041
        %v1061 = vunpack.c.l.b16 %v1017
        %v1062 = vunpack.c.h.b16 %v1017
        %v1063 = vunpack.c.l.b16 %v1018
        %v1064 = vunpack.c.h.b16 %v1018
        %v1065 = vunpack.c.l.b16 %v1019
        %v1066 = vunpack.c.h.b16 %v1019
        %v1067 = vunpack.c.l.b16 %v1020
        %v1068 = vunpack.c.h.b16 %v1020
        %v1069 = vunpack.c.l.b16 %v1021
        %v1070 = vunpack.c.h.b16 %v1021
        %v1071 = vunpack.c.l.b16 %v1022
        %v1072 = vunpack.c.h.b16 %v1022
        %v1073 = vunpack.c.l.b16 %v1023
        %v1074 = vunpack.c.h.b16 %v1023
        %v1075 = vunpack.c.l.b16 %v1024
        %v1076 = vunpack.c.h.b16 %v1024
        %v1077 = vunpack.c.l.b16 %v1025
        %v1078 = vunpack.c.h.b16 %v1025
        %v1079 = vunpack.c.l.b16 %v1026
        %v1080 = vunpack.c.h.b16 %v1026
        %v1081 = vunpack.c.l.b16 %v1027
        %v1082 = vunpack.c.h.b16 %v1027
        %v1083 = vunpack.c.l.b16 %v1028
        %v1084 = vunpack.c.h.b16 %v1028
        %v1085 = vunpack.c.l.b16 %v1029
        %v1086 = vunpack.c.h.b16 %v1029
        %v1087 = vunpack.c.l.b16 %v1030
        %v1088 = vunpack.c.h.b16 %v1030
        %v1089 = vunpack.c.l.b16 %v1031
        %v1090 = vunpack.c.h.b16 %v1031
        %v1091 = vunpack.c.l.b16 %v1032
        %v1092 = vunpack.c.h.b16 %v1032
        %v1093 = vpack.c.b16 %v1063, %v1061
        %v1094 = vpack.c.b16 %v1064, %v1062
        %v1095 = vpack.c.b16 %v1067, %v1065
        %v1096 = vpack.c.b16 %v1068, %v1066
        %v1097 = vpack.c.b16 %v1071, %v1069
        %v1098 = vpack.c.b16 %v1072, %v1070
        %v1099 = vpack.c.b16 %v1075, %v1073
        %v1100 = vpack.c.b16 %v1076, %v1074
        %v1101 = vpack.c.b16 %v1079, %v1077
        %v1102 = vpack.c.b16 %v1080, %v1078
        %v1103 = vpack.c.b16 %v1083, %v1081
        %v1104 = vpack.c.b16 %v1084, %v1082
        %v1105 = vpack.c.b16 %v1087, %v1085
        %v1106 = vpack.c.b16 %v1088, %v1086
        %v1107 = vpack.c.b16 %v1091, %v1089
        %v1108 = vpack.c.b16 %v1092, %v1090
        %1125 = vmatprep.subr.bf16.mxu0 %v1094
        %1126 = vmatpush1.bf16.msra.mxu0 %v1093
        %1127 = vmatprep.subr.bf16.mxu0 %v1096
        %1128 = vmatpush1.bf16.msra.mxu0 %v1095
        %1129 = vmatprep.subr.bf16.mxu0 %v1098
        %1130 = vmatpush1.bf16.msra.mxu0 %v1097
        %1131 = vmatprep.subr.bf16.mxu0 %v1100
        %1132 = vmatpush1.bf16.msra.mxu0 %v1099
        %1133 = vmatprep.subr.bf16.mxu0 %v1102
        %1134 = vmatpush1.bf16.msra.mxu0 %v1101
        %1135 = vmatprep.subr.bf16.mxu0 %v1104
        %1136 = vmatpush1.bf16.msra.mxu0 %v1103
        %1137 = vmatprep.subr.bf16.mxu0 %v1106
        %1138 = vmatpush1.bf16.msra.mxu0 %v1105
        %1139 = vmatprep.subr.bf16.mxu0 %v1108
        %1140 = vmatpush1.bf16.msra.mxu0 %v1107
        %1141 = vmatprep.subr.bf16.mxu0 0
        %1142 = vmatpush1.bf16.msra.mxu0 0
        %1143 = vmatprep.subr.bf16.mxu0 0
        %1144 = vmatpush1.bf16.msra.mxu0 0
        %1145 = vmatprep.subr.bf16.mxu0 0
        %1146 = vmatpush1.bf16.msra.mxu0 0
        %1147 = vmatprep.subr.bf16.mxu0 0
        %1148 = vmatpush1.bf16.msra.mxu0 0
        %1149 = vmatprep.subr.bf16.mxu0 0
        %1150 = vmatpush1.bf16.msra.mxu0 0
        %1151 = vmatprep.subr.bf16.mxu0 0
        %1152 = vmatpush1.bf16.msra.mxu0 0
        %1153 = vmatprep.subr.bf16.mxu0 0
        %1154 = vmatpush1.bf16.msra.mxu0 0
        %1155 = vmatprep.subr.bf16.mxu0 0
        %1156 = vmatpush1.bf16.msra.mxu0 0
        %1157 = vmatprep.mubr.bf16.mxu0 0
        %1158 = vmatmul.mubr.bf16.gmra.mrb[0].mxu0 %v1016
        %v1159 = vpop.f32.mrb[0].mxu0
        %v1160 = vadd.f32 %v1038, %v1159
        %v1161 = vpop.f32.mrb[0].mxu0
        %v1162 = vadd.f32 %v1042, %v1161
        %v1163 = vpop.f32.mrb[0].mxu0
        %v1164 = vadd.f32 %v1038, %v1163
        %v1165 = vpop.f32.mrb[0].mxu0
        %v1166 = vadd.f32 %v1042, %v1165
        %1167 = vdwg.mxu0
        %v1168 = vpack.c.bf16 %v1013, %v1010
        %v1169 = vpack.c.bf16 %v1164, %v1160
        %v1170 = vpack.c.bf16 %v1166, %v1162
        %1172 = vrot.lane.b32.xlu0 %v1168, 96
        %v1173 = vpop.permute.xlu0 %1172
        %1174 = vrot.lane.b32.xlu0 %v1168, 64
        %v1175 = vpop.permute.xlu0 %1174
        %1176 = vrot.lane.b32.xlu0 %v1168, 32
        %v1177 = vpop.permute.xlu0 %1176
        %v1180 = vpack.i.b16 %v1173, %v1168
        %v1182 = vshrl.u32 %v1168, 16
        %v1183 = vshrl.u32 %v1173, 16
        %v1184 = vpack.i.b16 %v1183, %v1182
        %v1188 = vpack.i.b16 %v1177, %v1175
        %v1190 = vshrl.u32 %v1175, 16
        %v1191 = vshrl.u32 %v1177, 16
        %v1192 = vpack.i.b16 %v1191, %v1190
        %v1195 = vpack.i.b16 0, 0
        %v1197 = vshrl.u32 0, 16
        %v1198 = vpack.i.b16 %v1197, %v1197
        %v1200 = vcombine.high %v1180, %v1195
        %v1202 = vunpack.c.l.s4 1983009808
        %v1203 = vunpack.c.0.s8 %v1202
        %v1204 = vlaneseq
        %v1205 = vshrl.u32 %v1204, 7
        %v1206 = vsub.s32 %v1203, %v1205
        %v1207 = vrot.slane %v1180, %v1206
        %v1209 = vunpack.c.l.s4 1983009808
        %v1210 = vunpack.c.0.s8 %v1209
        %v1211 = vlaneseq
        %v1212 = vshrl.u32 %v1211, 7
        %v1213 = vsub.s32 %v1210, %v1212
        %v1214 = vrot.slane %v1200, %v1213
        %v1215 = vcombine.high %v1188, %v1195
        %v1217 = vunpack.c.l.s4 1983009808
        %v1218 = vunpack.c.0.s8 %v1217
        %v1219 = vlaneseq
        %v1220 = vshrl.u32 %v1219, 7
        %v1221 = vsub.s32 %v1218, %v1220
        %v1222 = vrot.slane %v1188, %v1221
        %v1224 = vunpack.c.l.s4 1983009808
        %v1225 = vunpack.c.0.s8 %v1224
        %v1226 = vlaneseq
        %v1227 = vshrl.u32 %v1226, 7
        %v1228 = vsub.s32 %v1225, %v1227
        %v1229 = vrot.slane %v1215, %v1228
        %v1230 = vcombine.low %v1207, %v1222
        %v1231 = vcombine.high %v1207, %v1222
        %v1233 = vunpack.c.l.s4 1934713408
        %v1234 = vunpack.c.0.s8 %v1233
        %v1235 = vlaneseq
        %v1236 = vshrl.u32 %v1235, 7
        %v1237 = vsub.s32 %v1234, %v1236
        %v1238 = vrot.slane %v1230, %v1237
        %v1240 = vunpack.c.l.s4 1934713408
        %v1241 = vunpack.c.0.s8 %v1240
        %v1242 = vlaneseq
        %v1243 = vshrl.u32 %v1242, 7
        %v1244 = vsub.s32 %v1241, %v1243
        %v1245 = vrot.slane %v1231, %v1244
        %v1246 = vcombine.low %v1214, %v1229
        %v1247 = vcombine.high %v1214, %v1229
        %v1249 = vunpack.c.l.s4 1934713408
        %v1250 = vunpack.c.0.s8 %v1249
        %v1251 = vlaneseq
        %v1252 = vshrl.u32 %v1251, 7
        %v1253 = vsub.s32 %v1250, %v1252
        %v1254 = vrot.slane %v1246, %v1253
        %v1256 = vunpack.c.l.s4 1934713408
        %v1257 = vunpack.c.0.s8 %v1256
        %v1258 = vlaneseq
        %v1259 = vshrl.u32 %v1258, 7
        %v1260 = vsub.s32 %v1257, %v1259
        %v1261 = vrot.slane %v1247, %v1260
        %v1262 = vcombine.high %v1238, 0
        %v1263 = vcombine.high %v1245, 0
        %v1264 = vcombine.high %v1254, 0
        %v1265 = vcombine.high %v1261, 0
        %v1266 = vcombine.high %v1184, %v1198
        %v1268 = vunpack.c.l.s4 1983009808
        %v1269 = vunpack.c.0.s8 %v1268
        %v1270 = vlaneseq
        %v1271 = vshrl.u32 %v1270, 7
        %v1272 = vsub.s32 %v1269, %v1271
        %v1273 = vrot.slane %v1184, %v1272
        %v1275 = vunpack.c.l.s4 1983009808
        %v1276 = vunpack.c.0.s8 %v1275
        %v1277 = vlaneseq
        %v1278 = vshrl.u32 %v1277, 7
        %v1279 = vsub.s32 %v1276, %v1278
        %v1280 = vrot.slane %v1266, %v1279
        %v1281 = vcombine.high %v1192, %v1198
        %v1283 = vunpack.c.l.s4 1983009808
        %v1284 = vunpack.c.0.s8 %v1283
        %v1285 = vlaneseq
        %v1286 = vshrl.u32 %v1285, 7
        %v1287 = vsub.s32 %v1284, %v1286
        %v1288 = vrot.slane %v1192, %v1287
        %v1290 = vunpack.c.l.s4 1983009808
        %v1291 = vunpack.c.0.s8 %v1290
        %v1292 = vlaneseq
        %v1293 = vshrl.u32 %v1292, 7
        %v1294 = vsub.s32 %v1291, %v1293
        %v1295 = vrot.slane %v1281, %v1294
        %v1296 = vcombine.low %v1273, %v1288
        %v1297 = vcombine.high %v1273, %v1288
        %v1299 = vunpack.c.l.s4 1934713408
        %v1300 = vunpack.c.0.s8 %v1299
        %v1301 = vlaneseq
        %v1302 = vshrl.u32 %v1301, 7
        %v1303 = vsub.s32 %v1300, %v1302
        %v1304 = vrot.slane %v1296, %v1303
        %v1306 = vunpack.c.l.s4 1934713408
        %v1307 = vunpack.c.0.s8 %v1306
        %v1308 = vlaneseq
        %v1309 = vshrl.u32 %v1308, 7
        %v1310 = vsub.s32 %v1307, %v1309
        %v1311 = vrot.slane %v1297, %v1310
        %v1312 = vcombine.low %v1280, %v1295
        %v1313 = vcombine.high %v1280, %v1295
        %v1315 = vunpack.c.l.s4 1934713408
        %v1316 = vunpack.c.0.s8 %v1315
        %v1317 = vlaneseq
        %v1318 = vshrl.u32 %v1317, 7
        %v1319 = vsub.s32 %v1316, %v1318
        %v1320 = vrot.slane %v1312, %v1319
        %v1322 = vunpack.c.l.s4 1934713408
        %v1323 = vunpack.c.0.s8 %v1322
        %v1324 = vlaneseq
        %v1325 = vshrl.u32 %v1324, 7
        %v1326 = vsub.s32 %v1323, %v1325
        %v1327 = vrot.slane %v1313, %v1326
        %v1328 = vcombine.high %v1304, 0
        %v1329 = vcombine.high %v1311, 0
        %v1330 = vcombine.high %v1320, 0
        %v1331 = vcombine.high %v1327, 0
        %v1332 = vcombine.low %v1238, %v1245
        %v1334 = vunpack.c.l.s4 1983009808
        %v1335 = vunpack.c.0.s8 %v1334
        %v1336 = vlaneseq
        %v1337 = vshrl.u32 %v1336, 7
        %v1338 = vsub.s32 %v1335, %v1337
        %v1339 = vrot.slane %v1332, %v1338
        %v1340 = vcombine.low %v1262, %v1263
        %v1342 = vunpack.c.l.s4 1983009808
        %v1343 = vunpack.c.0.s8 %v1342
        %v1344 = vlaneseq
        %v1345 = vshrl.u32 %v1344, 7
        %v1346 = vsub.s32 %v1343, %v1345
        %v1347 = vrot.slane %v1340, %v1346
        %v1348 = vcombine.low %v1339, %v1347
        %v1350 = vunpack.c.l.s4 1934713408
        %v1351 = vunpack.c.0.s8 %v1350
        %v1352 = vlaneseq
        %v1353 = vshrl.u32 %v1352, 7
        %v1354 = vsub.s32 %v1351, %v1353
        %v1355 = vrot.slane %v1348, %v1354
        %v1356 = vcombine.high %v1355, 0
        %v1357 = vcombine.low %v1304, %v1311
        %v1359 = vunpack.c.l.s4 1983009808
        %v1360 = vunpack.c.0.s8 %v1359
        %v1361 = vlaneseq
        %v1362 = vshrl.u32 %v1361, 7
        %v1363 = vsub.s32 %v1360, %v1362
        %v1364 = vrot.slane %v1357, %v1363
        %v1365 = vcombine.low %v1328, %v1329
        %v1367 = vunpack.c.l.s4 1983009808
        %v1368 = vunpack.c.0.s8 %v1367
        %v1369 = vlaneseq
        %v1370 = vshrl.u32 %v1369, 7
        %v1371 = vsub.s32 %v1368, %v1370
        %v1372 = vrot.slane %v1365, %v1371
        %v1373 = vcombine.low %v1364, %v1372
        %v1375 = vunpack.c.l.s4 1934713408
        %v1376 = vunpack.c.0.s8 %v1375
        %v1377 = vlaneseq
        %v1378 = vshrl.u32 %v1377, 7
        %v1379 = vsub.s32 %v1376, %v1378
        %v1380 = vrot.slane %v1373, %v1379
        %v1381 = vcombine.high %v1380, 0
        %v1382 = vcombine.low %v1254, %v1261
        %v1384 = vunpack.c.l.s4 1983009808
        %v1385 = vunpack.c.0.s8 %v1384
        %v1386 = vlaneseq
        %v1387 = vshrl.u32 %v1386, 7
        %v1388 = vsub.s32 %v1385, %v1387
        %v1389 = vrot.slane %v1382, %v1388
        %v1390 = vcombine.low %v1264, %v1265
        %v1392 = vunpack.c.l.s4 1983009808
        %v1393 = vunpack.c.0.s8 %v1392
        %v1394 = vlaneseq
        %v1395 = vshrl.u32 %v1394, 7
        %v1396 = vsub.s32 %v1393, %v1395
        %v1397 = vrot.slane %v1390, %v1396
        %v1398 = vcombine.low %v1389, %v1397
        %v1400 = vunpack.c.l.s4 1934713408
        %v1401 = vunpack.c.0.s8 %v1400
        %v1402 = vlaneseq
        %v1403 = vshrl.u32 %v1402, 7
        %v1404 = vsub.s32 %v1401, %v1403
        %v1405 = vrot.slane %v1398, %v1404
        %v1406 = vcombine.high %v1405, 0
        %v1407 = vcombine.low %v1320, %v1327
        %v1409 = vunpack.c.l.s4 1983009808
        %v1410 = vunpack.c.0.s8 %v1409
        %v1411 = vlaneseq
        %v1412 = vshrl.u32 %v1411, 7
        %v1413 = vsub.s32 %v1410, %v1412
        %v1414 = vrot.slane %v1407, %v1413
        %v1415 = vcombine.low %v1330, %v1331
        %v1417 = vunpack.c.l.s4 1983009808
        %v1418 = vunpack.c.0.s8 %v1417
        %v1419 = vlaneseq
        %v1420 = vshrl.u32 %v1419, 7
        %v1421 = vsub.s32 %v1418, %v1420
        %v1422 = vrot.slane %v1415, %v1421
        %v1423 = vcombine.low %v1414, %v1422
        %v1425 = vunpack.c.l.s4 1934713408
        %v1426 = vunpack.c.0.s8 %v1425
        %v1427 = vlaneseq
        %v1428 = vshrl.u32 %v1427, 7
        %v1429 = vsub.s32 %v1426, %v1428
        %v1430 = vrot.slane %v1423, %v1429
        %v1431 = vcombine.high %v1430, 0
        %v1434 = vpack.i.b16 %v1380, %v1355
        %v1435 = vshrl.u32 %v1355, 16
        %v1436 = vshrl.u32 %v1380, 16
        %v1437 = vpack.i.b16 %v1436, %v1435
        %v1440 = vpack.i.b16 %v1381, %v1356
        %v1441 = vshrl.u32 %v1356, 16
        %v1442 = vshrl.u32 %v1381, 16
        %v1443 = vpack.i.b16 %v1442, %v1441
        %v1446 = vpack.i.b16 %v1430, %v1405
        %v1447 = vshrl.u32 %v1405, 16
        %v1448 = vshrl.u32 %v1430, 16
        %v1449 = vpack.i.b16 %v1448, %v1447
        %v1452 = vpack.i.b16 %v1431, %v1406
        %v1453 = vshrl.u32 %v1406, 16
        %v1454 = vshrl.u32 %v1431, 16
        %v1455 = vpack.i.b16 %v1454, %v1453
        %1457 = vrot.lane.b32.xlu0 %v1169, 96
        %v1458 = vpop.permute.xlu0 %1457
        %1459 = vrot.lane.b32.xlu0 %v1169, 64
        %v1460 = vpop.permute.xlu0 %1459
        %1461 = vrot.lane.b32.xlu0 %v1169, 32
        %v1462 = vpop.permute.xlu0 %1461
        %v1465 = vpack.i.b16 %v1458, %v1169
        %v1467 = vshrl.u32 %v1169, 16
        %v1468 = vshrl.u32 %v1458, 16
        %v1469 = vpack.i.b16 %v1468, %v1467
        %v1473 = vpack.i.b16 %v1462, %v1460
        %v1475 = vshrl.u32 %v1460, 16
        %v1476 = vshrl.u32 %v1462, 16
        %v1477 = vpack.i.b16 %v1476, %v1475
        %v1479 = vcombine.high %v1465, %v1195
        %v1481 = vunpack.c.l.s4 1983009808
        %v1482 = vunpack.c.0.s8 %v1481
        %v1483 = vlaneseq
        %v1484 = vshrl.u32 %v1483, 7
        %v1485 = vsub.s32 %v1482, %v1484
        %v1486 = vrot.slane %v1465, %v1485
        %v1488 = vunpack.c.l.s4 1983009808
        %v1489 = vunpack.c.0.s8 %v1488
        %v1490 = vlaneseq
        %v1491 = vshrl.u32 %v1490, 7
        %v1492 = vsub.s32 %v1489, %v1491
        %v1493 = vrot.slane %v1479, %v1492
        %v1494 = vcombine.high %v1473, %v1195
        %v1496 = vunpack.c.l.s4 1983009808
        %v1497 = vunpack.c.0.s8 %v1496
        %v1498 = vlaneseq
        %v1499 = vshrl.u32 %v1498, 7
        %v1500 = vsub.s32 %v1497, %v1499
        %v1501 = vrot.slane %v1473, %v1500
        %v1503 = vunpack.c.l.s4 1983009808
        %v1504 = vunpack.c.0.s8 %v1503
        %v1505 = vlaneseq
        %v1506 = vshrl.u32 %v1505, 7
        %v1507 = vsub.s32 %v1504, %v1506
        %v1508 = vrot.slane %v1494, %v1507
        %v1509 = vcombine.low %v1486, %v1501
        %v1510 = vcombine.high %v1486, %v1501
        %v1512 = vunpack.c.l.s4 1934713408
        %v1513 = vunpack.c.0.s8 %v1512
        %v1514 = vlaneseq
        %v1515 = vshrl.u32 %v1514, 7
        %v1516 = vsub.s32 %v1513, %v1515
        %v1517 = vrot.slane %v1509, %v1516
        %v1519 = vunpack.c.l.s4 1934713408
        %v1520 = vunpack.c.0.s8 %v1519
        %v1521 = vlaneseq
        %v1522 = vshrl.u32 %v1521, 7
        %v1523 = vsub.s32 %v1520, %v1522
        %v1524 = vrot.slane %v1510, %v1523
        %v1525 = vcombine.low %v1493, %v1508
        %v1526 = vcombine.high %v1493, %v1508
        %v1528 = vunpack.c.l.s4 1934713408
        %v1529 = vunpack.c.0.s8 %v1528
        %v1530 = vlaneseq
        %v1531 = vshrl.u32 %v1530, 7
        %v1532 = vsub.s32 %v1529, %v1531
        %v1533 = vrot.slane %v1525, %v1532
        %v1535 = vunpack.c.l.s4 1934713408
        %v1536 = vunpack.c.0.s8 %v1535
        %v1537 = vlaneseq
        %v1538 = vshrl.u32 %v1537, 7
        %v1539 = vsub.s32 %v1536, %v1538
        %v1540 = vrot.slane %v1526, %v1539
        %v1541 = vcombine.high %v1517, 0
        %v1542 = vcombine.high %v1524, 0
        %v1543 = vcombine.high %v1533, 0
        %v1544 = vcombine.high %v1540, 0
        %v1545 = vcombine.high %v1469, %v1198
        %v1547 = vunpack.c.l.s4 1983009808
        %v1548 = vunpack.c.0.s8 %v1547
        %v1549 = vlaneseq
        %v1550 = vshrl.u32 %v1549, 7
        %v1551 = vsub.s32 %v1548, %v1550
        %v1552 = vrot.slane %v1469, %v1551
        %v1554 = vunpack.c.l.s4 1983009808
        %v1555 = vunpack.c.0.s8 %v1554
        %v1556 = vlaneseq
        %v1557 = vshrl.u32 %v1556, 7
        %v1558 = vsub.s32 %v1555, %v1557
        %v1559 = vrot.slane %v1545, %v1558
        %v1560 = vcombine.high %v1477, %v1198
        %v1562 = vunpack.c.l.s4 1983009808
        %v1563 = vunpack.c.0.s8 %v1562
        %v1564 = vlaneseq
        %v1565 = vshrl.u32 %v1564, 7
        %v1566 = vsub.s32 %v1563, %v1565
        %v1567 = vrot.slane %v1477, %v1566
        %v1569 = vunpack.c.l.s4 1983009808
        %v1570 = vunpack.c.0.s8 %v1569
        %v1571 = vlaneseq
        %v1572 = vshrl.u32 %v1571, 7
        %v1573 = vsub.s32 %v1570, %v1572
        %v1574 = vrot.slane %v1560, %v1573
        %v1575 = vcombine.low %v1552, %v1567
        %v1576 = vcombine.high %v1552, %v1567
        %v1578 = vunpack.c.l.s4 1934713408
        %v1579 = vunpack.c.0.s8 %v1578
        %v1580 = vlaneseq
        %v1581 = vshrl.u32 %v1580, 7
        %v1582 = vsub.s32 %v1579, %v1581
        %v1583 = vrot.slane %v1575, %v1582
        %v1585 = vunpack.c.l.s4 1934713408
        %v1586 = vunpack.c.0.s8 %v1585
        %v1587 = vlaneseq
        %v1588 = vshrl.u32 %v1587, 7
        %v1589 = vsub.s32 %v1586, %v1588
        %v1590 = vrot.slane %v1576, %v1589
        %v1591 = vcombine.low %v1559, %v1574
        %v1592 = vcombine.high %v1559, %v1574
        %v1594 = vunpack.c.l.s4 1934713408
        %v1595 = vunpack.c.0.s8 %v1594
        %v1596 = vlaneseq
        %v1597 = vshrl.u32 %v1596, 7
        %v1598 = vsub.s32 %v1595, %v1597
        %v1599 = vrot.slane %v1591, %v1598
        %v1601 = vunpack.c.l.s4 1934713408
        %v1602 = vunpack.c.0.s8 %v1601
        %v1603 = vlaneseq
        %v1604 = vshrl.u32 %v1603, 7
        %v1605 = vsub.s32 %v1602, %v1604
        %v1606 = vrot.slane %v1592, %v1605
        %v1607 = vcombine.high %v1583, 0
        %v1608 = vcombine.high %v1590, 0
        %v1609 = vcombine.high %v1599, 0
        %v1610 = vcombine.high %v1606, 0
        %v1611 = vcombine.low %v1517, %v1524
        %v1613 = vunpack.c.l.s4 1983009808
        %v1614 = vunpack.c.0.s8 %v1613
        %v1615 = vlaneseq
        %v1616 = vshrl.u32 %v1615, 7
        %v1617 = vsub.s32 %v1614, %v1616
        %v1618 = vrot.slane %v1611, %v1617
        %v1619 = vcombine.low %v1541, %v1542
        %v1621 = vunpack.c.l.s4 1983009808
        %v1622 = vunpack.c.0.s8 %v1621
        %v1623 = vlaneseq
        %v1624 = vshrl.u32 %v1623, 7
        %v1625 = vsub.s32 %v1622, %v1624
        %v1626 = vrot.slane %v1619, %v1625
        %v1627 = vcombine.low %v1618, %v1626
        %v1629 = vunpack.c.l.s4 1934713408
        %v1630 = vunpack.c.0.s8 %v1629
        %v1631 = vlaneseq
        %v1632 = vshrl.u32 %v1631, 7
        %v1633 = vsub.s32 %v1630, %v1632
        %v1634 = vrot.slane %v1627, %v1633
        %v1635 = vcombine.high %v1634, 0
        %v1636 = vcombine.low %v1583, %v1590
        %v1638 = vunpack.c.l.s4 1983009808
        %v1639 = vunpack.c.0.s8 %v1638
        %v1640 = vlaneseq
        %v1641 = vshrl.u32 %v1640, 7
        %v1642 = vsub.s32 %v1639, %v1641
        %v1643 = vrot.slane %v1636, %v1642
        %v1644 = vcombine.low %v1607, %v1608
        %v1646 = vunpack.c.l.s4 1983009808
        %v1647 = vunpack.c.0.s8 %v1646
        %v1648 = vlaneseq
        %v1649 = vshrl.u32 %v1648, 7
        %v1650 = vsub.s32 %v1647, %v1649
        %v1651 = vrot.slane %v1644, %v1650
        %v1652 = vcombine.low %v1643, %v1651
        %v1654 = vunpack.c.l.s4 1934713408
        %v1655 = vunpack.c.0.s8 %v1654
        %v1656 = vlaneseq
        %v1657 = vshrl.u32 %v1656, 7
        %v1658 = vsub.s32 %v1655, %v1657
        %v1659 = vrot.slane %v1652, %v1658
        %v1660 = vcombine.high %v1659, 0
        %v1661 = vcombine.low %v1533, %v1540
        %v1663 = vunpack.c.l.s4 1983009808
        %v1664 = vunpack.c.0.s8 %v1663
        %v1665 = vlaneseq
        %v1666 = vshrl.u32 %v1665, 7
        %v1667 = vsub.s32 %v1664, %v1666
        %v1668 = vrot.slane %v1661, %v1667
        %v1669 = vcombine.low %v1543, %v1544
        %v1671 = vunpack.c.l.s4 1983009808
        %v1672 = vunpack.c.0.s8 %v1671
        %v1673 = vlaneseq
        %v1674 = vshrl.u32 %v1673, 7
        %v1675 = vsub.s32 %v1672, %v1674
        %v1676 = vrot.slane %v1669, %v1675
        %v1677 = vcombine.low %v1668, %v1676
        %v1679 = vunpack.c.l.s4 1934713408
        %v1680 = vunpack.c.0.s8 %v1679
        %v1681 = vlaneseq
        %v1682 = vshrl.u32 %v1681, 7
        %v1683 = vsub.s32 %v1680, %v1682
        %v1684 = vrot.slane %v1677, %v1683
        %v1685 = vcombine.high %v1684, 0
        %v1686 = vcombine.low %v1599, %v1606
        %v1688 = vunpack.c.l.s4 1983009808
        %v1689 = vunpack.c.0.s8 %v1688
        %v1690 = vlaneseq
        %v1691 = vshrl.u32 %v1690, 7
        %v1692 = vsub.s32 %v1689, %v1691
        %v1693 = vrot.slane %v1686, %v1692
        %v1694 = vcombine.low %v1609, %v1610
        %v1696 = vunpack.c.l.s4 1983009808
        %v1697 = vunpack.c.0.s8 %v1696
        %v1698 = vlaneseq
        %v1699 = vshrl.u32 %v1698, 7
        %v1700 = vsub.s32 %v1697, %v1699
        %v1701 = vrot.slane %v1694, %v1700
        %v1702 = vcombine.low %v1693, %v1701
        %v1704 = vunpack.c.l.s4 1934713408
        %v1705 = vunpack.c.0.s8 %v1704
        %v1706 = vlaneseq
        %v1707 = vshrl.u32 %v1706, 7
        %v1708 = vsub.s32 %v1705, %v1707
        %v1709 = vrot.slane %v1702, %v1708
        %v1710 = vcombine.high %v1709, 0
        %v1713 = vpack.i.b16 %v1659, %v1634
        %v1714 = vshrl.u32 %v1634, 16
        %v1715 = vshrl.u32 %v1659, 16
        %v1716 = vpack.i.b16 %v1715, %v1714
        %v1719 = vpack.i.b16 %v1660, %v1635
        %v1720 = vshrl.u32 %v1635, 16
        %v1721 = vshrl.u32 %v1660, 16
        %v1722 = vpack.i.b16 %v1721, %v1720
        %v1725 = vpack.i.b16 %v1709, %v1684
        %v1726 = vshrl.u32 %v1684, 16
        %v1727 = vshrl.u32 %v1709, 16
        %v1728 = vpack.i.b16 %v1727, %v1726
        %v1731 = vpack.i.b16 %v1710, %v1685
        %v1732 = vshrl.u32 %v1685, 16
        %v1733 = vshrl.u32 %v1710, 16
        %v1734 = vpack.i.b16 %v1733, %v1732
        %1736 = vrot.lane.b32.xlu0 %v1170, 96
        %v1737 = vpop.permute.xlu0 %1736
        %1738 = vrot.lane.b32.xlu0 %v1170, 64
        %v1739 = vpop.permute.xlu0 %1738
        %1740 = vrot.lane.b32.xlu0 %v1170, 32
        %v1741 = vpop.permute.xlu0 %1740
        %v1744 = vpack.i.b16 %v1737, %v1170
        %v1746 = vshrl.u32 %v1170, 16
        %v1747 = vshrl.u32 %v1737, 16
        %v1748 = vpack.i.b16 %v1747, %v1746
        %v1752 = vpack.i.b16 %v1741, %v1739
        %v1754 = vshrl.u32 %v1739, 16
        %v1755 = vshrl.u32 %v1741, 16
        %v1756 = vpack.i.b16 %v1755, %v1754
        %v1758 = vcombine.high %v1744, %v1195
        %v1760 = vunpack.c.l.s4 1983009808
        %v1761 = vunpack.c.0.s8 %v1760
        %v1762 = vlaneseq
        %v1763 = vshrl.u32 %v1762, 7
        %v1764 = vsub.s32 %v1761, %v1763
        %v1765 = vrot.slane %v1744, %v1764
        %v1767 = vunpack.c.l.s4 1983009808
        %v1768 = vunpack.c.0.s8 %v1767
        %v1769 = vlaneseq
        %v1770 = vshrl.u32 %v1769, 7
        %v1771 = vsub.s32 %v1768, %v1770
        %v1772 = vrot.slane %v1758, %v1771
        %v1773 = vcombine.high %v1752, %v1195
        %v1775 = vunpack.c.l.s4 1983009808
        %v1776 = vunpack.c.0.s8 %v1775
        %v1777 = vlaneseq
        %v1778 = vshrl.u32 %v1777, 7
        %v1779 = vsub.s32 %v1776, %v1778
        %v1780 = vrot.slane %v1752, %v1779
        %v1782 = vunpack.c.l.s4 1983009808
        %v1783 = vunpack.c.0.s8 %v1782
        %v1784 = vlaneseq
        %v1785 = vshrl.u32 %v1784, 7
        %v1786 = vsub.s32 %v1783, %v1785
        %v1787 = vrot.slane %v1773, %v1786
        %v1788 = vcombine.low %v1765, %v1780
        %v1789 = vcombine.high %v1765, %v1780
        %v1791 = vunpack.c.l.s4 1934713408
        %v1792 = vunpack.c.0.s8 %v1791
        %v1793 = vlaneseq
        %v1794 = vshrl.u32 %v1793, 7
        %v1795 = vsub.s32 %v1792, %v1794
        %v1796 = vrot.slane %v1788, %v1795
        %v1798 = vunpack.c.l.s4 1934713408
        %v1799 = vunpack.c.0.s8 %v1798
        %v1800 = vlaneseq
        %v1801 = vshrl.u32 %v1800, 7
        %v1802 = vsub.s32 %v1799, %v1801
        %v1803 = vrot.slane %v1789, %v1802
        %v1804 = vcombine.low %v1772, %v1787
        %v1805 = vcombine.high %v1772, %v1787
        %v1807 = vunpack.c.l.s4 1934713408
        %v1808 = vunpack.c.0.s8 %v1807
        %v1809 = vlaneseq
        %v1810 = vshrl.u32 %v1809, 7
        %v1811 = vsub.s32 %v1808, %v1810
        %v1812 = vrot.slane %v1804, %v1811
        %v1814 = vunpack.c.l.s4 1934713408
        %v1815 = vunpack.c.0.s8 %v1814
        %v1816 = vlaneseq
        %v1817 = vshrl.u32 %v1816, 7
        %v1818 = vsub.s32 %v1815, %v1817
        %v1819 = vrot.slane %v1805, %v1818
        %v1820 = vcombine.high %v1796, 0
        %v1821 = vcombine.high %v1803, 0
        %v1822 = vcombine.high %v1812, 0
        %v1823 = vcombine.high %v1819, 0
        %v1824 = vcombine.high %v1748, %v1198
        %v1826 = vunpack.c.l.s4 1983009808
        %v1827 = vunpack.c.0.s8 %v1826
        %v1828 = vlaneseq
        %v1829 = vshrl.u32 %v1828, 7
        %v1830 = vsub.s32 %v1827, %v1829
        %v1831 = vrot.slane %v1748, %v1830
        %v1833 = vunpack.c.l.s4 1983009808
        %v1834 = vunpack.c.0.s8 %v1833
        %v1835 = vlaneseq
        %v1836 = vshrl.u32 %v1835, 7
        %v1837 = vsub.s32 %v1834, %v1836
        %v1838 = vrot.slane %v1824, %v1837
        %v1839 = vcombine.high %v1756, %v1198
        %v1841 = vunpack.c.l.s4 1983009808
        %v1842 = vunpack.c.0.s8 %v1841
        %v1843 = vlaneseq
        %v1844 = vshrl.u32 %v1843, 7
        %v1845 = vsub.s32 %v1842, %v1844
        %v1846 = vrot.slane %v1756, %v1845
        %v1848 = vunpack.c.l.s4 1983009808
        %v1849 = vunpack.c.0.s8 %v1848
        %v1850 = vlaneseq
        %v1851 = vshrl.u32 %v1850, 7
        %v1852 = vsub.s32 %v1849, %v1851
        %v1853 = vrot.slane %v1839, %v1852
        %v1854 = vcombine.low %v1831, %v1846
        %v1855 = vcombine.high %v1831, %v1846
        %v1857 = vunpack.c.l.s4 1934713408
        %v1858 = vunpack.c.0.s8 %v1857
        %v1859 = vlaneseq
        %v1860 = vshrl.u32 %v1859, 7
        %v1861 = vsub.s32 %v1858, %v1860
        %v1862 = vrot.slane %v1854, %v1861
        %v1864 = vunpack.c.l.s4 1934713408
        %v1865 = vunpack.c.0.s8 %v1864
        %v1866 = vlaneseq
        %v1867 = vshrl.u32 %v1866, 7
        %v1868 = vsub.s32 %v1865, %v1867
        %v1869 = vrot.slane %v1855, %v1868
        %v1870 = vcombine.low %v1838, %v1853
        %v1871 = vcombine.high %v1838, %v1853
        %v1873 = vunpack.c.l.s4 1934713408
        %v1874 = vunpack.c.0.s8 %v1873
        %v1875 = vlaneseq
        %v1876 = vshrl.u32 %v1875, 7
        %v1877 = vsub.s32 %v1874, %v1876
        %v1878 = vrot.slane %v1870, %v1877
        %v1880 = vunpack.c.l.s4 1934713408
        %v1881 = vunpack.c.0.s8 %v1880
        %v1882 = vlaneseq
        %v1883 = vshrl.u32 %v1882, 7
        %v1884 = vsub.s32 %v1881, %v1883
        %v1885 = vrot.slane %v1871, %v1884
        %v1886 = vcombine.high %v1862, 0
        %v1887 = vcombine.high %v1869, 0
        %v1888 = vcombine.high %v1878, 0
        %v1889 = vcombine.high %v1885, 0
        %v1890 = vcombine.low %v1796, %v1803
        %v1892 = vunpack.c.l.s4 1983009808
        %v1893 = vunpack.c.0.s8 %v1892
        %v1894 = vlaneseq
        %v1895 = vshrl.u32 %v1894, 7
        %v1896 = vsub.s32 %v1893, %v1895
        %v1897 = vrot.slane %v1890, %v1896
        %v1898 = vcombine.low %v1820, %v1821
        %v1900 = vunpack.c.l.s4 1983009808
        %v1901 = vunpack.c.0.s8 %v1900
        %v1902 = vlaneseq
        %v1903 = vshrl.u32 %v1902, 7
        %v1904 = vsub.s32 %v1901, %v1903
        %v1905 = vrot.slane %v1898, %v1904
        %v1906 = vcombine.low %v1897, %v1905
        %v1908 = vunpack.c.l.s4 1934713408
        %v1909 = vunpack.c.0.s8 %v1908
        %v1910 = vlaneseq
        %v1911 = vshrl.u32 %v1910, 7
        %v1912 = vsub.s32 %v1909, %v1911
        %v1913 = vrot.slane %v1906, %v1912
        %v1914 = vcombine.high %v1913, 0
        %v1915 = vcombine.low %v1862, %v1869
        %v1917 = vunpack.c.l.s4 1983009808
        %v1918 = vunpack.c.0.s8 %v1917
        %v1919 = vlaneseq
        %v1920 = vshrl.u32 %v1919, 7
        %v1921 = vsub.s32 %v1918, %v1920
        %v1922 = vrot.slane %v1915, %v1921
        %v1923 = vcombine.low %v1886, %v1887
        %v1925 = vunpack.c.l.s4 1983009808
        %v1926 = vunpack.c.0.s8 %v1925
        %v1927 = vlaneseq
        %v1928 = vshrl.u32 %v1927, 7
        %v1929 = vsub.s32 %v1926, %v1928
        %v1930 = vrot.slane %v1923, %v1929
        %v1931 = vcombine.low %v1922, %v1930
        %v1933 = vunpack.c.l.s4 1934713408
        %v1934 = vunpack.c.0.s8 %v1933
        %v1935 = vlaneseq
        %v1936 = vshrl.u32 %v1935, 7
        %v1937 = vsub.s32 %v1934, %v1936
        %v1938 = vrot.slane %v1931, %v1937
        %v1939 = vcombine.high %v1938, 0
        %v1940 = vcombine.low %v1812, %v1819
        %v1942 = vunpack.c.l.s4 1983009808
        %v1943 = vunpack.c.0.s8 %v1942
        %v1944 = vlaneseq
        %v1945 = vshrl.u32 %v1944, 7
        %v1946 = vsub.s32 %v1943, %v1945
        %v1947 = vrot.slane %v1940, %v1946
        %v1948 = vcombine.low %v1822, %v1823
        %v1950 = vunpack.c.l.s4 1983009808
        %v1951 = vunpack.c.0.s8 %v1950
        %v1952 = vlaneseq
        %v1953 = vshrl.u32 %v1952, 7
        %v1954 = vsub.s32 %v1951, %v1953
        %v1955 = vrot.slane %v1948, %v1954
        %v1956 = vcombine.low %v1947, %v1955
        %v1958 = vunpack.c.l.s4 1934713408
        %v1959 = vunpack.c.0.s8 %v1958
        %v1960 = vlaneseq
        %v1961 = vshrl.u32 %v1960, 7
        %v1962 = vsub.s32 %v1959, %v1961
        %v1963 = vrot.slane %v1956, %v1962
        %v1964 = vcombine.high %v1963, 0
        %v1965 = vcombine.low %v1878, %v1885
        %v1967 = vunpack.c.l.s4 1983009808
        %v1968 = vunpack.c.0.s8 %v1967
        %v1969 = vlaneseq
        %v1970 = vshrl.u32 %v1969, 7
        %v1971 = vsub.s32 %v1968, %v1970
        %v1972 = vrot.slane %v1965, %v1971
        %v1973 = vcombine.low %v1888, %v1889
        %v1975 = vunpack.c.l.s4 1983009808
        %v1976 = vunpack.c.0.s8 %v1975
        %v1977 = vlaneseq
        %v1978 = vshrl.u32 %v1977, 7
        %v1979 = vsub.s32 %v1976, %v1978
        %v1980 = vrot.slane %v1973, %v1979
        %v1981 = vcombine.low %v1972, %v1980
        %v1983 = vunpack.c.l.s4 1934713408
        %v1984 = vunpack.c.0.s8 %v1983
        %v1985 = vlaneseq
        %v1986 = vshrl.u32 %v1985, 7
        %v1987 = vsub.s32 %v1984, %v1986
        %v1988 = vrot.slane %v1981, %v1987
        %v1989 = vcombine.high %v1988, 0
        %v1992 = vpack.i.b16 %v1938, %v1913
        %v1993 = vshrl.u32 %v1913, 16
        %v1994 = vshrl.u32 %v1938, 16
        %v1995 = vpack.i.b16 %v1994, %v1993
        %v1998 = vpack.i.b16 %v1939, %v1914
        %v1999 = vshrl.u32 %v1914, 16
        %v2000 = vshrl.u32 %v1939, 16
        %v2001 = vpack.i.b16 %v2000, %v1999
        %v2004 = vpack.i.b16 %v1988, %v1963
        %v2005 = vshrl.u32 %v1963, 16
        %v2006 = vshrl.u32 %v1988, 16
        %v2007 = vpack.i.b16 %v2006, %v2005
        %v2010 = vpack.i.b16 %v1989, %v1964
        %v2011 = vshrl.u32 %v1964, 16
        %v2012 = vshrl.u32 %v1989, 16
        %v2013 = vpack.i.b16 %v2012, %v2011
        %vm2014 = vcmask 261120
        %v2016 = vsel %vm2014, %v1434, 0
        %v2019 = vsel %vm2014, %v1713, 0
        %2021 = vmatprep.subr.bf16.mxu0 0
        %2022 = vmatpush1.bf16.xpose.msra.mxu0 %v2019
        %2023 = vmatprep.subr.bf16.mxu0 0
        %2024 = vmatpush1.bf16.xpose.msra.mxu0 0
        %2025 = vmatprep.subr.bf16.mxu0 0
        %2026 = vmatpush1.bf16.xpose.msra.mxu0 0
        %2027 = vmatprep.subr.bf16.mxu0 0
        %2028 = vmatpush1.bf16.xpose.msra.mxu0 0
        %2029 = vmatprep.subr.bf16.mxu0 0
        %2030 = vmatpush1.bf16.xpose.msra.mxu0 0
        %2031 = vmatprep.subr.bf16.mxu0 0
        %2032 = vmatpush1.bf16.xpose.msra.mxu0 0
        %2033 = vmatprep.subr.bf16.mxu0 0
        %2034 = vmatpush1.bf16.xpose.msra.mxu0 0
        %2035 = vmatprep.subr.bf16.mxu0 0
        %2036 = vmatpush1.bf16.xpose.msra.mxu0 0
        %2037 = vmatprep.subr.bf16.mxu0 0
        %2038 = vmatpush1.bf16.xpose.msra.mxu0 0
        %2039 = vmatprep.subr.bf16.mxu0 0
        %2040 = vmatpush1.bf16.xpose.msra.mxu0 0
        %2041 = vmatprep.subr.bf16.mxu0 0
        %2042 = vmatpush1.bf16.xpose.msra.mxu0 0
        %2043 = vmatprep.subr.bf16.mxu0 0
        %2044 = vmatpush1.bf16.xpose.msra.mxu0 0
        %2045 = vmatprep.subr.bf16.mxu0 0
        %2046 = vmatpush1.bf16.xpose.msra.mxu0 0
        %2047 = vmatprep.subr.bf16.mxu0 0
        %2048 = vmatpush1.bf16.xpose.msra.mxu0 0
        %2049 = vmatprep.subr.bf16.mxu0 0
        %2050 = vmatpush1.bf16.xpose.msra.mxu0 0
        %2051 = vmatprep.subr.bf16.mxu0 0
        %2052 = vmatpush1.bf16.xpose.msra.mxu0 0
        %2053 = vmatprep.mubr.bf16.mxu0 0
        %2054 = vmatmul.mubr.bf16.gmra.mrb[0].mxu0 %v2016
        %v2055 = vpop.f32.mrb[0].mxu0
        %v2056 = vadd.f32 0.0, %v2055
        %v2057 = vpop.f32.mrb[0].mxu0
        %v2058 = vpop.f32.mrb[0].mxu0
        %v2059 = vpop.f32.mrb[0].mxu0
        %2060 = vdwg.mxu0
        %v2062 = vsel %vm2014, %v1437, 0
        %v2065 = vsel %vm2014, %v1716, 0
        %2067 = vmatprep.subr.bf16.mxu0 0
        %2068 = vmatpush1.bf16.xpose.msra.mxu0 %v2065
        %2069 = vmatprep.subr.bf16.mxu0 0
        %2070 = vmatpush1.bf16.xpose.msra.mxu0 0
        %2071 = vmatprep.subr.bf16.mxu0 0
        %2072 = vmatpush1.bf16.xpose.msra.mxu0 0
        %2073 = vmatprep.subr.bf16.mxu0 0
        %2074 = vmatpush1.bf16.xpose.msra.mxu0 0
        %2075 = vmatprep.subr.bf16.mxu0 0
        %2076 = vmatpush1.bf16.xpose.msra.mxu0 0
        %2077 = vmatprep.subr.bf16.mxu0 0
        %2078 = vmatpush1.bf16.xpose.msra.mxu0 0
        %2079 = vmatprep.subr.bf16.mxu0 0
        %2080 = vmatpush1.bf16.xpose.msra.mxu0 0
        %2081 = vmatprep.subr.bf16.mxu0 0
        %2082 = vmatpush1.bf16.xpose.msra.mxu0 0
        %2083 = vmatprep.subr.bf16.mxu0 0
        %2084 = vmatpush1.bf16.xpose.msra.mxu0 0
        %2085 = vmatprep.subr.bf16.mxu0 0
        %2086 = vmatpush1.bf16.xpose.msra.mxu0 0
        %2087 = vmatprep.subr.bf16.mxu0 0
        %2088 = vmatpush1.bf16.xpose.msra.mxu0 0
        %2089 = vmatprep.subr.bf16.mxu0 0
        %2090 = vmatpush1.bf16.xpose.msra.mxu0 0
        %2091 = vmatprep.subr.bf16.mxu0 0
        %2092 = vmatpush1.bf16.xpose.msra.mxu0 0
        %2093 = vmatprep.subr.bf16.mxu0 0
        %2094 = vmatpush1.bf16.xpose.msra.mxu0 0
        %2095 = vmatprep.subr.bf16.mxu0 0
        %2096 = vmatpush1.bf16.xpose.msra.mxu0 0
        %2097 = vmatprep.subr.bf16.mxu0 0
        %2098 = vmatpush1.bf16.xpose.msra.mxu0 0
        %2099 = vmatprep.mubr.bf16.mxu0 0
        %2100 = vmatmul.mubr.bf16.gmra.mrb[0].mxu0 %v2062
        %v2101 = vpop.f32.mrb[0].mxu0
        %v2102 = vadd.f32 0.0, %v2101
        %v2103 = vpop.f32.mrb[0].mxu0
        %v2104 = vpop.f32.mrb[0].mxu0
        %v2105 = vpop.f32.mrb[0].mxu0
        %2106 = vdwg.mxu0
        %v2108 = vsel %vm2014, %v1440, 0
        %v2111 = vsel %vm2014, %v1719, 0
        %2113 = vmatprep.subr.bf16.mxu0 0
        %2114 = vmatpush1.bf16.xpose.msra.mxu0 %v2111
        %2115 = vmatprep.subr.bf16.mxu0 0
        %2116 = vmatpush1.bf16.xpose.msra.mxu0 0
        %2117 = vmatprep.subr.bf16.mxu0 0
        %2118 = vmatpush1.bf16.xpose.msra.mxu0 0
        %2119 = vmatprep.subr.bf16.mxu0 0
        %2120 = vmatpush1.bf16.xpose.msra.mxu0 0
        %2121 = vmatprep.subr.bf16.mxu0 0
        %2122 = vmatpush1.bf16.xpose.msra.mxu0 0
        %2123 = vmatprep.subr.bf16.mxu0 0
        %2124 = vmatpush1.bf16.xpose.msra.mxu0 0
        %2125 = vmatprep.subr.bf16.mxu0 0
        %2126 = vmatpush1.bf16.xpose.msra.mxu0 0
        %2127 = vmatprep.subr.bf16.mxu0 0
        %2128 = vmatpush1.bf16.xpose.msra.mxu0 0
        %2129 = vmatprep.subr.bf16.mxu0 0
        %2130 = vmatpush1.bf16.xpose.msra.mxu0 0
        %2131 = vmatprep.subr.bf16.mxu0 0
        %2132 = vmatpush1.bf16.xpose.msra.mxu0 0
        %2133 = vmatprep.subr.bf16.mxu0 0
        %2134 = vmatpush1.bf16.xpose.msra.mxu0 0
        %2135 = vmatprep.subr.bf16.mxu0 0
        %2136 = vmatpush1.bf16.xpose.msra.mxu0 0
        %2137 = vmatprep.subr.bf16.mxu0 0
        %2138 = vmatpush1.bf16.xpose.msra.mxu0 0
        %2139 = vmatprep.subr.bf16.mxu0 0
        %2140 = vmatpush1.bf16.xpose.msra.mxu0 0
        %2141 = vmatprep.subr.bf16.mxu0 0
        %2142 = vmatpush1.bf16.xpose.msra.mxu0 0
        %2143 = vmatprep.subr.bf16.mxu0 0
        %2144 = vmatpush1.bf16.xpose.msra.mxu0 0
        %2145 = vmatprep.mubr.bf16.mxu0 0
        %2146 = vmatmul.mubr.bf16.gmra.mrb[0].mxu0 %v2108
        %v2147 = vpop.f32.mrb[0].mxu0
        %v2148 = vadd.f32 0.0, %v2147
        %v2149 = vpop.f32.mrb[0].mxu0
        %v2150 = vpop.f32.mrb[0].mxu0
        %v2151 = vpop.f32.mrb[0].mxu0
        %2152 = vdwg.mxu0
        %v2154 = vsel %vm2014, %v1443, 0
        %v2157 = vsel %vm2014, %v1722, 0
        %2159 = vmatprep.subr.bf16.mxu0 0
        %2160 = vmatpush1.bf16.xpose.msra.mxu0 %v2157
        %2161 = vmatprep.subr.bf16.mxu0 0
        %2162 = vmatpush1.bf16.xpose.msra.mxu0 0
        %2163 = vmatprep.subr.bf16.mxu0 0
        %2164 = vmatpush1.bf16.xpose.msra.mxu0 0
        %2165 = vmatprep.subr.bf16.mxu0 0
        %2166 = vmatpush1.bf16.xpose.msra.mxu0 0
        %2167 = vmatprep.subr.bf16.mxu0 0
        %2168 = vmatpush1.bf16.xpose.msra.mxu0 0
        %2169 = vmatprep.subr.bf16.mxu0 0
        %2170 = vmatpush1.bf16.xpose.msra.mxu0 0
        %2171 = vmatprep.subr.bf16.mxu0 0
        %2172 = vmatpush1.bf16.xpose.msra.mxu0 0
        %2173 = vmatprep.subr.bf16.mxu0 0
        %2174 = vmatpush1.bf16.xpose.msra.mxu0 0
        %2175 = vmatprep.subr.bf16.mxu0 0
        %2176 = vmatpush1.bf16.xpose.msra.mxu0 0
        %2177 = vmatprep.subr.bf16.mxu0 0
        %2178 = vmatpush1.bf16.xpose.msra.mxu0 0
        %2179 = vmatprep.subr.bf16.mxu0 0
        %2180 = vmatpush1.bf16.xpose.msra.mxu0 0
        %2181 = vmatprep.subr.bf16.mxu0 0
        %2182 = vmatpush1.bf16.xpose.msra.mxu0 0
        %2183 = vmatprep.subr.bf16.mxu0 0
        %2184 = vmatpush1.bf16.xpose.msra.mxu0 0
        %2185 = vmatprep.subr.bf16.mxu0 0
        %2186 = vmatpush1.bf16.xpose.msra.mxu0 0
        %2187 = vmatprep.subr.bf16.mxu0 0
        %2188 = vmatpush1.bf16.xpose.msra.mxu0 0
        %2189 = vmatprep.subr.bf16.mxu0 0
        %2190 = vmatpush1.bf16.xpose.msra.mxu0 0
        %2191 = vmatprep.mubr.bf16.mxu0 0
        %2192 = vmatmul.mubr.bf16.gmra.mrb[0].mxu0 %v2154
        %v2193 = vpop.f32.mrb[0].mxu0
        %v2194 = vadd.f32 0.0, %v2193
        %v2195 = vpop.f32.mrb[0].mxu0
        %v2196 = vpop.f32.mrb[0].mxu0
        %v2197 = vpop.f32.mrb[0].mxu0
        %2198 = vdwg.mxu0
        %v2200 = vsel %vm2014, %v1446, 0
        %v2203 = vsel %vm2014, %v1725, 0
        %2205 = vmatprep.subr.bf16.mxu0 0
        %2206 = vmatpush1.bf16.xpose.msra.mxu0 %v2203
        %2207 = vmatprep.subr.bf16.mxu0 0
        %2208 = vmatpush1.bf16.xpose.msra.mxu0 0
        %2209 = vmatprep.subr.bf16.mxu0 0
        %2210 = vmatpush1.bf16.xpose.msra.mxu0 0
        %2211 = vmatprep.subr.bf16.mxu0 0
        %2212 = vmatpush1.bf16.xpose.msra.mxu0 0
        %2213 = vmatprep.subr.bf16.mxu0 0
        %2214 = vmatpush1.bf16.xpose.msra.mxu0 0
        %2215 = vmatprep.subr.bf16.mxu0 0
        %2216 = vmatpush1.bf16.xpose.msra.mxu0 0
        %2217 = vmatprep.subr.bf16.mxu0 0
        %2218 = vmatpush1.bf16.xpose.msra.mxu0 0
        %2219 = vmatprep.subr.bf16.mxu0 0
        %2220 = vmatpush1.bf16.xpose.msra.mxu0 0
        %2221 = vmatprep.subr.bf16.mxu0 0
        %2222 = vmatpush1.bf16.xpose.msra.mxu0 0
        %2223 = vmatprep.subr.bf16.mxu0 0
        %2224 = vmatpush1.bf16.xpose.msra.mxu0 0
        %2225 = vmatprep.subr.bf16.mxu0 0
        %2226 = vmatpush1.bf16.xpose.msra.mxu0 0
        %2227 = vmatprep.subr.bf16.mxu0 0
        %2228 = vmatpush1.bf16.xpose.msra.mxu0 0
        %2229 = vmatprep.subr.bf16.mxu0 0
        %2230 = vmatpush1.bf16.xpose.msra.mxu0 0
        %2231 = vmatprep.subr.bf16.mxu0 0
        %2232 = vmatpush1.bf16.xpose.msra.mxu0 0
        %2233 = vmatprep.subr.bf16.mxu0 0
        %2234 = vmatpush1.bf16.xpose.msra.mxu0 0
        %2235 = vmatprep.subr.bf16.mxu0 0
        %2236 = vmatpush1.bf16.xpose.msra.mxu0 0
        %2237 = vmatprep.mubr.bf16.mxu0 0
        %2238 = vmatmul.mubr.bf16.gmra.mrb[0].mxu0 %v2200
        %v2239 = vpop.f32.mrb[0].mxu0
        %v2240 = vadd.f32 0.0, %v2239
        %v2241 = vpop.f32.mrb[0].mxu0
        %v2242 = vpop.f32.mrb[0].mxu0
        %v2243 = vpop.f32.mrb[0].mxu0
        %2244 = vdwg.mxu0
        %v2246 = vsel %vm2014, %v1449, 0
        %v2249 = vsel %vm2014, %v1728, 0
        %2251 = vmatprep.subr.bf16.mxu0 0
        %2252 = vmatpush1.bf16.xpose.msra.mxu0 %v2249
        %2253 = vmatprep.subr.bf16.mxu0 0
        %2254 = vmatpush1.bf16.xpose.msra.mxu0 0
        %2255 = vmatprep.subr.bf16.mxu0 0
        %2256 = vmatpush1.bf16.xpose.msra.mxu0 0
        %2257 = vmatprep.subr.bf16.mxu0 0
        %2258 = vmatpush1.bf16.xpose.msra.mxu0 0
        %2259 = vmatprep.subr.bf16.mxu0 0
        %2260 = vmatpush1.bf16.xpose.msra.mxu0 0
        %2261 = vmatprep.subr.bf16.mxu0 0
        %2262 = vmatpush1.bf16.xpose.msra.mxu0 0
        %2263 = vmatprep.subr.bf16.mxu0 0
        %2264 = vmatpush1.bf16.xpose.msra.mxu0 0
        %2265 = vmatprep.subr.bf16.mxu0 0
        %2266 = vmatpush1.bf16.xpose.msra.mxu0 0
        %2267 = vmatprep.subr.bf16.mxu0 0
        %2268 = vmatpush1.bf16.xpose.msra.mxu0 0
        %2269 = vmatprep.subr.bf16.mxu0 0
        %2270 = vmatpush1.bf16.xpose.msra.mxu0 0
        %2271 = vmatprep.subr.bf16.mxu0 0
        %2272 = vmatpush1.bf16.xpose.msra.mxu0 0
        %2273 = vmatprep.subr.bf16.mxu0 0
        %2274 = vmatpush1.bf16.xpose.msra.mxu0 0
        %2275 = vmatprep.subr.bf16.mxu0 0
        %2276 = vmatpush1.bf16.xpose.msra.mxu0 0
        %2277 = vmatprep.subr.bf16.mxu0 0
        %2278 = vmatpush1.bf16.xpose.msra.mxu0 0
        %2279 = vmatprep.subr.bf16.mxu0 0
        %2280 = vmatpush1.bf16.xpose.msra.mxu0 0
        %2281 = vmatprep.subr.bf16.mxu0 0
        %2282 = vmatpush1.bf16.xpose.msra.mxu0 0
        %2283 = vmatprep.mubr.bf16.mxu0 0
        %2284 = vmatmul.mubr.bf16.gmra.mrb[0].mxu0 %v2246
        %v2285 = vpop.f32.mrb[0].mxu0
        %v2286 = vadd.f32 0.0, %v2285
        %v2287 = vpop.f32.mrb[0].mxu0
        %v2288 = vpop.f32.mrb[0].mxu0
        %v2289 = vpop.f32.mrb[0].mxu0
        %2290 = vdwg.mxu0
        %v2292 = vsel %vm2014, %v1452, 0
        %v2295 = vsel %vm2014, %v1731, 0
        %2297 = vmatprep.subr.bf16.mxu0 0
        %2298 = vmatpush1.bf16.xpose.msra.mxu0 %v2295
        %2299 = vmatprep.subr.bf16.mxu0 0
        %2300 = vmatpush1.bf16.xpose.msra.mxu0 0
        %2301 = vmatprep.subr.bf16.mxu0 0
        %2302 = vmatpush1.bf16.xpose.msra.mxu0 0
        %2303 = vmatprep.subr.bf16.mxu0 0
        %2304 = vmatpush1.bf16.xpose.msra.mxu0 0
        %2305 = vmatprep.subr.bf16.mxu0 0
        %2306 = vmatpush1.bf16.xpose.msra.mxu0 0
        %2307 = vmatprep.subr.bf16.mxu0 0
        %2308 = vmatpush1.bf16.xpose.msra.mxu0 0
        %2309 = vmatprep.subr.bf16.mxu0 0
        %2310 = vmatpush1.bf16.xpose.msra.mxu0 0
        %2311 = vmatprep.subr.bf16.mxu0 0
        %2312 = vmatpush1.bf16.xpose.msra.mxu0 0
        %2313 = vmatprep.subr.bf16.mxu0 0
        %2314 = vmatpush1.bf16.xpose.msra.mxu0 0
        %2315 = vmatprep.subr.bf16.mxu0 0
        %2316 = vmatpush1.bf16.xpose.msra.mxu0 0
        %2317 = vmatprep.subr.bf16.mxu0 0
        %2318 = vmatpush1.bf16.xpose.msra.mxu0 0
        %2319 = vmatprep.subr.bf16.mxu0 0
        %2320 = vmatpush1.bf16.xpose.msra.mxu0 0
        %2321 = vmatprep.subr.bf16.mxu0 0
        %2322 = vmatpush1.bf16.xpose.msra.mxu0 0
        %2323 = vmatprep.subr.bf16.mxu0 0
        %2324 = vmatpush1.bf16.xpose.msra.mxu0 0
        %2325 = vmatprep.subr.bf16.mxu0 0
        %2326 = vmatpush1.bf16.xpose.msra.mxu0 0
        %2327 = vmatprep.subr.bf16.mxu0 0
        %2328 = vmatpush1.bf16.xpose.msra.mxu0 0
        %2329 = vmatprep.mubr.bf16.mxu0 0
        %2330 = vmatmul.mubr.bf16.gmra.mrb[0].mxu0 %v2292
        %v2331 = vpop.f32.mrb[0].mxu0
        %v2332 = vadd.f32 0.0, %v2331
        %v2333 = vpop.f32.mrb[0].mxu0
        %v2334 = vpop.f32.mrb[0].mxu0
        %v2335 = vpop.f32.mrb[0].mxu0
        %2336 = vdwg.mxu0
        %v2338 = vsel %vm2014, %v1455, 0
        %v2341 = vsel %vm2014, %v1734, 0
        %2343 = vmatprep.subr.bf16.mxu0 0
        %2344 = vmatpush1.bf16.xpose.msra.mxu0 %v2341
        %2345 = vmatprep.subr.bf16.mxu0 0
        %2346 = vmatpush1.bf16.xpose.msra.mxu0 0
        %2347 = vmatprep.subr.bf16.mxu0 0
        %2348 = vmatpush1.bf16.xpose.msra.mxu0 0
        %2349 = vmatprep.subr.bf16.mxu0 0
        %2350 = vmatpush1.bf16.xpose.msra.mxu0 0
        %2351 = vmatprep.subr.bf16.mxu0 0
        %2352 = vmatpush1.bf16.xpose.msra.mxu0 0
        %2353 = vmatprep.subr.bf16.mxu0 0
        %2354 = vmatpush1.bf16.xpose.msra.mxu0 0
        %2355 = vmatprep.subr.bf16.mxu0 0
        %2356 = vmatpush1.bf16.xpose.msra.mxu0 0
        %2357 = vmatprep.subr.bf16.mxu0 0
        %2358 = vmatpush1.bf16.xpose.msra.mxu0 0
        %2359 = vmatprep.subr.bf16.mxu0 0
        %2360 = vmatpush1.bf16.xpose.msra.mxu0 0
        %2361 = vmatprep.subr.bf16.mxu0 0
        %2362 = vmatpush1.bf16.xpose.msra.mxu0 0
        %2363 = vmatprep.subr.bf16.mxu0 0
        %2364 = vmatpush1.bf16.xpose.msra.mxu0 0
        %2365 = vmatprep.subr.bf16.mxu0 0
        %2366 = vmatpush1.bf16.xpose.msra.mxu0 0
        %2367 = vmatprep.subr.bf16.mxu0 0
        %2368 = vmatpush1.bf16.xpose.msra.mxu0 0
        %2369 = vmatprep.subr.bf16.mxu0 0
        %2370 = vmatpush1.bf16.xpose.msra.mxu0 0
        %2371 = vmatprep.subr.bf16.mxu0 0
        %2372 = vmatpush1.bf16.xpose.msra.mxu0 0
        %2373 = vmatprep.subr.bf16.mxu0 0
        %2374 = vmatpush1.bf16.xpose.msra.mxu0 0
        %2375 = vmatprep.mubr.bf16.mxu0 0
        %2376 = vmatmul.mubr.bf16.gmra.mrb[0].mxu0 %v2338
        %v2377 = vpop.f32.mrb[0].mxu0
        %v2378 = vadd.f32 0.0, %v2377
        %v2379 = vpop.f32.mrb[0].mxu0
        %v2380 = vpop.f32.mrb[0].mxu0
        %v2381 = vpop.f32.mrb[0].mxu0
        %2382 = vdwg.mxu0
        %v2383 = vmul.f32 %v2056, 0.17677669
        %v2384 = vmul.f32 %v2102, 0.17677669
        %v2385 = vmul.f32 %v2148, 0.17677669
        %v2386 = vmul.f32 %v2194, 0.17677669
        %v2387 = vmul.f32 %v2240, 0.17677669
        %v2388 = vmul.f32 %v2286, 0.17677669
        %v2389 = vmul.f32 %v2332, 0.17677669
        %v2390 = vmul.f32 %v2378, 0.17677669
        %v2391 = vlaneseq
        %v2392 = vshrl.u32 %v2391, 7
        %v2393 = vlaneseq
        %v2394 = vand.u32 %v2393, 127
        %vm2395 = vcmp.le.s32.totalorder %v2394, %v2392
        %s2396 = smul.u32 %s46, 2
        %s2397 = sld [smem:[#allocation4 + %s2396]]
        %v2398 = vstv %s2397
        %vm2399 = vcmp.lt.s32.totalorder %v2394, %v2398
        %vm2400 = vmand %vm2395, %vm2399
        %v2401 = vsel %vm2400, 0.0, -1e+30
        %s2402 = sadd.s32 %s2396, 1
        %s2403 = sld [smem:[#allocation4 + %s2402]]
        %v2404 = vstv %s2403
        %vm2405 = vcmp.lt.s32.totalorder %v2394, %v2404
        %vm2406 = vmand %vm2395, %vm2405
        %v2407 = vsel %vm2406, 0.0, -1e+30
        %v2408 = vadd.f32 %v2383, %v2401
        %v2409 = vadd.f32 %v2384, %v2401
        %v2410 = vadd.f32 %v2385, %v2401
        %v2411 = vadd.f32 %v2386, %v2401
        %v2412 = vadd.f32 %v2387, %v2407
        %v2413 = vadd.f32 %v2388, %v2407
        %v2414 = vadd.f32 %v2389, %v2407
        %v2415 = vadd.f32 %v2390, %v2407
        %vm2416 = vcmask 64512
        %v2417 = vsel %vm2416, %v2408, -inf
        %2418 = vmax.xlane.f32.xlu0 %v2417
        %v2419 = vpop.xlane.xlu0 %2418
        %v2420 = vsel %vm2416, %v2409, -inf
        %2421 = vmax.xlane.f32.xlu0 %v2420
        %v2422 = vpop.xlane.xlu0 %2421
        %v2423 = vsel %vm2416, %v2410, -inf
        %2424 = vmax.xlane.f32.xlu0 %v2423
        %v2425 = vpop.xlane.xlu0 %2424
        %v2426 = vsel %vm2416, %v2411, -inf
        %2427 = vmax.xlane.f32.xlu0 %v2426
        %v2428 = vpop.xlane.xlu0 %2427
        %v2429 = vsel %vm2416, %v2412, -inf
        %2430 = vmax.xlane.f32.xlu0 %v2429
        %v2431 = vpop.xlane.xlu0 %2430
        %v2432 = vsel %vm2416, %v2413, -inf
        %2433 = vmax.xlane.f32.xlu0 %v2432
        %v2434 = vpop.xlane.xlu0 %2433
        %v2435 = vsel %vm2416, %v2414, -inf
        %2436 = vmax.xlane.f32.xlu0 %v2435
        %v2437 = vpop.xlane.xlu0 %2436
        %v2438 = vsel %vm2416, %v2415, -inf
        %2439 = vmax.xlane.f32.xlu0 %v2438
        %v2440 = vpop.xlane.xlu0 %2439
        %v2441 = vsub.f32 %v2408, %v2419
        %v2442 = vsub.f32 %v2409, %v2422
        %v2443 = vsub.f32 %v2410, %v2425
        %v2444 = vsub.f32 %v2411, %v2428
        %v2445 = vsub.f32 %v2412, %v2431
        %v2446 = vsub.f32 %v2413, %v2434
        %v2447 = vsub.f32 %v2414, %v2437
        %v2448 = vsub.f32 %v2415, %v2440
        %v2449 = vmul.f32 %v2441, 1.442695
        %v2450 = vpow.pop %v2449
        %v2451 = vmul.f32 %v2442, 1.442695
        %v2452 = vpow.pop %v2451
        %v2453 = vmul.f32 %v2443, 1.442695
        %v2454 = vpow.pop %v2453
        %v2455 = vmul.f32 %v2444, 1.442695
        %v2456 = vpow.pop %v2455
        %v2457 = vmul.f32 %v2445, 1.442695
        %v2458 = vpow.pop %v2457
        %v2459 = vmul.f32 %v2446, 1.442695
        %v2460 = vpow.pop %v2459
        %v2461 = vmul.f32 %v2447, 1.442695
        %v2462 = vpow.pop %v2461
        %v2463 = vmul.f32 %v2448, 1.442695
        %v2464 = vpow.pop %v2463
        %v2465 = vsel %vm2416, %v2450, 0.0
        %2466 = vadd.xlane.f32.xlu0 %v2465
        %v2467 = vpop.xlane.xlu0 %2466
        %v2468 = vsel %vm2416, %v2452, 0.0
        %2469 = vadd.xlane.f32.xlu0 %v2468
        %v2470 = vpop.xlane.xlu0 %2469
        %v2471 = vsel %vm2416, %v2454, 0.0
        %2472 = vadd.xlane.f32.xlu0 %v2471
        %v2473 = vpop.xlane.xlu0 %2472
        %v2474 = vsel %vm2416, %v2456, 0.0
        %2475 = vadd.xlane.f32.xlu0 %v2474
        %v2476 = vpop.xlane.xlu0 %2475
        %v2477 = vsel %vm2416, %v2458, 0.0
        %2478 = vadd.xlane.f32.xlu0 %v2477
        %v2479 = vpop.xlane.xlu0 %2478
        %v2480 = vsel %vm2416, %v2460, 0.0
        %2481 = vadd.xlane.f32.xlu0 %v2480
        %v2482 = vpop.xlane.xlu0 %2481
        %v2483 = vsel %vm2416, %v2462, 0.0
        %2484 = vadd.xlane.f32.xlu0 %v2483
        %v2485 = vpop.xlane.xlu0 %2484
        %v2486 = vsel %vm2416, %v2464, 0.0
        %2487 = vadd.xlane.f32.xlu0 %v2486
        %v2488 = vpop.xlane.xlu0 %2487
        %v2489 = vrcp.pop %v2467
        %v2490 = vrcp.pop %v2470
        %v2491 = vrcp.pop %v2473
        %v2492 = vrcp.pop %v2476
        %v2493 = vrcp.pop %v2479
        %v2494 = vrcp.pop %v2482
        %v2495 = vrcp.pop %v2485
        %v2496 = vrcp.pop %v2488
        %v2497 = vmul.f32 %v2450, %v2489
        %v2498 = vmul.f32 %v2452, %v2490
        %v2499 = vmul.f32 %v2454, %v2491
        %v2500 = vmul.f32 %v2456, %v2492
        %v2501 = vmul.f32 %v2458, %v2493
        %v2502 = vmul.f32 %v2460, %v2494
        %v2503 = vmul.f32 %v2462, %v2495
        %v2504 = vmul.f32 %v2464, %v2496
        %v2505 = vpack.c.bf16 %v2497, %v2497
        %v2506 = vpack.c.bf16 %v2498, %v2498
        %v2507 = vpack.c.bf16 %v2499, %v2499
        %v2508 = vpack.c.bf16 %v2500, %v2500
        %v2509 = vpack.c.bf16 %v2501, %v2501
        %v2510 = vpack.c.bf16 %v2502, %v2502
        %v2511 = vpack.c.bf16 %v2503, %v2503
        %v2512 = vpack.c.bf16 %v2504, %v2504
        %v2514 = vsel %vm2416, %v2505, 0
        %vm2516 = vcmask 1043456
        %v2518 = vsel %vm2516, %v1992, 0
        %2520 = vmatprep.subr.bf16.mxu0 0
        %2521 = vmatpush1.bf16.msra.mxu0 %v2518
        %2522 = vmatprep.subr.bf16.mxu0 0
        %2523 = vmatpush1.bf16.msra.mxu0 0
        %2524 = vmatprep.subr.bf16.mxu0 0
        %2525 = vmatpush1.bf16.msra.mxu0 0
        %2526 = vmatprep.subr.bf16.mxu0 0
        %2527 = vmatpush1.bf16.msra.mxu0 0
        %2528 = vmatprep.subr.bf16.mxu0 0
        %2529 = vmatpush1.bf16.msra.mxu0 0
        %2530 = vmatprep.subr.bf16.mxu0 0
        %2531 = vmatpush1.bf16.msra.mxu0 0
        %2532 = vmatprep.subr.bf16.mxu0 0
        %2533 = vmatpush1.bf16.msra.mxu0 0
        %2534 = vmatprep.subr.bf16.mxu0 0
        %2535 = vmatpush1.bf16.msra.mxu0 0
        %2536 = vmatprep.subr.bf16.mxu0 0
        %2537 = vmatpush1.bf16.msra.mxu0 0
        %2538 = vmatprep.subr.bf16.mxu0 0
        %2539 = vmatpush1.bf16.msra.mxu0 0
        %2540 = vmatprep.subr.bf16.mxu0 0
        %2541 = vmatpush1.bf16.msra.mxu0 0
        %2542 = vmatprep.subr.bf16.mxu0 0
        %2543 = vmatpush1.bf16.msra.mxu0 0
        %2544 = vmatprep.subr.bf16.mxu0 0
        %2545 = vmatpush1.bf16.msra.mxu0 0
        %2546 = vmatprep.subr.bf16.mxu0 0
        %2547 = vmatpush1.bf16.msra.mxu0 0
        %2548 = vmatprep.subr.bf16.mxu0 0
        %2549 = vmatpush1.bf16.msra.mxu0 0
        %2550 = vmatprep.subr.bf16.mxu0 0
        %2551 = vmatpush1.bf16.msra.mxu0 0
        %2552 = vmatprep.mubr.bf16.mxu0 0
        %2553 = vmatmul.mubr.bf16.gmra.mrb[0].mxu0 %v2514
        %v2554 = vpop.f32.mrb[0].mxu0
        %v2555 = vadd.f32 0.0, %v2554
        %v2556 = vpop.f32.mrb[0].mxu0
        %v2557 = vpop.f32.mrb[0].mxu0
        %v2558 = vpop.f32.mrb[0].mxu0
        %2559 = vdwg.mxu0
        %v2561 = vsel %vm2416, %v2506, 0
        %v2564 = vsel %vm2516, %v1995, 0
        %2566 = vmatprep.subr.bf16.mxu0 0
        %2567 = vmatpush1.bf16.msra.mxu0 %v2564
        %2568 = vmatprep.subr.bf16.mxu0 0
        %2569 = vmatpush1.bf16.msra.mxu0 0
        %2570 = vmatprep.subr.bf16.mxu0 0
        %2571 = vmatpush1.bf16.msra.mxu0 0
        %2572 = vmatprep.subr.bf16.mxu0 0
        %2573 = vmatpush1.bf16.msra.mxu0 0
        %2574 = vmatprep.subr.bf16.mxu0 0
        %2575 = vmatpush1.bf16.msra.mxu0 0
        %2576 = vmatprep.subr.bf16.mxu0 0
        %2577 = vmatpush1.bf16.msra.mxu0 0
        %2578 = vmatprep.subr.bf16.mxu0 0
        %2579 = vmatpush1.bf16.msra.mxu0 0
        %2580 = vmatprep.subr.bf16.mxu0 0
        %2581 = vmatpush1.bf16.msra.mxu0 0
        %2582 = vmatprep.subr.bf16.mxu0 0
        %2583 = vmatpush1.bf16.msra.mxu0 0
        %2584 = vmatprep.subr.bf16.mxu0 0
        %2585 = vmatpush1.bf16.msra.mxu0 0
        %2586 = vmatprep.subr.bf16.mxu0 0
        %2587 = vmatpush1.bf16.msra.mxu0 0
        %2588 = vmatprep.subr.bf16.mxu0 0
        %2589 = vmatpush1.bf16.msra.mxu0 0
        %2590 = vmatprep.subr.bf16.mxu0 0
        %2591 = vmatpush1.bf16.msra.mxu0 0
        %2592 = vmatprep.subr.bf16.mxu0 0
        %2593 = vmatpush1.bf16.msra.mxu0 0
        %2594 = vmatprep.subr.bf16.mxu0 0
        %2595 = vmatpush1.bf16.msra.mxu0 0
        %2596 = vmatprep.subr.bf16.mxu0 0
        %2597 = vmatpush1.bf16.msra.mxu0 0
        %2598 = vmatprep.mubr.bf16.mxu0 0
        %2599 = vmatmul.mubr.bf16.gmra.mrb[0].mxu0 %v2561
        %v2600 = vpop.f32.mrb[0].mxu0
        %v2601 = vadd.f32 0.0, %v2600
        %v2602 = vpop.f32.mrb[0].mxu0
        %v2603 = vpop.f32.mrb[0].mxu0
        %v2604 = vpop.f32.mrb[0].mxu0
        %2605 = vdwg.mxu0
        %v2607 = vsel %vm2416, %v2507, 0
        %v2610 = vsel %vm2516, %v1998, 0
        %2612 = vmatprep.subr.bf16.mxu0 0
        %2613 = vmatpush1.bf16.msra.mxu0 %v2610
        %2614 = vmatprep.subr.bf16.mxu0 0
        %2615 = vmatpush1.bf16.msra.mxu0 0
        %2616 = vmatprep.subr.bf16.mxu0 0
        %2617 = vmatpush1.bf16.msra.mxu0 0
        %2618 = vmatprep.subr.bf16.mxu0 0
        %2619 = vmatpush1.bf16.msra.mxu0 0
        %2620 = vmatprep.subr.bf16.mxu0 0
        %2621 = vmatpush1.bf16.msra.mxu0 0
        %2622 = vmatprep.subr.bf16.mxu0 0
        %2623 = vmatpush1.bf16.msra.mxu0 0
        %2624 = vmatprep.subr.bf16.mxu0 0
        %2625 = vmatpush1.bf16.msra.mxu0 0
        %2626 = vmatprep.subr.bf16.mxu0 0
        %2627 = vmatpush1.bf16.msra.mxu0 0
        %2628 = vmatprep.subr.bf16.mxu0 0
        %2629 = vmatpush1.bf16.msra.mxu0 0
        %2630 = vmatprep.subr.bf16.mxu0 0
        %2631 = vmatpush1.bf16.msra.mxu0 0
        %2632 = vmatprep.subr.bf16.mxu0 0
        %2633 = vmatpush1.bf16.msra.mxu0 0
        %2634 = vmatprep.subr.bf16.mxu0 0
        %2635 = vmatpush1.bf16.msra.mxu0 0
        %2636 = vmatprep.subr.bf16.mxu0 0
        %2637 = vmatpush1.bf16.msra.mxu0 0
        %2638 = vmatprep.subr.bf16.mxu0 0
        %2639 = vmatpush1.bf16.msra.mxu0 0
        %2640 = vmatprep.subr.bf16.mxu0 0
        %2641 = vmatpush1.bf16.msra.mxu0 0
        %2642 = vmatprep.subr.bf16.mxu0 0
        %2643 = vmatpush1.bf16.msra.mxu0 0
        %2644 = vmatprep.mubr.bf16.mxu0 0
        %2645 = vmatmul.mubr.bf16.gmra.mrb[0].mxu0 %v2607
        %v2646 = vpop.f32.mrb[0].mxu0
        %v2647 = vadd.f32 0.0, %v2646
        %v2648 = vpop.f32.mrb[0].mxu0
        %v2649 = vpop.f32.mrb[0].mxu0
        %v2650 = vpop.f32.mrb[0].mxu0
        %2651 = vdwg.mxu0
        %v2653 = vsel %vm2416, %v2508, 0
        %v2656 = vsel %vm2516, %v2001, 0
        %2658 = vmatprep.subr.bf16.mxu0 0
        %2659 = vmatpush1.bf16.msra.mxu0 %v2656
        %2660 = vmatprep.subr.bf16.mxu0 0
        %2661 = vmatpush1.bf16.msra.mxu0 0
        %2662 = vmatprep.subr.bf16.mxu0 0
        %2663 = vmatpush1.bf16.msra.mxu0 0
        %2664 = vmatprep.subr.bf16.mxu0 0
        %2665 = vmatpush1.bf16.msra.mxu0 0
        %2666 = vmatprep.subr.bf16.mxu0 0
        %2667 = vmatpush1.bf16.msra.mxu0 0
        %2668 = vmatprep.subr.bf16.mxu0 0
        %2669 = vmatpush1.bf16.msra.mxu0 0
        %2670 = vmatprep.subr.bf16.mxu0 0
        %2671 = vmatpush1.bf16.msra.mxu0 0
        %2672 = vmatprep.subr.bf16.mxu0 0
        %2673 = vmatpush1.bf16.msra.mxu0 0
        %2674 = vmatprep.subr.bf16.mxu0 0
        %2675 = vmatpush1.bf16.msra.mxu0 0
        %2676 = vmatprep.subr.bf16.mxu0 0
        %2677 = vmatpush1.bf16.msra.mxu0 0
        %2678 = vmatprep.subr.bf16.mxu0 0
        %2679 = vmatpush1.bf16.msra.mxu0 0
        %2680 = vmatprep.subr.bf16.mxu0 0
        %2681 = vmatpush1.bf16.msra.mxu0 0
        %2682 = vmatprep.subr.bf16.mxu0 0
        %2683 = vmatpush1.bf16.msra.mxu0 0
        %2684 = vmatprep.subr.bf16.mxu0 0
        %2685 = vmatpush1.bf16.msra.mxu0 0
        %2686 = vmatprep.subr.bf16.mxu0 0
        %2687 = vmatpush1.bf16.msra.mxu0 0
        %2688 = vmatprep.subr.bf16.mxu0 0
        %2689 = vmatpush1.bf16.msra.mxu0 0
        %2690 = vmatprep.mubr.bf16.mxu0 0
        %2691 = vmatmul.mubr.bf16.gmra.mrb[0].mxu0 %v2653
        %v2692 = vpop.f32.mrb[0].mxu0
        %v2693 = vadd.f32 0.0, %v2692
        %v2694 = vpop.f32.mrb[0].mxu0
        %v2695 = vpop.f32.mrb[0].mxu0
        %v2696 = vpop.f32.mrb[0].mxu0
        %2697 = vdwg.mxu0
        %v2699 = vsel %vm2416, %v2509, 0
        %v2702 = vsel %vm2516, %v2004, 0
        %2704 = vmatprep.subr.bf16.mxu0 0
        %2705 = vmatpush1.bf16.msra.mxu0 %v2702
        %2706 = vmatprep.subr.bf16.mxu0 0
        %2707 = vmatpush1.bf16.msra.mxu0 0
        %2708 = vmatprep.subr.bf16.mxu0 0
        %2709 = vmatpush1.bf16.msra.mxu0 0
        %2710 = vmatprep.subr.bf16.mxu0 0
        %2711 = vmatpush1.bf16.msra.mxu0 0
        %2712 = vmatprep.subr.bf16.mxu0 0
        %2713 = vmatpush1.bf16.msra.mxu0 0
        %2714 = vmatprep.subr.bf16.mxu0 0
        %2715 = vmatpush1.bf16.msra.mxu0 0
        %2716 = vmatprep.subr.bf16.mxu0 0
        %2717 = vmatpush1.bf16.msra.mxu0 0
        %2718 = vmatprep.subr.bf16.mxu0 0
        %2719 = vmatpush1.bf16.msra.mxu0 0
        %2720 = vmatprep.subr.bf16.mxu0 0
        %2721 = vmatpush1.bf16.msra.mxu0 0
        %2722 = vmatprep.subr.bf16.mxu0 0
        %2723 = vmatpush1.bf16.msra.mxu0 0
        %2724 = vmatprep.subr.bf16.mxu0 0
        %2725 = vmatpush1.bf16.msra.mxu0 0
        %2726 = vmatprep.subr.bf16.mxu0 0
        %2727 = vmatpush1.bf16.msra.mxu0 0
        %2728 = vmatprep.subr.bf16.mxu0 0
        %2729 = vmatpush1.bf16.msra.mxu0 0
        %2730 = vmatprep.subr.bf16.mxu0 0
        %2731 = vmatpush1.bf16.msra.mxu0 0
        %2732 = vmatprep.subr.bf16.mxu0 0
        %2733 = vmatpush1.bf16.msra.mxu0 0
        %2734 = vmatprep.subr.bf16.mxu0 0
        %2735 = vmatpush1.bf16.msra.mxu0 0
        %2736 = vmatprep.mubr.bf16.mxu0 0
        %2737 = vmatmul.mubr.bf16.gmra.mrb[0].mxu0 %v2699
        %v2738 = vpop.f32.mrb[0].mxu0
        %v2739 = vadd.f32 0.0, %v2738
        %v2740 = vpop.f32.mrb[0].mxu0
        %v2741 = vpop.f32.mrb[0].mxu0
        %v2742 = vpop.f32.mrb[0].mxu0
        %2743 = vdwg.mxu0
        %v2745 = vsel %vm2416, %v2510, 0
        %v2748 = vsel %vm2516, %v2007, 0
        %2750 = vmatprep.subr.bf16.mxu0 0
        %2751 = vmatpush1.bf16.msra.mxu0 %v2748
        %2752 = vmatprep.subr.bf16.mxu0 0
        %2753 = vmatpush1.bf16.msra.mxu0 0
        %2754 = vmatprep.subr.bf16.mxu0 0
        %2755 = vmatpush1.bf16.msra.mxu0 0
        %2756 = vmatprep.subr.bf16.mxu0 0
        %2757 = vmatpush1.bf16.msra.mxu0 0
        %2758 = vmatprep.subr.bf16.mxu0 0
        %2759 = vmatpush1.bf16.msra.mxu0 0
        %2760 = vmatprep.subr.bf16.mxu0 0
        %2761 = vmatpush1.bf16.msra.mxu0 0
        %2762 = vmatprep.subr.bf16.mxu0 0
        %2763 = vmatpush1.bf16.msra.mxu0 0
        %2764 = vmatprep.subr.bf16.mxu0 0
        %2765 = vmatpush1.bf16.msra.mxu0 0
        %2766 = vmatprep.subr.bf16.mxu0 0
        %2767 = vmatpush1.bf16.msra.mxu0 0
        %2768 = vmatprep.subr.bf16.mxu0 0
        %2769 = vmatpush1.bf16.msra.mxu0 0
        %2770 = vmatprep.subr.bf16.mxu0 0
        %2771 = vmatpush1.bf16.msra.mxu0 0
        %2772 = vmatprep.subr.bf16.mxu0 0
        %2773 = vmatpush1.bf16.msra.mxu0 0
        %2774 = vmatprep.subr.bf16.mxu0 0
        %2775 = vmatpush1.bf16.msra.mxu0 0
        %2776 = vmatprep.subr.bf16.mxu0 0
        %2777 = vmatpush1.bf16.msra.mxu0 0
        %2778 = vmatprep.subr.bf16.mxu0 0
        %2779 = vmatpush1.bf16.msra.mxu0 0
        %2780 = vmatprep.subr.bf16.mxu0 0
        %2781 = vmatpush1.bf16.msra.mxu0 0
        %2782 = vmatprep.mubr.bf16.mxu0 0
        %2783 = vmatmul.mubr.bf16.gmra.mrb[0].mxu0 %v2745
        %v2784 = vpop.f32.mrb[0].mxu0
        %v2785 = vadd.f32 0.0, %v2784
        %v2786 = vpop.f32.mrb[0].mxu0
        %v2787 = vpop.f32.mrb[0].mxu0
        %v2788 = vpop.f32.mrb[0].mxu0
        %2789 = vdwg.mxu0
        %v2791 = vsel %vm2416, %v2511, 0
        %v2794 = vsel %vm2516, %v2010, 0
        %2796 = vmatprep.subr.bf16.mxu0 0
        %2797 = vmatpush1.bf16.msra.mxu0 %v2794
        %2798 = vmatprep.subr.bf16.mxu0 0
        %2799 = vmatpush1.bf16.msra.mxu0 0
        %2800 = vmatprep.subr.bf16.mxu0 0
        %2801 = vmatpush1.bf16.msra.mxu0 0
        %2802 = vmatprep.subr.bf16.mxu0 0
        %2803 = vmatpush1.bf16.msra.mxu0 0
        %2804 = vmatprep.subr.bf16.mxu0 0
        %2805 = vmatpush1.bf16.msra.mxu0 0
        %2806 = vmatprep.subr.bf16.mxu0 0
        %2807 = vmatpush1.bf16.msra.mxu0 0
        %2808 = vmatprep.subr.bf16.mxu0 0
        %2809 = vmatpush1.bf16.msra.mxu0 0
        %2810 = vmatprep.subr.bf16.mxu0 0
        %2811 = vmatpush1.bf16.msra.mxu0 0
        %2812 = vmatprep.subr.bf16.mxu0 0
        %2813 = vmatpush1.bf16.msra.mxu0 0
        %2814 = vmatprep.subr.bf16.mxu0 0
        %2815 = vmatpush1.bf16.msra.mxu0 0
        %2816 = vmatprep.subr.bf16.mxu0 0
        %2817 = vmatpush1.bf16.msra.mxu0 0
        %2818 = vmatprep.subr.bf16.mxu0 0
        %2819 = vmatpush1.bf16.msra.mxu0 0
        %2820 = vmatprep.subr.bf16.mxu0 0
        %2821 = vmatpush1.bf16.msra.mxu0 0
        %2822 = vmatprep.subr.bf16.mxu0 0
        %2823 = vmatpush1.bf16.msra.mxu0 0
        %2824 = vmatprep.subr.bf16.mxu0 0
        %2825 = vmatpush1.bf16.msra.mxu0 0
        %2826 = vmatprep.subr.bf16.mxu0 0
        %2827 = vmatpush1.bf16.msra.mxu0 0
        %2828 = vmatprep.mubr.bf16.mxu0 0
        %2829 = vmatmul.mubr.bf16.gmra.mrb[0].mxu0 %v2791
        %v2830 = vpop.f32.mrb[0].mxu0
        %v2831 = vadd.f32 0.0, %v2830
        %v2832 = vpop.f32.mrb[0].mxu0
        %v2833 = vpop.f32.mrb[0].mxu0
        %v2834 = vpop.f32.mrb[0].mxu0
        %2835 = vdwg.mxu0
        %v2837 = vsel %vm2416, %v2512, 0
        %v2840 = vsel %vm2516, %v2013, 0
        %2842 = vmatprep.subr.bf16.mxu0 0
        %2843 = vmatpush1.bf16.msra.mxu0 %v2840
        %2844 = vmatprep.subr.bf16.mxu0 0
        %2845 = vmatpush1.bf16.msra.mxu0 0
        %2846 = vmatprep.subr.bf16.mxu0 0
        %2847 = vmatpush1.bf16.msra.mxu0 0
        %2848 = vmatprep.subr.bf16.mxu0 0
        %2849 = vmatpush1.bf16.msra.mxu0 0
        %2850 = vmatprep.subr.bf16.mxu0 0
        %2851 = vmatpush1.bf16.msra.mxu0 0
        %2852 = vmatprep.subr.bf16.mxu0 0
        %2853 = vmatpush1.bf16.msra.mxu0 0
        %2854 = vmatprep.subr.bf16.mxu0 0
        %2855 = vmatpush1.bf16.msra.mxu0 0
        %2856 = vmatprep.subr.bf16.mxu0 0
        %2857 = vmatpush1.bf16.msra.mxu0 0
        %2858 = vmatprep.subr.bf16.mxu0 0
        %2859 = vmatpush1.bf16.msra.mxu0 0
        %2860 = vmatprep.subr.bf16.mxu0 0
        %2861 = vmatpush1.bf16.msra.mxu0 0
        %2862 = vmatprep.subr.bf16.mxu0 0
        %2863 = vmatpush1.bf16.msra.mxu0 0
        %2864 = vmatprep.subr.bf16.mxu0 0
        %2865 = vmatpush1.bf16.msra.mxu0 0
        %2866 = vmatprep.subr.bf16.mxu0 0
        %2867 = vmatpush1.bf16.msra.mxu0 0
        %2868 = vmatprep.subr.bf16.mxu0 0
        %2869 = vmatpush1.bf16.msra.mxu0 0
        %2870 = vmatprep.subr.bf16.mxu0 0
        %2871 = vmatpush1.bf16.msra.mxu0 0
        %2872 = vmatprep.subr.bf16.mxu0 0
        %2873 = vmatpush1.bf16.msra.mxu0 0
        %2874 = vmatprep.mubr.bf16.mxu0 0
        %2875 = vmatmul.mubr.bf16.gmra.mrb[0].mxu0 %v2837
        %v2876 = vpop.f32.mrb[0].mxu0
        %v2877 = vadd.f32 0.0, %v2876
        %v2878 = vpop.f32.mrb[0].mxu0
        %v2879 = vpop.f32.mrb[0].mxu0
        %v2880 = vpop.f32.mrb[0].mxu0
        %2881 = vdwg.mxu0
        %v2882 = vcombine.low %v2555, %v2647
        %v2883 = vcombine.high %v2555, %v2647
        %v2885 = vunpack.c.l.s4 1983009808
        %v2886 = vunpack.c.0.s8 %v2885
        %v2887 = vlaneseq
        %v2888 = vshrl.u32 %v2887, 7
        %v2889 = vsub.s32 %v2886, %v2888
        %v2890 = vrot.slane %v2882, %v2889
        %v2892 = vunpack.c.l.s4 1983009808
        %v2893 = vunpack.c.0.s8 %v2892
        %v2894 = vlaneseq
        %v2895 = vshrl.u32 %v2894, 7
        %v2896 = vsub.s32 %v2893, %v2895
        %v2897 = vrot.slane %v2883, %v2896
        %v2898 = vcombine.low %v2601, %v2693
        %v2899 = vcombine.high %v2601, %v2693
        %v2901 = vunpack.c.l.s4 1983009808
        %v2902 = vunpack.c.0.s8 %v2901
        %v2903 = vlaneseq
        %v2904 = vshrl.u32 %v2903, 7
        %v2905 = vsub.s32 %v2902, %v2904
        %v2906 = vrot.slane %v2898, %v2905
        %v2908 = vunpack.c.l.s4 1983009808
        %v2909 = vunpack.c.0.s8 %v2908
        %v2910 = vlaneseq
        %v2911 = vshrl.u32 %v2910, 7
        %v2912 = vsub.s32 %v2909, %v2911
        %v2913 = vrot.slane %v2899, %v2912
        %v2914 = vcombine.low %v2890, %v2906
        %v2915 = vcombine.high %v2890, %v2906
        %v2917 = vunpack.c.l.s4 1934713408
        %v2918 = vunpack.c.0.s8 %v2917
        %v2919 = vlaneseq
        %v2920 = vshrl.u32 %v2919, 7
        %v2921 = vsub.s32 %v2918, %v2920
        %v2922 = vrot.slane %v2914, %v2921
        %v2924 = vunpack.c.l.s4 1934713408
        %v2925 = vunpack.c.0.s8 %v2924
        %v2926 = vlaneseq
        %v2927 = vshrl.u32 %v2926, 7
        %v2928 = vsub.s32 %v2925, %v2927
        %v2929 = vrot.slane %v2915, %v2928
        %v2930 = vcombine.low %v2897, %v2913
        %v2931 = vcombine.high %v2897, %v2913
        %v2933 = vunpack.c.l.s4 1934713408
        %v2934 = vunpack.c.0.s8 %v2933
        %v2935 = vlaneseq
        %v2936 = vshrl.u32 %v2935, 7
        %v2937 = vsub.s32 %v2934, %v2936
        %v2938 = vrot.slane %v2930, %v2937
        %v2940 = vunpack.c.l.s4 1934713408
        %v2941 = vunpack.c.0.s8 %v2940
        %v2942 = vlaneseq
        %v2943 = vshrl.u32 %v2942, 7
        %v2944 = vsub.s32 %v2941, %v2943
        %v2945 = vrot.slane %v2931, %v2944
        %v2946 = vcombine.high %v2922, 0.0
        %v2947 = vcombine.high %v2929, 0.0
        %v2948 = vcombine.high %v2938, 0.0
        %v2949 = vcombine.high %v2945, 0.0
        %v2950 = vcombine.low %v2739, %v2831
        %v2951 = vcombine.high %v2739, %v2831
        %v2953 = vunpack.c.l.s4 1983009808
        %v2954 = vunpack.c.0.s8 %v2953
        %v2955 = vlaneseq
        %v2956 = vshrl.u32 %v2955, 7
        %v2957 = vsub.s32 %v2954, %v2956
        %v2958 = vrot.slane %v2950, %v2957
        %v2960 = vunpack.c.l.s4 1983009808
        %v2961 = vunpack.c.0.s8 %v2960
        %v2962 = vlaneseq
        %v2963 = vshrl.u32 %v2962, 7
        %v2964 = vsub.s32 %v2961, %v2963
        %v2965 = vrot.slane %v2951, %v2964
        %v2966 = vcombine.low %v2785, %v2877
        %v2967 = vcombine.high %v2785, %v2877
        %v2969 = vunpack.c.l.s4 1983009808
        %v2970 = vunpack.c.0.s8 %v2969
        %v2971 = vlaneseq
        %v2972 = vshrl.u32 %v2971, 7
        %v2973 = vsub.s32 %v2970, %v2972
        %v2974 = vrot.slane %v2966, %v2973
        %v2976 = vunpack.c.l.s4 1983009808
        %v2977 = vunpack.c.0.s8 %v2976
        %v2978 = vlaneseq
        %v2979 = vshrl.u32 %v2978, 7
        %v2980 = vsub.s32 %v2977, %v2979
        %v2981 = vrot.slane %v2967, %v2980
        %v2982 = vcombine.low %v2958, %v2974
        %v2983 = vcombine.high %v2958, %v2974
        %v2985 = vunpack.c.l.s4 1934713408
        %v2986 = vunpack.c.0.s8 %v2985
        %v2987 = vlaneseq
        %v2988 = vshrl.u32 %v2987, 7
        %v2989 = vsub.s32 %v2986, %v2988
        %v2990 = vrot.slane %v2982, %v2989
        %v2992 = vunpack.c.l.s4 1934713408
        %v2993 = vunpack.c.0.s8 %v2992
        %v2994 = vlaneseq
        %v2995 = vshrl.u32 %v2994, 7
        %v2996 = vsub.s32 %v2993, %v2995
        %v2997 = vrot.slane %v2983, %v2996
        %v2998 = vcombine.low %v2965, %v2981
        %v2999 = vcombine.high %v2965, %v2981
        %v3001 = vunpack.c.l.s4 1934713408
        %v3002 = vunpack.c.0.s8 %v3001
        %v3003 = vlaneseq
        %v3004 = vshrl.u32 %v3003, 7
        %v3005 = vsub.s32 %v3002, %v3004
        %v3006 = vrot.slane %v2998, %v3005
        %v3008 = vunpack.c.l.s4 1934713408
        %v3009 = vunpack.c.0.s8 %v3008
        %v3010 = vlaneseq
        %v3011 = vshrl.u32 %v3010, 7
        %v3012 = vsub.s32 %v3009, %v3011
        %v3013 = vrot.slane %v2999, %v3012
        %v3014 = vcombine.high %v2990, 0.0
        %v3015 = vcombine.high %v2997, 0.0
        %v3016 = vcombine.high %v3006, 0.0
        %v3017 = vcombine.high %v3013, 0.0
        %v3018 = vcombine.low %v2922, %v2929
        %v3020 = vunpack.c.l.s4 1983009808
        %v3021 = vunpack.c.0.s8 %v3020
        %v3022 = vlaneseq
        %v3023 = vshrl.u32 %v3022, 7
        %v3024 = vsub.s32 %v3021, %v3023
        %v3025 = vrot.slane %v3018, %v3024
        %v3026 = vcombine.low %v2946, %v2947
        %v3028 = vunpack.c.l.s4 1983009808
        %v3029 = vunpack.c.0.s8 %v3028
        %v3030 = vlaneseq
        %v3031 = vshrl.u32 %v3030, 7
        %v3032 = vsub.s32 %v3029, %v3031
        %v3033 = vrot.slane %v3026, %v3032
        %v3034 = vcombine.low %v2938, %v2945
        %v3036 = vunpack.c.l.s4 1983009808
        %v3037 = vunpack.c.0.s8 %v3036
        %v3038 = vlaneseq
        %v3039 = vshrl.u32 %v3038, 7
        %v3040 = vsub.s32 %v3037, %v3039
        %v3041 = vrot.slane %v3034, %v3040
        %v3042 = vcombine.low %v2948, %v2949
        %v3044 = vunpack.c.l.s4 1983009808
        %v3045 = vunpack.c.0.s8 %v3044
        %v3046 = vlaneseq
        %v3047 = vshrl.u32 %v3046, 7
        %v3048 = vsub.s32 %v3045, %v3047
        %v3049 = vrot.slane %v3042, %v3048
        %v3050 = vcombine.low %v3025, %v3033
        %v3051 = vcombine.high %v3025, %v3033
        %v3053 = vunpack.c.l.s4 1934713408
        %v3054 = vunpack.c.0.s8 %v3053
        %v3055 = vlaneseq
        %v3056 = vshrl.u32 %v3055, 7
        %v3057 = vsub.s32 %v3054, %v3056
        %v3058 = vrot.slane %v3050, %v3057
        %v3060 = vunpack.c.l.s4 1934713408
        %v3061 = vunpack.c.0.s8 %v3060
        %v3062 = vlaneseq
        %v3063 = vshrl.u32 %v3062, 7
        %v3064 = vsub.s32 %v3061, %v3063
        %v3065 = vrot.slane %v3051, %v3064
        %v3066 = vcombine.low %v3041, %v3049
        %v3067 = vcombine.high %v3041, %v3049
        %v3069 = vunpack.c.l.s4 1934713408
        %v3070 = vunpack.c.0.s8 %v3069
        %v3071 = vlaneseq
        %v3072 = vshrl.u32 %v3071, 7
        %v3073 = vsub.s32 %v3070, %v3072
        %v3074 = vrot.slane %v3066, %v3073
        %v3076 = vunpack.c.l.s4 1934713408
        %v3077 = vunpack.c.0.s8 %v3076
        %v3078 = vlaneseq
        %v3079 = vshrl.u32 %v3078, 7
        %v3080 = vsub.s32 %v3077, %v3079
        %v3081 = vrot.slane %v3067, %v3080
        %v3082 = vcombine.low %v3058, %v3074
        %v3083 = vcombine.high %v3058, %v3074
        %v3084 = vcombine.low %v3065, %v3081
        %v3085 = vcombine.high %v3065, %v3081
        %v3086 = vcombine.low %v2990, %v2997
        %v3088 = vunpack.c.l.s4 1983009808
        %v3089 = vunpack.c.0.s8 %v3088
        %v3090 = vlaneseq
        %v3091 = vshrl.u32 %v3090, 7
        %v3092 = vsub.s32 %v3089, %v3091
        %v3093 = vrot.slane %v3086, %v3092
        %v3094 = vcombine.low %v3014, %v3015
        %v3096 = vunpack.c.l.s4 1983009808
        %v3097 = vunpack.c.0.s8 %v3096
        %v3098 = vlaneseq
        %v3099 = vshrl.u32 %v3098, 7
        %v3100 = vsub.s32 %v3097, %v3099
        %v3101 = vrot.slane %v3094, %v3100
        %v3102 = vcombine.low %v3006, %v3013
        %v3104 = vunpack.c.l.s4 1983009808
        %v3105 = vunpack.c.0.s8 %v3104
        %v3106 = vlaneseq
        %v3107 = vshrl.u32 %v3106, 7
        %v3108 = vsub.s32 %v3105, %v3107
        %v3109 = vrot.slane %v3102, %v3108
        %v3110 = vcombine.low %v3016, %v3017
        %v3112 = vunpack.c.l.s4 1983009808
        %v3113 = vunpack.c.0.s8 %v3112
        %v3114 = vlaneseq
        %v3115 = vshrl.u32 %v3114, 7
        %v3116 = vsub.s32 %v3113, %v3115
        %v3117 = vrot.slane %v3110, %v3116
        %v3118 = vcombine.low %v3093, %v3101
        %v3119 = vcombine.high %v3093, %v3101
        %v3121 = vunpack.c.l.s4 1934713408
        %v3122 = vunpack.c.0.s8 %v3121
        %v3123 = vlaneseq
        %v3124 = vshrl.u32 %v3123, 7
        %v3125 = vsub.s32 %v3122, %v3124
        %v3126 = vrot.slane %v3118, %v3125
        %v3128 = vunpack.c.l.s4 1934713408
        %v3129 = vunpack.c.0.s8 %v3128
        %v3130 = vlaneseq
        %v3131 = vshrl.u32 %v3130, 7
        %v3132 = vsub.s32 %v3129, %v3131
        %v3133 = vrot.slane %v3119, %v3132
        %v3134 = vcombine.low %v3109, %v3117
        %v3135 = vcombine.high %v3109, %v3117
        %v3137 = vunpack.c.l.s4 1934713408
        %v3138 = vunpack.c.0.s8 %v3137
        %v3139 = vlaneseq
        %v3140 = vshrl.u32 %v3139, 7
        %v3141 = vsub.s32 %v3138, %v3140
        %v3142 = vrot.slane %v3134, %v3141
        %v3144 = vunpack.c.l.s4 1934713408
        %v3145 = vunpack.c.0.s8 %v3144
        %v3146 = vlaneseq
        %v3147 = vshrl.u32 %v3146, 7
        %v3148 = vsub.s32 %v3145, %v3147
        %v3149 = vrot.slane %v3135, %v3148
        %v3150 = vcombine.low %v3126, %v3142
        %v3151 = vcombine.high %v3126, %v3142
        %v3152 = vcombine.low %v3133, %v3149
        %v3153 = vcombine.high %v3133, %v3149
        %3156 = vrot.lane.b32.xlu0 %v3083, 32
        %v3157 = vpop.permute.xlu0 %3156
        %3158 = vrot.lane.b32.xlu0 %v3151, 32
        %v3159 = vpop.permute.xlu0 %3158
        %3164 = vrot.lane.b32.xlu0 %v3084, 64
        %v3165 = vpop.permute.xlu0 %3164
        %3166 = vrot.lane.b32.xlu0 %v3152, 64
        %v3167 = vpop.permute.xlu0 %3166
        %3172 = vrot.lane.b32.xlu0 %v3085, 96
        %v3173 = vpop.permute.xlu0 %3172
        %3174 = vrot.lane.b32.xlu0 %v3153, 96
        %v3175 = vpop.permute.xlu0 %3174
        %v3178 = vsel %vm2014, %v3082, %v3157
        %v3179 = vsel %vm2014, %v3150, %v3159
        %vm3180 = vcmask 523264
        %v3181 = vsel %vm3180, %v3178, %v3165
        %v3182 = vsel %vm3180, %v3179, %v3167
        %vm3183 = vcmask 785408
        %v3184 = vsel %vm3183, %v3181, %v3173
        %v3185 = vsel %vm3183, %v3182, %v3175
        %v3186 = vpack.c.bf16 %v3185, %v3184
        %v3187 = vld [vmem:[%s713] sm:$0xf]
        %v3188 = vld [vmem:[%s713 + $0x4] sm:$0xf]
        %v3189 = vld [vmem:[%s713 + $0x8] sm:$0xf]
        %v3190 = vld [vmem:[%s713 + $0xc] sm:$0xf]
        %v3191 = vld [vmem:[%s713 + $0x10] sm:$0xf]
        %v3192 = vld [vmem:[%s713 + $0x14] sm:$0xf]
        %v3193 = vld [vmem:[%s713 + $0x18] sm:$0xf]
        %v3194 = vld [vmem:[%s713 + $0x1c] sm:$0xf]
        %v3195 = vld [vmem:[%s713 + $0x20] sm:$0xf]
        %v3196 = vld [vmem:[%s713 + $0x24] sm:$0xf]
        %v3197 = vld [vmem:[%s713 + $0x28] sm:$0xf]
        %v3198 = vld [vmem:[%s713 + $0x2c] sm:$0xf]
        %v3199 = vld [vmem:[%s713 + $0x30] sm:$0xf]
        %v3200 = vld [vmem:[%s713 + $0x34] sm:$0xf]
        %v3201 = vld [vmem:[%s713 + $0x38] sm:$0xf]
        %v3202 = vld [vmem:[%s713 + $0x3c] sm:$0xf]
        %v3203 = vld [vmem:[%s836] sm:$0x1]
        %v3205 = vlaneseq
        %v3206 = vshrl.u32 %v3205, 7
        %v3207 = vsub.s32 0, %v3206
        %v3208 = vrot.slane %v3203, %v3207
        %v3226 = vunpack.c.l.b16 %v3187
        %v3227 = vunpack.c.l.b16 %v3188
        %v3228 = vunpack.c.l.b16 %v3189
        %v3229 = vunpack.c.l.b16 %v3190
        %v3230 = vunpack.c.l.b16 %v3191
        %v3231 = vunpack.c.l.b16 %v3192
        %v3232 = vunpack.c.l.b16 %v3193
        %v3233 = vunpack.c.l.b16 %v3194
        %v3234 = vunpack.c.l.b16 %v3195
        %v3235 = vunpack.c.l.b16 %v3196
        %v3236 = vunpack.c.l.b16 %v3197
        %v3237 = vunpack.c.l.b16 %v3198
        %v3238 = vunpack.c.l.b16 %v3199
        %v3239 = vunpack.c.l.b16 %v3200
        %v3240 = vunpack.c.l.b16 %v3201
        %v3241 = vunpack.c.l.b16 %v3202
        %v3242 = vpack.c.b16 %v3227, %v3226
        %v3243 = vpack.c.b16 %v3229, %v3228
        %v3244 = vpack.c.b16 %v3231, %v3230
        %v3245 = vpack.c.b16 %v3233, %v3232
        %v3246 = vpack.c.b16 %v3235, %v3234
        %v3247 = vpack.c.b16 %v3237, %v3236
        %v3248 = vpack.c.b16 %v3239, %v3238
        %v3249 = vpack.c.b16 %v3241, %v3240
        %3258 = vmatprep.subr.bf16.mxu0 0
        %3259 = vmatpush1.bf16.msra.mxu0 %v3242
        %3260 = vmatprep.subr.bf16.mxu0 0
        %3261 = vmatpush1.bf16.msra.mxu0 %v3243
        %3262 = vmatprep.subr.bf16.mxu0 0
        %3263 = vmatpush1.bf16.msra.mxu0 %v3244
        %3264 = vmatprep.subr.bf16.mxu0 0
        %3265 = vmatpush1.bf16.msra.mxu0 %v3245
        %3266 = vmatprep.subr.bf16.mxu0 0
        %3267 = vmatpush1.bf16.msra.mxu0 %v3246
        %3268 = vmatprep.subr.bf16.mxu0 0
        %3269 = vmatpush1.bf16.msra.mxu0 %v3247
        %3270 = vmatprep.subr.bf16.mxu0 0
        %3271 = vmatpush1.bf16.msra.mxu0 %v3248
        %3272 = vmatprep.subr.bf16.mxu0 0
        %3273 = vmatpush1.bf16.msra.mxu0 %v3249
        %3274 = vmatprep.subr.bf16.mxu0 0
        %3275 = vmatpush1.bf16.msra.mxu0 0
        %3276 = vmatprep.subr.bf16.mxu0 0
        %3277 = vmatpush1.bf16.msra.mxu0 0
        %3278 = vmatprep.subr.bf16.mxu0 0
        %3279 = vmatpush1.bf16.msra.mxu0 0
        %3280 = vmatprep.subr.bf16.mxu0 0
        %3281 = vmatpush1.bf16.msra.mxu0 0
        %3282 = vmatprep.subr.bf16.mxu0 0
        %3283 = vmatpush1.bf16.msra.mxu0 0
        %3284 = vmatprep.subr.bf16.mxu0 0
        %3285 = vmatpush1.bf16.msra.mxu0 0
        %3286 = vmatprep.subr.bf16.mxu0 0
        %3287 = vmatpush1.bf16.msra.mxu0 0
        %3288 = vmatprep.subr.bf16.mxu0 0
        %3289 = vmatpush1.bf16.msra.mxu0 0
        %3290 = vmatprep.mubr.bf16.mxu0 0
        %3291 = vmatmul.mubr.bf16.gmra.mrb[0].mxu0 %v3186
        %v3292 = vpop.f32.mrb[0].mxu0
        %v3293 = vadd.f32 %v3208, %v3292
        %v3294 = vpop.f32.mrb[0].mxu0
        %v3295 = vpop.f32.mrb[0].mxu0
        %v3296 = vadd.f32 %v3208, %v3295
        %v3297 = vpop.f32.mrb[0].mxu0
        %3298 = vdwg.mxu0
        %v3299 = vmul.f32 %v3293, 0.70710677
        %v3300 = vmul.f32 %v3296, 0.70710677
        %v3301 = vadd.f32 %v860, %v3299
        %v3302 = vadd.f32 %v861, %v3300
        %v3303 = vld [vmem:[%s839] sm:$0x1]
        %v3304 = vld [vmem:[%s842] sm:$0x1]
        %3305 = vadd.xlane.f32.xlu0 %v3301
        %v3306 = vpop.xlane.xlu0 %3305
        %3307 = vadd.xlane.f32.xlu0 %v3302
        %v3308 = vpop.xlane.xlu0 %3307
        %v3309 = vmul.f32 %v3306, %v868
        %v3310 = vmul.f32 %v3308, %v868
        %v3311 = vsub.f32 %v3301, %v3309
        %v3312 = vsub.f32 %v3302, %v3310
        %v3313 = vmul.f32 %v3311, %v3311
        %v3314 = vmul.f32 %v3312, %v3312
        %3315 = vadd.xlane.f32.xlu0 %v3313
        %v3316 = vpop.xlane.xlu0 %3315
        %3317 = vadd.xlane.f32.xlu0 %v3314
        %v3318 = vpop.xlane.xlu0 %3317
        %v3319 = vmul.f32 %v3316, %v868
        %v3320 = vmul.f32 %v3318, %v868
        %v3321 = vadd.f32 %v3319, 1e-05
        %v3322 = vadd.f32 %v3320, 1e-05
        %v3323 = vrsqrt.pop %v3321
        %v3324 = vrsqrt.pop %v3322
        %v3325 = vmul.f32 %v3311, %v3323
        %v3326 = vmul.f32 %v3312, %v3324
        %v3328 = vlaneseq
        %v3329 = vshrl.u32 %v3328, 7
        %v3330 = vsub.s32 0, %v3329
        %v3331 = vrot.slane %v3303, %v3330
        %v3333 = vmul.f32 %v3325, %v3331
        %v3334 = vmul.f32 %v3326, %v3331
        %v3336 = vlaneseq
        %v3337 = vshrl.u32 %v3336, 7
        %v3338 = vsub.s32 0, %v3337
        %v3339 = vrot.slane %v3304, %v3338
        %v3341 = vadd.f32 %v3333, %v3339
        %v3342 = vadd.f32 %v3334, %v3339
        %v3343 = vpack.c.bf16 %v3342, %v3341
        %v3344 = vld [vmem:[%s722] sm:$0xff]
        %v3345 = vld [vmem:[%s722 + $0x8] sm:$0xff]
        %v3346 = vld [vmem:[%s722 + $0x10] sm:$0xff]
        %v3347 = vld [vmem:[%s722 + $0x18] sm:$0xff]
        %v3348 = vld [vmem:[%s722 + $0x20] sm:$0xff]
        %v3349 = vld [vmem:[%s722 + $0x28] sm:$0xff]
        %v3350 = vld [vmem:[%s722 + $0x30] sm:$0xff]
        %v3351 = vld [vmem:[%s722 + $0x38] sm:$0xff]
        %v3352 = vld [vmem:[%s722 + $0x40] sm:$0xff]
        %v3353 = vld [vmem:[%s722 + $0x48] sm:$0xff]
        %v3354 = vld [vmem:[%s722 + $0x50] sm:$0xff]
        %v3355 = vld [vmem:[%s722 + $0x58] sm:$0xff]
        %v3356 = vld [vmem:[%s722 + $0x60] sm:$0xff]
        %v3357 = vld [vmem:[%s722 + $0x68] sm:$0xff]
        %v3358 = vld [vmem:[%s722 + $0x70] sm:$0xff]
        %v3359 = vld [vmem:[%s722 + $0x78] sm:$0xff]
        %v3360 = vld [vmem:[%s846] sm:$0x3]
        %v3362 = vlaneseq
        %v3363 = vshrl.u32 %v3362, 7
        %v3364 = vsub.s32 0, %v3363
        %v3365 = vrot.slane %v3360, %v3364
        %v3366 = vlaneseq
        %v3367 = vshrl.u32 %v3366, 7
        %v3368 = vsub.s32 1, %v3367
        %v3369 = vrot.slane %v3360, %v3368
        %v3388 = vunpack.c.l.b16 %v3344
        %v3389 = vunpack.c.h.b16 %v3344
        %v3390 = vunpack.c.l.b16 %v3345
        %v3391 = vunpack.c.h.b16 %v3345
        %v3392 = vunpack.c.l.b16 %v3346
        %v3393 = vunpack.c.h.b16 %v3346
        %v3394 = vunpack.c.l.b16 %v3347
        %v3395 = vunpack.c.h.b16 %v3347
        %v3396 = vunpack.c.l.b16 %v3348
        %v3397 = vunpack.c.h.b16 %v3348
        %v3398 = vunpack.c.l.b16 %v3349
        %v3399 = vunpack.c.h.b16 %v3349
        %v3400 = vunpack.c.l.b16 %v3350
        %v3401 = vunpack.c.h.b16 %v3350
        %v3402 = vunpack.c.l.b16 %v3351
        %v3403 = vunpack.c.h.b16 %v3351
        %v3404 = vunpack.c.l.b16 %v3352
        %v3405 = vunpack.c.h.b16 %v3352
        %v3406 = vunpack.c.l.b16 %v3353
        %v3407 = vunpack.c.h.b16 %v3353
        %v3408 = vunpack.c.l.b16 %v3354
        %v3409 = vunpack.c.h.b16 %v3354
        %v3410 = vunpack.c.l.b16 %v3355
        %v3411 = vunpack.c.h.b16 %v3355
        %v3412 = vunpack.c.l.b16 %v3356
        %v3413 = vunpack.c.h.b16 %v3356
        %v3414 = vunpack.c.l.b16 %v3357
        %v3415 = vunpack.c.h.b16 %v3357
        %v3416 = vunpack.c.l.b16 %v3358
        %v3417 = vunpack.c.h.b16 %v3358
        %v3418 = vunpack.c.l.b16 %v3359
        %v3419 = vunpack.c.h.b16 %v3359
        %v3420 = vpack.c.b16 %v3390, %v3388
        %v3421 = vpack.c.b16 %v3391, %v3389
        %v3422 = vpack.c.b16 %v3394, %v3392
        %v3423 = vpack.c.b16 %v3395, %v3393
        %v3424 = vpack.c.b16 %v3398, %v3396
        %v3425 = vpack.c.b16 %v3399, %v3397
        %v3426 = vpack.c.b16 %v3402, %v3400
        %v3427 = vpack.c.b16 %v3403, %v3401
        %v3428 = vpack.c.b16 %v3406, %v3404
        %v3429 = vpack.c.b16 %v3407, %v3405
        %v3430 = vpack.c.b16 %v3410, %v3408
        %v3431 = vpack.c.b16 %v3411, %v3409
        %v3432 = vpack.c.b16 %v3414, %v3412
        %v3433 = vpack.c.b16 %v3415, %v3413
        %v3434 = vpack.c.b16 %v3418, %v3416
        %v3435 = vpack.c.b16 %v3419, %v3417
        %3452 = vmatprep.subr.bf16.mxu0 %v3421
        %3453 = vmatpush1.bf16.msra.mxu0 %v3420
        %3454 = vmatprep.subr.bf16.mxu0 %v3423
        %3455 = vmatpush1.bf16.msra.mxu0 %v3422
        %3456 = vmatprep.subr.bf16.mxu0 %v3425
        %3457 = vmatpush1.bf16.msra.mxu0 %v3424
        %3458 = vmatprep.subr.bf16.mxu0 %v3427
        %3459 = vmatpush1.bf16.msra.mxu0 %v3426
        %3460 = vmatprep.subr.bf16.mxu0 %v3429
        %3461 = vmatpush1.bf16.msra.mxu0 %v3428
        %3462 = vmatprep.subr.bf16.mxu0 %v3431
        %3463 = vmatpush1.bf16.msra.mxu0 %v3430
        %3464 = vmatprep.subr.bf16.mxu0 %v3433
        %3465 = vmatpush1.bf16.msra.mxu0 %v3432
        %3466 = vmatprep.subr.bf16.mxu0 %v3435
        %3467 = vmatpush1.bf16.msra.mxu0 %v3434
        %3468 = vmatprep.subr.bf16.mxu0 0
        %3469 = vmatpush1.bf16.msra.mxu0 0
        %3470 = vmatprep.subr.bf16.mxu0 0
        %3471 = vmatpush1.bf16.msra.mxu0 0
        %3472 = vmatprep.subr.bf16.mxu0 0
        %3473 = vmatpush1.bf16.msra.mxu0 0
        %3474 = vmatprep.subr.bf16.mxu0 0
        %3475 = vmatpush1.bf16.msra.mxu0 0
        %3476 = vmatprep.subr.bf16.mxu0 0
        %3477 = vmatpush1.bf16.msra.mxu0 0
        %3478 = vmatprep.subr.bf16.mxu0 0
        %3479 = vmatpush1.bf16.msra.mxu0 0
        %3480 = vmatprep.subr.bf16.mxu0 0
        %3481 = vmatpush1.bf16.msra.mxu0 0
        %3482 = vmatprep.subr.bf16.mxu0 0
        %3483 = vmatpush1.bf16.msra.mxu0 0
        %3484 = vmatprep.mubr.bf16.mxu0 0
        %3485 = vmatmul.mubr.bf16.gmra.mrb[0].mxu0 %v3343
        %v3486 = vpop.f32.mrb[0].mxu0
        %v3487 = vadd.f32 %v3365, %v3486
        %v3488 = vpop.f32.mrb[0].mxu0
        %v3489 = vadd.f32 %v3369, %v3488
        %v3490 = vpop.f32.mrb[0].mxu0
        %v3491 = vadd.f32 %v3365, %v3490
        %v3492 = vpop.f32.mrb[0].mxu0
        %v3493 = vadd.f32 %v3369, %v3492
        %3494 = vdwg.mxu0
        %v3495 = vmul.f32 %v3487, 0.5
        %v3496 = vmul.f32 %v3489, 0.5
        %v3497 = vmul.f32 %v3491, 0.5
        %v3498 = vmul.f32 %v3493, 0.5
        %v3499 = vmul.f32 %v3487, 0.70710677
        %v3500 = vmul.f32 %v3489, 0.70710677
        %v3501 = vmul.f32 %v3491, 0.70710677
        %v3502 = vmul.f32 %v3493, 0.70710677
        %v3503 = verf.f32.pop %v3499
        %v3504 = verf.f32.pop %v3500
        %v3505 = verf.f32.pop %v3501
        %v3506 = verf.f32.pop %v3502
        %v3507 = vadd.f32 %v3503, 1.0
        %v3508 = vadd.f32 %v3504, 1.0
        %v3509 = vadd.f32 %v3505, 1.0
        %v3510 = vadd.f32 %v3506, 1.0
        %v3511 = vmul.f32 %v3495, %v3507
        %v3512 = vmul.f32 %v3496, %v3508
        %v3513 = vmul.f32 %v3497, %v3509
        %v3514 = vmul.f32 %v3498, %v3510
        %v3515 = vpack.c.bf16 %v3513, %v3511
        %v3516 = vpack.c.bf16 %v3514, %v3512
        %v3517 = vld [vmem:[%s731] sm:$0xf]
        %v3518 = vld [vmem:[%s731 + $0x4] sm:$0xf]
        %v3519 = vld [vmem:[%s731 + $0x8] sm:$0xf]
        %v3520 = vld [vmem:[%s731 + $0xc] sm:$0xf]
        %v3521 = vld [vmem:[%s731 + $0x10] sm:$0xf]
        %v3522 = vld [vmem:[%s731 + $0x14] sm:$0xf]
        %v3523 = vld [vmem:[%s731 + $0x18] sm:$0xf]
        %v3524 = vld [vmem:[%s731 + $0x1c] sm:$0xf]
        %v3525 = vld [vmem:[%s731 + $0x20] sm:$0xf]
        %v3526 = vld [vmem:[%s731 + $0x24] sm:$0xf]
        %v3527 = vld [vmem:[%s731 + $0x28] sm:$0xf]
        %v3528 = vld [vmem:[%s731 + $0x2c] sm:$0xf]
        %v3529 = vld [vmem:[%s731 + $0x30] sm:$0xf]
        %v3530 = vld [vmem:[%s731 + $0x34] sm:$0xf]
        %v3531 = vld [vmem:[%s731 + $0x38] sm:$0xf]
        %v3532 = vld [vmem:[%s731 + $0x3c] sm:$0xf]
        %v3533 = vld [vmem:[%s731 + $0x40] sm:$0xf]
        %v3534 = vld [vmem:[%s731 + $0x44] sm:$0xf]
        %v3535 = vld [vmem:[%s731 + $0x48] sm:$0xf]
        %v3536 = vld [vmem:[%s731 + $0x4c] sm:$0xf]
        %v3537 = vld [vmem:[%s731 + $0x50] sm:$0xf]
        %v3538 = vld [vmem:[%s731 + $0x54] sm:$0xf]
        %v3539 = vld [vmem:[%s731 + $0x58] sm:$0xf]
        %v3540 = vld [vmem:[%s731 + $0x5c] sm:$0xf]
        %v3541 = vld [vmem:[%s731 + $0x60] sm:$0xf]
        %v3542 = vld [vmem:[%s731 + $0x64] sm:$0xf]
        %v3543 = vld [vmem:[%s731 + $0x68] sm:$0xf]
        %v3544 = vld [vmem:[%s731 + $0x6c] sm:$0xf]
        %v3545 = vld [vmem:[%s731 + $0x70] sm:$0xf]
        %v3546 = vld [vmem:[%s731 + $0x74] sm:$0xf]
        %v3547 = vld [vmem:[%s731 + $0x78] sm:$0xf]
        %v3548 = vld [vmem:[%s731 + $0x7c] sm:$0xf]
        %v3549 = vld [vmem:[%s849] sm:$0x1]
        %v3551 = vlaneseq
        %v3552 = vshrl.u32 %v3551, 7
        %v3553 = vsub.s32 0, %v3552
        %v3554 = vrot.slane %v3549, %v3553
        %v3588 = vunpack.c.l.b16 %v3517
        %v3589 = vunpack.c.l.b16 %v3518
        %v3590 = vunpack.c.l.b16 %v3519
        %v3591 = vunpack.c.l.b16 %v3520
        %v3592 = vunpack.c.l.b16 %v3521
        %v3593 = vunpack.c.l.b16 %v3522
        %v3594 = vunpack.c.l.b16 %v3523
        %v3595 = vunpack.c.l.b16 %v3524
        %v3596 = vunpack.c.l.b16 %v3525
        %v3597 = vunpack.c.l.b16 %v3526
        %v3598 = vunpack.c.l.b16 %v3527
        %v3599 = vunpack.c.l.b16 %v3528
        %v3600 = vunpack.c.l.b16 %v3529
        %v3601 = vunpack.c.l.b16 %v3530
        %v3602 = vunpack.c.l.b16 %v3531
        %v3603 = vunpack.c.l.b16 %v3532
        %v3604 = vunpack.c.l.b16 %v3533
        %v3605 = vunpack.c.l.b16 %v3534
        %v3606 = vunpack.c.l.b16 %v3535
        %v3607 = vunpack.c.l.b16 %v3536
        %v3608 = vunpack.c.l.b16 %v3537
        %v3609 = vunpack.c.l.b16 %v3538
        %v3610 = vunpack.c.l.b16 %v3539
        %v3611 = vunpack.c.l.b16 %v3540
        %v3612 = vunpack.c.l.b16 %v3541
        %v3613 = vunpack.c.l.b16 %v3542
        %v3614 = vunpack.c.l.b16 %v3543
        %v3615 = vunpack.c.l.b16 %v3544
        %v3616 = vunpack.c.l.b16 %v3545
        %v3617 = vunpack.c.l.b16 %v3546
        %v3618 = vunpack.c.l.b16 %v3547
        %v3619 = vunpack.c.l.b16 %v3548
        %v3620 = vpack.c.b16 %v3589, %v3588
        %v3621 = vpack.c.b16 %v3591, %v3590
        %v3622 = vpack.c.b16 %v3593, %v3592
        %v3623 = vpack.c.b16 %v3595, %v3594
        %v3624 = vpack.c.b16 %v3597, %v3596
        %v3625 = vpack.c.b16 %v3599, %v3598
        %v3626 = vpack.c.b16 %v3601, %v3600
        %v3627 = vpack.c.b16 %v3603, %v3602
        %v3628 = vpack.c.b16 %v3605, %v3604
        %v3629 = vpack.c.b16 %v3607, %v3606
        %v3630 = vpack.c.b16 %v3609, %v3608
        %v3631 = vpack.c.b16 %v3611, %v3610
        %v3632 = vpack.c.b16 %v3613, %v3612
        %v3633 = vpack.c.b16 %v3615, %v3614
        %v3634 = vpack.c.b16 %v3617, %v3616
        %v3635 = vpack.c.b16 %v3619, %v3618
        %3652 = vmatprep.subr.bf16.mxu0 0
        %3653 = vmatpush1.bf16.msra.mxu0 %v3620
        %3654 = vmatprep.subr.bf16.mxu0 0
        %3655 = vmatpush1.bf16.msra.mxu0 %v3621
        %3656 = vmatprep.subr.bf16.mxu0 0
        %3657 = vmatpush1.bf16.msra.mxu0 %v3622
        %3658 = vmatprep.subr.bf16.mxu0 0
        %3659 = vmatpush1.bf16.msra.mxu0 %v3623
        %3660 = vmatprep.subr.bf16.mxu0 0
        %3661 = vmatpush1.bf16.msra.mxu0 %v3624
        %3662 = vmatprep.subr.bf16.mxu0 0
        %3663 = vmatpush1.bf16.msra.mxu0 %v3625
        %3664 = vmatprep.subr.bf16.mxu0 0
        %3665 = vmatpush1.bf16.msra.mxu0 %v3626
        %3666 = vmatprep.subr.bf16.mxu0 0
        %3667 = vmatpush1.bf16.msra.mxu0 %v3627
        %3668 = vmatprep.subr.bf16.mxu0 0
        %3669 = vmatpush1.bf16.msra.mxu0 %v3628
        %3670 = vmatprep.subr.bf16.mxu0 0
        %3671 = vmatpush1.bf16.msra.mxu0 %v3629
        %3672 = vmatprep.subr.bf16.mxu0 0
        %3673 = vmatpush1.bf16.msra.mxu0 %v3630
        %3674 = vmatprep.subr.bf16.mxu0 0
        %3675 = vmatpush1.bf16.msra.mxu0 %v3631
        %3676 = vmatprep.subr.bf16.mxu0 0
        %3677 = vmatpush1.bf16.msra.mxu0 %v3632
        %3678 = vmatprep.subr.bf16.mxu0 0
        %3679 = vmatpush1.bf16.msra.mxu0 %v3633
        %3680 = vmatprep.subr.bf16.mxu0 0
        %3681 = vmatpush1.bf16.msra.mxu0 %v3634
        %3682 = vmatprep.subr.bf16.mxu0 0
        %3683 = vmatpush1.bf16.msra.mxu0 %v3635
        %3684 = vmatprep.mubr.bf16.mxu0 %v3516
        %3685 = vmatmul.mubr.bf16.gmra.mrb[0].mxu0 %v3515
        %v3686 = vpop.f32.mrb[0].mxu0
        %v3687 = vadd.f32 %v3554, %v3686
        %v3688 = vpop.f32.mrb[0].mxu0
        %v3689 = vpop.f32.mrb[0].mxu0
        %v3690 = vadd.f32 %v3554, %v3689
        %v3691 = vpop.f32.mrb[0].mxu0
        %3692 = vdwg.mxu0
        %v3693 = vmul.f32 %v3687, 0.70710677
        %v3694 = vmul.f32 %v3690, 0.70710677
        %v3695 = vadd.f32 %v3301, %v3693
        %v3696 = vadd.f32 %v3302, %v3694
        %3697 = vst [vmem:[#allocation2] sm:$0xff] %v3695
        %3698 = vst [vmem:[#allocation2 + $0x8] sm:$0xff] %v3696
        %p3699 = scmp.eq.s32.totalorder %s47, 1
        // Predicated region
        $region113: #{tpu_custom_call.1} parent=79 // pred_check
          %p3700 = pneg %p3699
        $region114: #{tpu_custom_call.1} parent=79 // pred_check_branch
          %3702 = sbr.rel (%p3700) target = $region116
        $region115: #{tpu_custom_call.1} parent=79 // pred_region
          %3703 = vst [vmem:[#allocation17] sm:$0xff] %v3695
          %3704 = vst [vmem:[#allocation17 + $0x8] sm:$0xff] %v3696
        $region116: #{tpu_custom_call.1} parent=79 // pred_fallthru
          _
        // Predicated region
        $region117: #{tpu_custom_call.1} parent=79 // pred_check
          %p3705 = pneg %p462
        $region118: #{tpu_custom_call.1} parent=79 // pred_check_branch
          %3707 = sbr.rel (%p3705) target = $region120
        $region119: #{tpu_custom_call.1} parent=79 // pred_region
          %s3708 = smul.u32 2, %s46
          %s3710 = ssub.s32 256, 256
          %3711 = vsyncadd [#allocation7], %s3710
          %s3712 = smul.addr %s3708, 128
          %s3713 = scalar_lea.hbm %s16, %s3712
          %s3714 = sshll.u32 [#allocation17], 4
          %s3715 = int_to_ptr.vmem [resolvable:$true] %s3714
          %3720 = dma.vmem_to_hbm [thread:$0]  %s3715, 256, %s3713, [#allocation7], 128, 128, 8
        $region120: #{tpu_custom_call.1} parent=79 // pred_fallthru
          _
        // Predicated region
        $region121: #{tpu_custom_call.1} parent=79 // pred_check
          %p3721 = pneg %p462
        $region122: #{tpu_custom_call.1} parent=79 // pred_check_branch
          %3723 = sbr.rel (%p3721) target = $region124
        $region123: #{tpu_custom_call.1} parent=79 // pred_region
          %3724 = dma.done [#allocation7], 256
        $region124: #{tpu_custom_call.1} parent=79 // pred_fallthru
          _
      $region80: #{tpu_custom_call.1} parent=5 // pred_fallthru
        _
      %p3725 = scmp.le.s32.totalorder 2, %s37
      // Predicated region
      $region125: #{tpu_custom_call.1} parent=5 // pred_check
        %p3726 = pneg %p3725
      $region126: #{tpu_custom_call.1} parent=5 // pred_check_branch
        %3728 = sbr.rel (%p3726) target = $region128
      $region127: #{tpu_custom_call.1} parent=5 // pred_region
        %s3729 = ssub.s32 %s37, 2
      $region128: #{tpu_custom_call.1} parent=5 // pred_fallthru
        _
    $region6: #{tpu_custom_call.1} parent=1 // loop_footer
      %s41 = sadd.s32 1, %s37
    $region7: #{tpu_custom_call.1} parent=1 // loop_footer_branch
      %36 = sbr.rel target = $region3
    $region8: #{tpu_custom_call.1} parent=1 // loop_exit
      _
    %3730 = vsyncpa [#allocation6], 1
    %s3731 = scalar_lea.sflag [#allocation6], 1
    %3732 = vsyncpa %s3731, 1
    %3733 = vsyncpa [#allocation9], 1
    %s3734 = scalar_lea.sflag [#allocation9], 1
    %3735 = vsyncpa %s3734, 1
    %3736 = vsyncpa [#allocation12], 1
    %s3737 = scalar_lea.sflag [#allocation12], 1
    %3738 = vsyncpa %s3737, 1
    %3739 = vsyncpa [#allocation15], 1
    %s3740 = scalar_lea.sflag [#allocation15], 1
    %3741 = vsyncpa %s3740, 1
    %3742 = vsyncpa [#allocation7], 1
    %s3743 = scalar_lea.sflag [#allocation7], 1
    %3744 = vsyncpa %s3743, 1

</llo_original>
